<compile_context>
chip_gen: v5e
topology: v5e:2x2
jax: 0.10.0
libtpu: 0.0.40
codegen_flags: <defaults>
</compile_context>

<pallas_src>
import functools

import jax
import jax.numpy as jnp
from jax.experimental import pallas as pl
from jax.experimental.pallas import tpu as pltpu

HEADS = 8
NEG_BIG = 1e30                     # f32-safe large negative for masked softmax
VMEM_LIMIT_BYTES = 48 * 1024 * 1024  # explicit scoped-VMEM budget (fits v5e/v6e/v7x)


def _score_dtype_for_device():
    # bf16 VPU exists on TPU v6e / v7x; keep f32 on v5e and earlier.
    try:
        kind = jax.devices()[0].device_kind.lower()
    except Exception:
        return jnp.float32
    if "v6" in kind or "v7" in kind or "7x" in kind:
        return jnp.bfloat16
    return jnp.float32


def _pick_tm(n):
    # Keep ~a dozen live [tm, N] temporaries + the int8 adj double-buffer inside a
    # conservative working-set budget so the kernel also fits v7x's smaller VMEM.
    budget = 12 * 1024 * 1024
    per_row = 12 * n * 4
    cap = max(32, budget // max(per_row, 1))
    for t in (256, 128, 64, 32):     # multiples of 32 keep the int8 adj tile aligned
        if n % t == 0 and t <= cap:
            return t
    return n                         # small graphs: single-tile grid


# ----------------------------------------------------------------------------
# Pallas kernel: one full GATv2 layer (+ Linear skip, + optional ELU) over a
#                destination-row tile.
# ----------------------------------------------------------------------------
def gat_layer_kernel(x_ref, adj_ref, xl_ref, xlt_ref, st_ref,
                     wdst_ref, bdst_ref, attabs_ref, out_ref,
                     *, heads, out_ch, concat, apply_elu, score_dtype):
    c = out_ch
    hc = heads * c
    d_gat = hc if concat else c

    # ---- fused destination-tile projection: columns = [Wr | Wlin(+bg) | Wr@A] ----
    proj = jnp.dot(x_ref[...], wdst_ref[...],
                   preferred_element_type=jnp.float32) + bdst_ref[...]
    xr_d = proj[:, :hc]                       # [TM, HC]   destination projection
    lin_d = proj[:, hc:hc + d_gat]            # [TM, d_gat] linear skip (+ GAT bias)
    r_all = proj[:, hc + d_gat:hc + d_gat + heads]   # [TM, H] = 0.6*sum_c a[h,c]*xr

    xl = xl_ref[...]                          # [N, HC]  f32 aggregation RHS (resident)

    # ---- head-invariant adjacency mask / additive bias (int8 -> f32, hoisted) ----
    mask = adj_ref[...].astype(jnp.float32)   # [TM, N] in {0, 1}
    bias = (mask - 1.0) * jnp.float32(NEG_BIG)

    # hoisted casts for the VALU-heavy score loop (bf16 on v6e/v7x, f32 on v5e)
    xr_s = xr_d.astype(score_dtype)           # [TM, HC]
    r_s = r_all.astype(score_dtype)           # [TM, H]
    xlt_s = xlt_ref[...]                      # [HC, N]  already in score_dtype
    st_s = st_ref[...]                        # [H, N]   already in score_dtype
    bias_s = bias.astype(score_dtype)         # [TM, N]

    head_outs = []
    for h in range(heads):                    # static unroll over heads
        # e[d,s] = bias + 0.6*(a_h . xr_d) + 0.6*(a_h . xl_s)
        #          + sum_c 0.4*a[h,c]*|xr_d[.,hC+c] + xl_s[.,hC+c]|
        e = bias_s + r_s[:, h:h + 1] + st_s[h:h + 1, :]
        for cc in range(c):
            idx = h * c + cc
            u = xr_s[:, idx:idx + 1] + xlt_s[idx:idx + 1, :]     # [TM, N]
            coef = attabs_ref[h, cc].astype(score_dtype)         # 0.4 * a[h,c] (SMEM)
            e = e + coef * jnp.abs(u)

        # masked softmax over incoming neighbours (source axis = lanes), in f32
        e32 = e.astype(jnp.float32)
        m = jnp.max(e32, axis=1, keepdims=True)
        p = jnp.exp(e32 - m) * mask                              # exact zeros off-edge
        denom = jnp.sum(p, axis=1, keepdims=True)
        alpha = p * pl.reciprocal(jnp.maximum(denom, jnp.float32(1e-16)), approx=False)

        # aggregation: identical full-width RHS (xl) for every head -> MXU weight
        # load is shared; slice this head's columns from the result.
        agg = jnp.dot(alpha, xl, preferred_element_type=jnp.float32)   # [TM, HC]
        head_outs.append(agg[:, h * c:(h + 1) * c])                    # [TM, C]

    if concat:
        y = jnp.concatenate(head_outs, axis=1)            # [TM, HC] single wide store
    else:
        y = head_outs[0]
        for ho in head_outs[1:]:
            y = y + ho
        y = y * jnp.float32(1.0 / heads)                  # head average (mul, not div)

    y = y + lin_d                                         # linear skip (+ folded bias)
    if apply_elu:
        # ELU(alpha=1); min() keeps exp() finite on the discarded positive branch.
        y = jnp.where(y > 0, y, jnp.exp(jnp.minimum(y, 0.0)) - 1.0)
    out_ref[...] = y.astype(out_ref.dtype)


# ----------------------------------------------------------------------------
# Wrapper around pallas_call for one layer.
# ----------------------------------------------------------------------------
def gat_layer(x, adj_i8, p, *, heads, out_ch, concat, apply_elu, tm, score_dtype):
    n, d_in = x.shape
    c = out_ch
    hc = heads * c
    d_gat = hc if concat else c
    assert n % tm == 0, "destination-tile size must divide N"

    # One-time full-graph source projection (hoisted out of the per-tile grid).
    xl = jnp.dot(x, p["wl"], preferred_element_type=jnp.float32) + p["bl"]   # [N, HC]
    xlt = jnp.transpose(xl)                                                  # [HC, N]

    # Per-head linear score terms:  A[h*C + c, h] = 0.6 * att[h, c]
    att = p["att"]
    A = (0.6 * att)[:, :, None] * jnp.eye(heads, dtype=att.dtype)[:, None, :]
    A = A.reshape(hc, heads)                                                 # [HC, H]
    s_t = jnp.transpose(jnp.dot(xl, A))                                      # [H, N]

    # Fused destination-side weights: [Wr | Wlin | Wr@A]; GAT output bias folded in.
    w_dst = jnp.concatenate([p["wr"], p["wlin"], jnp.dot(p["wr"], A)], axis=1)
    b_dst = jnp.concatenate([p["br"], p["blin"] + p["bg"], jnp.dot(p["br"], A)], axis=1)

    att_abs = 0.4 * att                                                      # [H, C]

    kernel = functools.partial(
        gat_layer_kernel, heads=heads, out_ch=c, concat=concat,
        apply_elu=apply_elu, score_dtype=score_dtype)

    return pl.pallas_call(
        kernel,
        out_shape=jax.ShapeDtypeStruct((n, d_gat), jnp.float32),
        grid_spec=pltpu.PrefetchScalarGridSpec(
            num_scalar_prefetch=0,
            grid=(n // tm,),
            in_specs=[
                pl.BlockSpec((tm, d_in), lambda i: (i, 0)),        # x destination tile
                pl.BlockSpec((tm, n), lambda i: (i, 0)),           # adjacency tile (int8)
                pl.BlockSpec((n, hc), lambda i: (0, 0)),           # xl (f32, resident)
                pl.BlockSpec((hc, n), lambda i: (0, 0)),           # xl^T (score dtype)
                pl.BlockSpec((heads, n), lambda i: (0, 0)),        # per-head source terms
                pl.BlockSpec(w_dst.shape, lambda i: (0, 0)),       # fused dst weights
                pl.BlockSpec(b_dst.shape, lambda i: (0, 0)),       # fused dst bias
                pl.BlockSpec(memory_space=pltpu.MemorySpace.SMEM), # 0.4*att scalars
            ],
            out_specs=pl.BlockSpec((tm, d_gat), lambda i: (i, 0)),
        ),
        compiler_params=pltpu.CompilerParams(
            dimension_semantics=("parallel",),
            vmem_limit_bytes=VMEM_LIMIT_BYTES),
    )(x, adj_i8, xl, xlt.astype(score_dtype), s_t.astype(score_dtype),
      w_dst, b_dst, att_abs)


# ----------------------------------------------------------------------------
# Parameter construction (deterministic).
# ----------------------------------------------------------------------------
def init_layer_params(key, d_in, out_ch, heads, concat):
    ks = jax.random.split(key, 8)
    hc = heads * out_ch
    d_gat_out = hc if concat else out_ch
    scale = 0.3
    return {
        "wl":   scale * jax.random.normal(ks[0], (d_in, hc), jnp.float32),
        "bl":   scale * jax.random.normal(ks[1], (1, hc), jnp.float32),
        "wr":   scale * jax.random.normal(ks[2], (d_in, hc), jnp.float32),
        "br":   scale * jax.random.normal(ks[3], (1, hc), jnp.float32),
        "att":  scale * jax.random.normal(ks[4], (heads, out_ch), jnp.float32),
        "bg":   scale * jax.random.normal(ks[5], (1, d_gat_out), jnp.float32),
        "wlin": scale * jax.random.normal(ks[6], (d_in, d_gat_out), jnp.float32),
        "blin": scale * jax.random.normal(ks[7], (1, d_gat_out), jnp.float32),
    }


def init_model_params(key, f_in, hidden, out_ch, heads):
    k1, k2, k3 = jax.random.split(key, 3)
    return {
        "l1": init_layer_params(k1, f_in, hidden, heads, concat=True),
        "l2": init_layer_params(k2, hidden * heads, hidden, heads, concat=True),
        "l3": init_layer_params(k3, hidden * heads, out_ch, heads, concat=False),
    }


# ----------------------------------------------------------------------------
# Model.forward equivalent.
# ----------------------------------------------------------------------------
def model_forward(x_dict, edge_index_dict, params, *, hidden, out_ch, heads, tm=None):
    x = x_dict["pheno"]
    ei = edge_index_dict[("pheno", "to", "pheno")]
    n = x.shape[0]
    tm = _pick_tm(n) if tm is None else tm
    score_dtype = _score_dtype_for_device()

    # Dense int8 adjacency: adj[dst, src] = 1 for every edge src -> dst.
    # GATv2Conv is constructed with add_self_loops=False, so no diagonal is added.
    adj = jnp.zeros((n, n), jnp.int8).at[ei[1], ei[0]].set(1)

    h1 = gat_layer(x, adj, params["l1"], heads=heads, out_ch=hidden,
                   concat=True, apply_elu=True, tm=tm, score_dtype=score_dtype)
    h2 = gat_layer(h1, adj, params["l2"], heads=heads, out_ch=hidden,
                   concat=True, apply_elu=True, tm=tm, score_dtype=score_dtype)
    z = gat_layer(h2, adj, params["l3"], heads=heads, out_ch=out_ch,
                  concat=False, apply_elu=False, tm=tm, score_dtype=score_dtype)
    # NodeDecoder: mean over the feature axis (done in XLA so the kernel keeps a
    # clean [N, out_ch] block store instead of a (tm, 1) masked-store output).
    return jnp.mean(z, axis=1)                            # [N]


# ----------------------------------------------------------------------------
if __name__ == "__main__":
    N, F_IN, HIDDEN, OUT_CH = 128, 16, 4, 4

    key = jax.random.PRNGKey(0)
    k_x, k_p = jax.random.split(key)

    x_pheno = jax.random.normal(k_x, (N, F_IN), jnp.float32)

    # deterministic edge set: forward ring, backward ring, skip-2 ring
    idx = jnp.arange(N, dtype=jnp.int32)
    src = jnp.concatenate([idx, idx, idx])
    dst = jnp.concatenate([(idx + 1) % N, (idx - 1) % N, (idx + 2) % N])
    edge_index = jnp.stack([src, dst], axis=0)            # [2, 3N]

    x_dict = {"pheno": x_pheno}
    edge_index_dict = {("pheno", "to", "pheno"): edge_index}

    params = init_model_params(k_p, F_IN, HIDDEN, OUT_CH, HEADS)

    # tm=64 -> 2-step destination-row grid at N=128 (exercises the tiled pipeline)
    out = model_forward(x_dict, edge_index_dict, params,
                        hidden=HIDDEN, out_ch=OUT_CH, heads=HEADS, tm=64)
    jax.block_until_ready(out)
    assert out.shape == (N,)
    assert bool(jnp.all(jnp.isfinite(out)))
    print("KERNEL_OK")
</pallas_src>

<mosaic_0001>
module attributes {stable_mosaic.version = 11 : i64} {
  func.func @gat_layer_kernel(%arg0: i32, %arg1: memref<64x16xf32, #tpu.memory_space<vmem>>, %arg2: memref<64x128xi8, #tpu.memory_space<vmem>>, %arg3: memref<128x32xf32, #tpu.memory_space<vmem>>, %arg4: memref<32x128xf32, #tpu.memory_space<vmem>>, %arg5: memref<8x128xf32, #tpu.memory_space<vmem>>, %arg6: memref<16x72xf32, #tpu.memory_space<vmem>>, %arg7: memref<1x72xf32, #tpu.memory_space<vmem>>, %arg8: memref<8x4xf32, #tpu.memory_space<smem>>, %arg9: memref<64x32xf32, #tpu.memory_space<vmem>>) attributes {dimension_semantics = [#tpu.dimension_semantics<parallel>], iteration_bounds = array<i64: 2>, scalar_prefetch = 0 : i64, scratch_operands = 0 : i64, tpu.core_type = #tpu.core_type<tc>, window_params = [{transform_indices = @transform_0, window_bounds = array<i64: 64, 16>}, {transform_indices = @transform_1, window_bounds = array<i64: 64, 128>}, {pipeline_mode = #tpu.pipeline_mode<synchronous>, transform_indices = @transform_2, window_bounds = array<i64: 128, 32>}, {pipeline_mode = #tpu.pipeline_mode<synchronous>, transform_indices = @transform_3, window_bounds = array<i64: 32, 128>}, {pipeline_mode = #tpu.pipeline_mode<synchronous>, transform_indices = @transform_4, window_bounds = array<i64: 8, 128>}, {pipeline_mode = #tpu.pipeline_mode<synchronous>, transform_indices = @transform_5, window_bounds = array<i64: 16, 72>}, {pipeline_mode = #tpu.pipeline_mode<synchronous>, transform_indices = @transform_6, window_bounds = array<i64: 1, 72>}, {transform_indices = @transform_7, window_bounds = array<i64: 8, 4>}, {transform_indices = @transform_8, window_bounds = array<i64: 64, 32>}]} {
    %c0 = arith.constant 0 : index
    %c0_0 = arith.constant 0 : index
    %0 = vector.load %arg1[%c0, %c0_0] : memref<64x16xf32, #tpu.memory_space<vmem>>, vector<64x16xf32>
    %c0_1 = arith.constant 0 : index
    %c0_2 = arith.constant 0 : index
    %1 = vector.load %arg6[%c0_1, %c0_2] : memref<16x72xf32, #tpu.memory_space<vmem>>, vector<16x72xf32>
    %cst = arith.constant dense<0.000000e+00> : vector<64x72xf32>
    %2 = tpu.matmul %0, %1, %cst {dimension_numbers = #tpu.dot_dimension_numbers<[1], [0], [0], [1], [0, 0, 1, 1], [], []>} : vector<64x16xf32>, vector<16x72xf32>, vector<64x72xf32> -> vector<64x72xf32>
    %c0_3 = arith.constant 0 : index
    %c0_4 = arith.constant 0 : index
    %3 = vector.load %arg7[%c0_3, %c0_4] : memref<1x72xf32, #tpu.memory_space<vmem>>, vector<1x72xf32>
    %4 = vector.broadcast %3 : vector<1x72xf32> to vector<64x72xf32>
    %5 = arith.addf %2, %4 : vector<64x72xf32>
    %6 = vector.extract_strided_slice %5 {offsets = [0, 0], sizes = [64, 32], strides = [1, 1]} : vector<64x72xf32> to vector<64x32xf32>
    %7 = vector.extract_strided_slice %5 {offsets = [0, 32], sizes = [64, 32], strides = [1, 1]} : vector<64x72xf32> to vector<64x32xf32>
    %8 = vector.extract_strided_slice %5 {offsets = [0, 64], sizes = [64, 8], strides = [1, 1]} : vector<64x72xf32> to vector<64x8xf32>
    %c0_5 = arith.constant 0 : index
    %c0_6 = arith.constant 0 : index
    %9 = vector.load %arg3[%c0_5, %c0_6] : memref<128x32xf32, #tpu.memory_space<vmem>>, vector<128x32xf32>
    %c0_7 = arith.constant 0 : index
    %c0_8 = arith.constant 0 : index
    %10 = vector.load %arg2[%c0_7, %c0_8] : memref<64x128xi8, #tpu.memory_space<vmem>>, vector<64x128xi8>
    %11 = arith.sitofp %10 : vector<64x128xi8> to vector<64x128xf32>
    %cst_9 = arith.constant 1.000000e+00 : f32
    %12 = vector.broadcast %cst_9 : f32 to vector<64x128xf32>
    %13 = arith.subf %11, %12 : vector<64x128xf32>
    %cst_10 = arith.constant 1.000000e+30 : f32
    %14 = vector.broadcast %cst_10 : f32 to vector<64x128xf32>
    %15 = arith.mulf %13, %14 : vector<64x128xf32>
    %c0_11 = arith.constant 0 : index
    %c0_12 = arith.constant 0 : index
    %16 = vector.load %arg4[%c0_11, %c0_12] : memref<32x128xf32, #tpu.memory_space<vmem>>, vector<32x128xf32>
    %c0_13 = arith.constant 0 : index
    %c0_14 = arith.constant 0 : index
    %17 = vector.load %arg5[%c0_13, %c0_14] : memref<8x128xf32, #tpu.memory_space<vmem>>, vector<8x128xf32>
    %18 = vector.extract_strided_slice %8 {offsets = [0, 0], sizes = [64, 1], strides = [1, 1]} : vector<64x8xf32> to vector<64x1xf32>
    %19 = vector.broadcast %18 : vector<64x1xf32> to vector<64x128xf32>
    %20 = arith.addf %15, %19 : vector<64x128xf32>
    %21 = vector.extract_strided_slice %17 {offsets = [0, 0], sizes = [1, 128], strides = [1, 1]} : vector<8x128xf32> to vector<1x128xf32>
    %22 = vector.broadcast %21 : vector<1x128xf32> to vector<64x128xf32>
    %23 = arith.addf %20, %22 : vector<64x128xf32>
    %24 = vector.extract_strided_slice %6 {offsets = [0, 0], sizes = [64, 1], strides = [1, 1]} : vector<64x32xf32> to vector<64x1xf32>
    %25 = vector.extract_strided_slice %16 {offsets = [0, 0], sizes = [1, 128], strides = [1, 1]} : vector<32x128xf32> to vector<1x128xf32>
    %26 = vector.broadcast %24 : vector<64x1xf32> to vector<64x128xf32>
    %27 = vector.broadcast %25 : vector<1x128xf32> to vector<64x128xf32>
    %28 = arith.addf %26, %27 : vector<64x128xf32>
    %c0_15 = arith.constant 0 : index
    %c0_16 = arith.constant 0 : index
    %29 = memref.load %arg8[%c0_15, %c0_16] : memref<8x4xf32, #tpu.memory_space<smem>>
    %30 = math.absf %28 : vector<64x128xf32>
    %31 = vector.broadcast %29 : f32 to vector<64x128xf32>
    %32 = arith.mulf %31, %30 : vector<64x128xf32>
    %33 = arith.addf %23, %32 : vector<64x128xf32>
    %34 = vector.extract_strided_slice %6 {offsets = [0, 1], sizes = [64, 1], strides = [1, 1]} : vector<64x32xf32> to vector<64x1xf32>
    %35 = vector.extract_strided_slice %16 {offsets = [1, 0], sizes = [1, 128], strides = [1, 1]} : vector<32x128xf32> to vector<1x128xf32>
    %36 = vector.broadcast %34 : vector<64x1xf32> to vector<64x128xf32>
    %37 = vector.broadcast %35 : vector<1x128xf32> to vector<64x128xf32>
    %38 = arith.addf %36, %37 : vector<64x128xf32>
    %c0_17 = arith.constant 0 : index
    %c1 = arith.constant 1 : index
    %39 = memref.load %arg8[%c0_17, %c1] : memref<8x4xf32, #tpu.memory_space<smem>>
    %40 = math.absf %38 : vector<64x128xf32>
    %41 = vector.broadcast %39 : f32 to vector<64x128xf32>
    %42 = arith.mulf %41, %40 : vector<64x128xf32>
    %43 = arith.addf %33, %42 : vector<64x128xf32>
    %44 = vector.extract_strided_slice %6 {offsets = [0, 2], sizes = [64, 1], strides = [1, 1]} : vector<64x32xf32> to vector<64x1xf32>
    %45 = vector.extract_strided_slice %16 {offsets = [2, 0], sizes = [1, 128], strides = [1, 1]} : vector<32x128xf32> to vector<1x128xf32>
    %46 = vector.broadcast %44 : vector<64x1xf32> to vector<64x128xf32>
    %47 = vector.broadcast %45 : vector<1x128xf32> to vector<64x128xf32>
    %48 = arith.addf %46, %47 : vector<64x128xf32>
    %c0_18 = arith.constant 0 : index
    %c2 = arith.constant 2 : index
    %49 = memref.load %arg8[%c0_18, %c2] : memref<8x4xf32, #tpu.memory_space<smem>>
    %50 = math.absf %48 : vector<64x128xf32>
    %51 = vector.broadcast %49 : f32 to vector<64x128xf32>
    %52 = arith.mulf %51, %50 : vector<64x128xf32>
    %53 = arith.addf %43, %52 : vector<64x128xf32>
    %54 = vector.extract_strided_slice %6 {offsets = [0, 3], sizes = [64, 1], strides = [1, 1]} : vector<64x32xf32> to vector<64x1xf32>
    %55 = vector.extract_strided_slice %16 {offsets = [3, 0], sizes = [1, 128], strides = [1, 1]} : vector<32x128xf32> to vector<1x128xf32>
    %56 = vector.broadcast %54 : vector<64x1xf32> to vector<64x128xf32>
    %57 = vector.broadcast %55 : vector<1x128xf32> to vector<64x128xf32>
    %58 = arith.addf %56, %57 : vector<64x128xf32>
    %c0_19 = arith.constant 0 : index
    %c3 = arith.constant 3 : index
    %59 = memref.load %arg8[%c0_19, %c3] : memref<8x4xf32, #tpu.memory_space<smem>>
    %60 = math.absf %58 : vector<64x128xf32>
    %61 = vector.broadcast %59 : f32 to vector<64x128xf32>
    %62 = arith.mulf %61, %60 : vector<64x128xf32>
    %63 = arith.addf %53, %62 : vector<64x128xf32>
    %cst_20 = arith.constant dense<0xFF800000> : vector<64xf32>
    %64 = vector.multi_reduction <maximumf>, %63, %cst_20 [1] : vector<64x128xf32> to vector<64xf32>
    %65 = vector.shape_cast %64 : vector<64xf32> to vector<64x1xf32>
    %66 = vector.broadcast %65 : vector<64x1xf32> to vector<64x128xf32>
    %67 = arith.subf %63, %66 : vector<64x128xf32>
    %68 = math.exp %67 : vector<64x128xf32>
    %69 = arith.mulf %68, %11 : vector<64x128xf32>
    %cst_21 = arith.constant dense<0.000000e+00> : vector<64xf32>
    %70 = vector.multi_reduction <add>, %69, %cst_21 [1] : vector<64x128xf32> to vector<64xf32>
    %71 = vector.shape_cast %70 : vector<64xf32> to vector<64x1xf32>
    %cst_22 = arith.constant 1.000000e-16 : f32
    %72 = vector.broadcast %cst_22 : f32 to vector<64x1xf32>
    %73 = arith.maximumf %71, %72 : vector<64x1xf32>
    %74 = tpu.reciprocal %73 : vector<64x1xf32> -> vector<64x1xf32>
    %75 = vector.broadcast %74 : vector<64x1xf32> to vector<64x128xf32>
    %76 = arith.mulf %69, %75 : vector<64x128xf32>
    %cst_23 = arith.constant dense<0.000000e+00> : vector<64x32xf32>
    %77 = tpu.matmul %76, %9, %cst_23 {dimension_numbers = #tpu.dot_dimension_numbers<[1], [0], [0], [1], [0, 0, 1, 1], [], []>} : vector<64x128xf32>, vector<128x32xf32>, vector<64x32xf32> -> vector<64x32xf32>
    %78 = vector.extract_strided_slice %77 {offsets = [0, 0], sizes = [64, 4], strides = [1, 1]} : vector<64x32xf32> to vector<64x4xf32>
    %79 = vector.extract_strided_slice %8 {offsets = [0, 1], sizes = [64, 1], strides = [1, 1]} : vector<64x8xf32> to vector<64x1xf32>
    %80 = vector.broadcast %79 : vector<64x1xf32> to vector<64x128xf32>
    %81 = arith.addf %15, %80 : vector<64x128xf32>
    %82 = vector.extract_strided_slice %17 {offsets = [1, 0], sizes = [1, 128], strides = [1, 1]} : vector<8x128xf32> to vector<1x128xf32>
    %83 = vector.broadcast %82 : vector<1x128xf32> to vector<64x128xf32>
    %84 = arith.addf %81, %83 : vector<64x128xf32>
    %85 = vector.extract_strided_slice %6 {offsets = [0, 4], sizes = [64, 1], strides = [1, 1]} : vector<64x32xf32> to vector<64x1xf32>
    %86 = vector.extract_strided_slice %16 {offsets = [4, 0], sizes = [1, 128], strides = [1, 1]} : vector<32x128xf32> to vector<1x128xf32>
    %87 = vector.broadcast %85 : vector<64x1xf32> to vector<64x128xf32>
    %88 = vector.broadcast %86 : vector<1x128xf32> to vector<64x128xf32>
    %89 = arith.addf %87, %88 : vector<64x128xf32>
    %c1_24 = arith.constant 1 : index
    %c0_25 = arith.constant 0 : index
    %90 = memref.load %arg8[%c1_24, %c0_25] : memref<8x4xf32, #tpu.memory_space<smem>>
    %91 = math.absf %89 : vector<64x128xf32>
    %92 = vector.broadcast %90 : f32 to vector<64x128xf32>
    %93 = arith.mulf %92, %91 : vector<64x128xf32>
    %94 = arith.addf %84, %93 : vector<64x128xf32>
    %95 = vector.extract_strided_slice %6 {offsets = [0, 5], sizes = [64, 1], strides = [1, 1]} : vector<64x32xf32> to vector<64x1xf32>
    %96 = vector.extract_strided_slice %16 {offsets = [5, 0], sizes = [1, 128], strides = [1, 1]} : vector<32x128xf32> to vector<1x128xf32>
    %97 = vector.broadcast %95 : vector<64x1xf32> to vector<64x128xf32>
    %98 = vector.broadcast %96 : vector<1x128xf32> to vector<64x128xf32>
    %99 = arith.addf %97, %98 : vector<64x128xf32>
    %c1_26 = arith.constant 1 : index
    %c1_27 = arith.constant 1 : index
    %100 = memref.load %arg8[%c1_26, %c1_27] : memref<8x4xf32, #tpu.memory_space<smem>>
    %101 = math.absf %99 : vector<64x128xf32>
    %102 = vector.broadcast %100 : f32 to vector<64x128xf32>
    %103 = arith.mulf %102, %101 : vector<64x128xf32>
    %104 = arith.addf %94, %103 : vector<64x128xf32>
    %105 = vector.extract_strided_slice %6 {offsets = [0, 6], sizes = [64, 1], strides = [1, 1]} : vector<64x32xf32> to vector<64x1xf32>
    %106 = vector.extract_strided_slice %16 {offsets = [6, 0], sizes = [1, 128], strides = [1, 1]} : vector<32x128xf32> to vector<1x128xf32>
    %107 = vector.broadcast %105 : vector<64x1xf32> to vector<64x128xf32>
    %108 = vector.broadcast %106 : vector<1x128xf32> to vector<64x128xf32>
    %109 = arith.addf %107, %108 : vector<64x128xf32>
    %c1_28 = arith.constant 1 : index
    %c2_29 = arith.constant 2 : index
    %110 = memref.load %arg8[%c1_28, %c2_29] : memref<8x4xf32, #tpu.memory_space<smem>>
    %111 = math.absf %109 : vector<64x128xf32>
    %112 = vector.broadcast %110 : f32 to vector<64x128xf32>
    %113 = arith.mulf %112, %111 : vector<64x128xf32>
    %114 = arith.addf %104, %113 : vector<64x128xf32>
    %115 = vector.extract_strided_slice %6 {offsets = [0, 7], sizes = [64, 1], strides = [1, 1]} : vector<64x32xf32> to vector<64x1xf32>
    %116 = vector.extract_strided_slice %16 {offsets = [7, 0], sizes = [1, 128], strides = [1, 1]} : vector<32x128xf32> to vector<1x128xf32>
    %117 = vector.broadcast %115 : vector<64x1xf32> to vector<64x128xf32>
    %118 = vector.broadcast %116 : vector<1x128xf32> to vector<64x128xf32>
    %119 = arith.addf %117, %118 : vector<64x128xf32>
    %c1_30 = arith.constant 1 : index
    %c3_31 = arith.constant 3 : index
    %120 = memref.load %arg8[%c1_30, %c3_31] : memref<8x4xf32, #tpu.memory_space<smem>>
    %121 = math.absf %119 : vector<64x128xf32>
    %122 = vector.broadcast %120 : f32 to vector<64x128xf32>
    %123 = arith.mulf %122, %121 : vector<64x128xf32>
    %124 = arith.addf %114, %123 : vector<64x128xf32>
    %cst_32 = arith.constant dense<0xFF800000> : vector<64xf32>
    %125 = vector.multi_reduction <maximumf>, %124, %cst_32 [1] : vector<64x128xf32> to vector<64xf32>
    %126 = vector.shape_cast %125 : vector<64xf32> to vector<64x1xf32>
    %127 = vector.broadcast %126 : vector<64x1xf32> to vector<64x128xf32>
    %128 = arith.subf %124, %127 : vector<64x128xf32>
    %129 = math.exp %128 : vector<64x128xf32>
    %130 = arith.mulf %129, %11 : vector<64x128xf32>
    %cst_33 = arith.constant dense<0.000000e+00> : vector<64xf32>
    %131 = vector.multi_reduction <add>, %130, %cst_33 [1] : vector<64x128xf32> to vector<64xf32>
    %132 = vector.shape_cast %131 : vector<64xf32> to vector<64x1xf32>
    %cst_34 = arith.constant 1.000000e-16 : f32
    %133 = vector.broadcast %cst_34 : f32 to vector<64x1xf32>
    %134 = arith.maximumf %132, %133 : vector<64x1xf32>
    %135 = tpu.reciprocal %134 : vector<64x1xf32> -> vector<64x1xf32>
    %136 = vector.broadcast %135 : vector<64x1xf32> to vector<64x128xf32>
    %137 = arith.mulf %130, %136 : vector<64x128xf32>
    %cst_35 = arith.constant dense<0.000000e+00> : vector<64x32xf32>
    %138 = tpu.matmul %137, %9, %cst_35 {dimension_numbers = #tpu.dot_dimension_numbers<[1], [0], [0], [1], [0, 0, 1, 1], [], []>} : vector<64x128xf32>, vector<128x32xf32>, vector<64x32xf32> -> vector<64x32xf32>
    %139 = vector.extract_strided_slice %138 {offsets = [0, 4], sizes = [64, 4], strides = [1, 1]} : vector<64x32xf32> to vector<64x4xf32>
    %140 = vector.extract_strided_slice %8 {offsets = [0, 2], sizes = [64, 1], strides = [1, 1]} : vector<64x8xf32> to vector<64x1xf32>
    %141 = vector.broadcast %140 : vector<64x1xf32> to vector<64x128xf32>
    %142 = arith.addf %15, %141 : vector<64x128xf32>
    %143 = vector.extract_strided_slice %17 {offsets = [2, 0], sizes = [1, 128], strides = [1, 1]} : vector<8x128xf32> to vector<1x128xf32>
    %144 = vector.broadcast %143 : vector<1x128xf32> to vector<64x128xf32>
    %145 = arith.addf %142, %144 : vector<64x128xf32>
    %146 = vector.extract_strided_slice %6 {offsets = [0, 8], sizes = [64, 1], strides = [1, 1]} : vector<64x32xf32> to vector<64x1xf32>
    %147 = vector.extract_strided_slice %16 {offsets = [8, 0], sizes = [1, 128], strides = [1, 1]} : vector<32x128xf32> to vector<1x128xf32>
    %148 = vector.broadcast %146 : vector<64x1xf32> to vector<64x128xf32>
    %149 = vector.broadcast %147 : vector<1x128xf32> to vector<64x128xf32>
    %150 = arith.addf %148, %149 : vector<64x128xf32>
    %c2_36 = arith.constant 2 : index
    %c0_37 = arith.constant 0 : index
    %151 = memref.load %arg8[%c2_36, %c0_37] : memref<8x4xf32, #tpu.memory_space<smem>>
    %152 = math.absf %150 : vector<64x128xf32>
    %153 = vector.broadcast %151 : f32 to vector<64x128xf32>
    %154 = arith.mulf %153, %152 : vector<64x128xf32>
    %155 = arith.addf %145, %154 : vector<64x128xf32>
    %156 = vector.extract_strided_slice %6 {offsets = [0, 9], sizes = [64, 1], strides = [1, 1]} : vector<64x32xf32> to vector<64x1xf32>
    %157 = vector.extract_strided_slice %16 {offsets = [9, 0], sizes = [1, 128], strides = [1, 1]} : vector<32x128xf32> to vector<1x128xf32>
    %158 = vector.broadcast %156 : vector<64x1xf32> to vector<64x128xf32>
    %159 = vector.broadcast %157 : vector<1x128xf32> to vector<64x128xf32>
    %160 = arith.addf %158, %159 : vector<64x128xf32>
    %c2_38 = arith.constant 2 : index
    %c1_39 = arith.constant 1 : index
    %161 = memref.load %arg8[%c2_38, %c1_39] : memref<8x4xf32, #tpu.memory_space<smem>>
    %162 = math.absf %160 : vector<64x128xf32>
    %163 = vector.broadcast %161 : f32 to vector<64x128xf32>
    %164 = arith.mulf %163, %162 : vector<64x128xf32>
    %165 = arith.addf %155, %164 : vector<64x128xf32>
    %166 = vector.extract_strided_slice %6 {offsets = [0, 10], sizes = [64, 1], strides = [1, 1]} : vector<64x32xf32> to vector<64x1xf32>
    %167 = vector.extract_strided_slice %16 {offsets = [10, 0], sizes = [1, 128], strides = [1, 1]} : vector<32x128xf32> to vector<1x128xf32>
    %168 = vector.broadcast %166 : vector<64x1xf32> to vector<64x128xf32>
    %169 = vector.broadcast %167 : vector<1x128xf32> to vector<64x128xf32>
    %170 = arith.addf %168, %169 : vector<64x128xf32>
    %c2_40 = arith.constant 2 : index
    %c2_41 = arith.constant 2 : index
    %171 = memref.load %arg8[%c2_40, %c2_41] : memref<8x4xf32, #tpu.memory_space<smem>>
    %172 = math.absf %170 : vector<64x128xf32>
    %173 = vector.broadcast %171 : f32 to vector<64x128xf32>
    %174 = arith.mulf %173, %172 : vector<64x128xf32>
    %175 = arith.addf %165, %174 : vector<64x128xf32>
    %176 = vector.extract_strided_slice %6 {offsets = [0, 11], sizes = [64, 1], strides = [1, 1]} : vector<64x32xf32> to vector<64x1xf32>
    %177 = vector.extract_strided_slice %16 {offsets = [11, 0], sizes = [1, 128], strides = [1, 1]} : vector<32x128xf32> to vector<1x128xf32>
    %178 = vector.broadcast %176 : vector<64x1xf32> to vector<64x128xf32>
    %179 = vector.broadcast %177 : vector<1x128xf32> to vector<64x128xf32>
    %180 = arith.addf %178, %179 : vector<64x128xf32>
    %c2_42 = arith.constant 2 : index
    %c3_43 = arith.constant 3 : index
    %181 = memref.load %arg8[%c2_42, %c3_43] : memref<8x4xf32, #tpu.memory_space<smem>>
    %182 = math.absf %180 : vector<64x128xf32>
    %183 = vector.broadcast %181 : f32 to vector<64x128xf32>
    %184 = arith.mulf %183, %182 : vector<64x128xf32>
    %185 = arith.addf %175, %184 : vector<64x128xf32>
    %cst_44 = arith.constant dense<0xFF800000> : vector<64xf32>
    %186 = vector.multi_reduction <maximumf>, %185, %cst_44 [1] : vector<64x128xf32> to vector<64xf32>
    %187 = vector.shape_cast %186 : vector<64xf32> to vector<64x1xf32>
    %188 = vector.broadcast %187 : vector<64x1xf32> to vector<64x128xf32>
    %189 = arith.subf %185, %188 : vector<64x128xf32>
    %190 = math.exp %189 : vector<64x128xf32>
    %191 = arith.mulf %190, %11 : vector<64x128xf32>
    %cst_45 = arith.constant dense<0.000000e+00> : vector<64xf32>
    %192 = vector.multi_reduction <add>, %191, %cst_45 [1] : vector<64x128xf32> to vector<64xf32>
    %193 = vector.shape_cast %192 : vector<64xf32> to vector<64x1xf32>
    %cst_46 = arith.constant 1.000000e-16 : f32
    %194 = vector.broadcast %cst_46 : f32 to vector<64x1xf32>
    %195 = arith.maximumf %193, %194 : vector<64x1xf32>
    %196 = tpu.reciprocal %195 : vector<64x1xf32> -> vector<64x1xf32>
    %197 = vector.broadcast %196 : vector<64x1xf32> to vector<64x128xf32>
    %198 = arith.mulf %191, %197 : vector<64x128xf32>
    %cst_47 = arith.constant dense<0.000000e+00> : vector<64x32xf32>
    %199 = tpu.matmul %198, %9, %cst_47 {dimension_numbers = #tpu.dot_dimension_numbers<[1], [0], [0], [1], [0, 0, 1, 1], [], []>} : vector<64x128xf32>, vector<128x32xf32>, vector<64x32xf32> -> vector<64x32xf32>
    %200 = vector.extract_strided_slice %199 {offsets = [0, 8], sizes = [64, 4], strides = [1, 1]} : vector<64x32xf32> to vector<64x4xf32>
    %201 = vector.extract_strided_slice %8 {offsets = [0, 3], sizes = [64, 1], strides = [1, 1]} : vector<64x8xf32> to vector<64x1xf32>
    %202 = vector.broadcast %201 : vector<64x1xf32> to vector<64x128xf32>
    %203 = arith.addf %15, %202 : vector<64x128xf32>
    %204 = vector.extract_strided_slice %17 {offsets = [3, 0], sizes = [1, 128], strides = [1, 1]} : vector<8x128xf32> to vector<1x128xf32>
    %205 = vector.broadcast %204 : vector<1x128xf32> to vector<64x128xf32>
    %206 = arith.addf %203, %205 : vector<64x128xf32>
    %207 = vector.extract_strided_slice %6 {offsets = [0, 12], sizes = [64, 1], strides = [1, 1]} : vector<64x32xf32> to vector<64x1xf32>
    %208 = vector.extract_strided_slice %16 {offsets = [12, 0], sizes = [1, 128], strides = [1, 1]} : vector<32x128xf32> to vector<1x128xf32>
    %209 = vector.broadcast %207 : vector<64x1xf32> to vector<64x128xf32>
    %210 = vector.broadcast %208 : vector<1x128xf32> to vector<64x128xf32>
    %211 = arith.addf %209, %210 : vector<64x128xf32>
    %c3_48 = arith.constant 3 : index
    %c0_49 = arith.constant 0 : index
    %212 = memref.load %arg8[%c3_48, %c0_49] : memref<8x4xf32, #tpu.memory_space<smem>>
    %213 = math.absf %211 : vector<64x128xf32>
    %214 = vector.broadcast %212 : f32 to vector<64x128xf32>
    %215 = arith.mulf %214, %213 : vector<64x128xf32>
    %216 = arith.addf %206, %215 : vector<64x128xf32>
    %217 = vector.extract_strided_slice %6 {offsets = [0, 13], sizes = [64, 1], strides = [1, 1]} : vector<64x32xf32> to vector<64x1xf32>
    %218 = vector.extract_strided_slice %16 {offsets = [13, 0], sizes = [1, 128], strides = [1, 1]} : vector<32x128xf32> to vector<1x128xf32>
    %219 = vector.broadcast %217 : vector<64x1xf32> to vector<64x128xf32>
    %220 = vector.broadcast %218 : vector<1x128xf32> to vector<64x128xf32>
    %221 = arith.addf %219, %220 : vector<64x128xf32>
    %c3_50 = arith.constant 3 : index
    %c1_51 = arith.constant 1 : index
    %222 = memref.load %arg8[%c3_50, %c1_51] : memref<8x4xf32, #tpu.memory_space<smem>>
    %223 = math.absf %221 : vector<64x128xf32>
    %224 = vector.broadcast %222 : f32 to vector<64x128xf32>
    %225 = arith.mulf %224, %223 : vector<64x128xf32>
    %226 = arith.addf %216, %225 : vector<64x128xf32>
    %227 = vector.extract_strided_slice %6 {offsets = [0, 14], sizes = [64, 1], strides = [1, 1]} : vector<64x32xf32> to vector<64x1xf32>
    %228 = vector.extract_strided_slice %16 {offsets = [14, 0], sizes = [1, 128], strides = [1, 1]} : vector<32x128xf32> to vector<1x128xf32>
    %229 = vector.broadcast %227 : vector<64x1xf32> to vector<64x128xf32>
    %230 = vector.broadcast %228 : vector<1x128xf32> to vector<64x128xf32>
    %231 = arith.addf %229, %230 : vector<64x128xf32>
    %c3_52 = arith.constant 3 : index
    %c2_53 = arith.constant 2 : index
    %232 = memref.load %arg8[%c3_52, %c2_53] : memref<8x4xf32, #tpu.memory_space<smem>>
    %233 = math.absf %231 : vector<64x128xf32>
    %234 = vector.broadcast %232 : f32 to vector<64x128xf32>
    %235 = arith.mulf %234, %233 : vector<64x128xf32>
    %236 = arith.addf %226, %235 : vector<64x128xf32>
    %237 = vector.extract_strided_slice %6 {offsets = [0, 15], sizes = [64, 1], strides = [1, 1]} : vector<64x32xf32> to vector<64x1xf32>
    %238 = vector.extract_strided_slice %16 {offsets = [15, 0], sizes = [1, 128], strides = [1, 1]} : vector<32x128xf32> to vector<1x128xf32>
    %239 = vector.broadcast %237 : vector<64x1xf32> to vector<64x128xf32>
    %240 = vector.broadcast %238 : vector<1x128xf32> to vector<64x128xf32>
    %241 = arith.addf %239, %240 : vector<64x128xf32>
    %c3_54 = arith.constant 3 : index
    %c3_55 = arith.constant 3 : index
    %242 = memref.load %arg8[%c3_54, %c3_55] : memref<8x4xf32, #tpu.memory_space<smem>>
    %243 = math.absf %241 : vector<64x128xf32>
    %244 = vector.broadcast %242 : f32 to vector<64x128xf32>
    %245 = arith.mulf %244, %243 : vector<64x128xf32>
    %246 = arith.addf %236, %245 : vector<64x128xf32>
    %cst_56 = arith.constant dense<0xFF800000> : vector<64xf32>
    %247 = vector.multi_reduction <maximumf>, %246, %cst_56 [1] : vector<64x128xf32> to vector<64xf32>
    %248 = vector.shape_cast %247 : vector<64xf32> to vector<64x1xf32>
    %249 = vector.broadcast %248 : vector<64x1xf32> to vector<64x128xf32>
    %250 = arith.subf %246, %249 : vector<64x128xf32>
    %251 = math.exp %250 : vector<64x128xf32>
    %252 = arith.mulf %251, %11 : vector<64x128xf32>
    %cst_57 = arith.constant dense<0.000000e+00> : vector<64xf32>
    %253 = vector.multi_reduction <add>, %252, %cst_57 [1] : vector<64x128xf32> to vector<64xf32>
    %254 = vector.shape_cast %253 : vector<64xf32> to vector<64x1xf32>
    %cst_58 = arith.constant 1.000000e-16 : f32
    %255 = vector.broadcast %cst_58 : f32 to vector<64x1xf32>
    %256 = arith.maximumf %254, %255 : vector<64x1xf32>
    %257 = tpu.reciprocal %256 : vector<64x1xf32> -> vector<64x1xf32>
    %258 = vector.broadcast %257 : vector<64x1xf32> to vector<64x128xf32>
    %259 = arith.mulf %252, %258 : vector<64x128xf32>
    %cst_59 = arith.constant dense<0.000000e+00> : vector<64x32xf32>
    %260 = tpu.matmul %259, %9, %cst_59 {dimension_numbers = #tpu.dot_dimension_numbers<[1], [0], [0], [1], [0, 0, 1, 1], [], []>} : vector<64x128xf32>, vector<128x32xf32>, vector<64x32xf32> -> vector<64x32xf32>
    %261 = vector.extract_strided_slice %260 {offsets = [0, 12], sizes = [64, 4], strides = [1, 1]} : vector<64x32xf32> to vector<64x4xf32>
    %262 = vector.extract_strided_slice %8 {offsets = [0, 4], sizes = [64, 1], strides = [1, 1]} : vector<64x8xf32> to vector<64x1xf32>
    %263 = vector.broadcast %262 : vector<64x1xf32> to vector<64x128xf32>
    %264 = arith.addf %15, %263 : vector<64x128xf32>
    %265 = vector.extract_strided_slice %17 {offsets = [4, 0], sizes = [1, 128], strides = [1, 1]} : vector<8x128xf32> to vector<1x128xf32>
    %266 = vector.broadcast %265 : vector<1x128xf32> to vector<64x128xf32>
    %267 = arith.addf %264, %266 : vector<64x128xf32>
    %268 = vector.extract_strided_slice %6 {offsets = [0, 16], sizes = [64, 1], strides = [1, 1]} : vector<64x32xf32> to vector<64x1xf32>
    %269 = vector.extract_strided_slice %16 {offsets = [16, 0], sizes = [1, 128], strides = [1, 1]} : vector<32x128xf32> to vector<1x128xf32>
    %270 = vector.broadcast %268 : vector<64x1xf32> to vector<64x128xf32>
    %271 = vector.broadcast %269 : vector<1x128xf32> to vector<64x128xf32>
    %272 = arith.addf %270, %271 : vector<64x128xf32>
    %c4 = arith.constant 4 : index
    %c0_60 = arith.constant 0 : index
    %273 = memref.load %arg8[%c4, %c0_60] : memref<8x4xf32, #tpu.memory_space<smem>>
    %274 = math.absf %272 : vector<64x128xf32>
    %275 = vector.broadcast %273 : f32 to vector<64x128xf32>
    %276 = arith.mulf %275, %274 : vector<64x128xf32>
    %277 = arith.addf %267, %276 : vector<64x128xf32>
    %278 = vector.extract_strided_slice %6 {offsets = [0, 17], sizes = [64, 1], strides = [1, 1]} : vector<64x32xf32> to vector<64x1xf32>
    %279 = vector.extract_strided_slice %16 {offsets = [17, 0], sizes = [1, 128], strides = [1, 1]} : vector<32x128xf32> to vector<1x128xf32>
    %280 = vector.broadcast %278 : vector<64x1xf32> to vector<64x128xf32>
    %281 = vector.broadcast %279 : vector<1x128xf32> to vector<64x128xf32>
    %282 = arith.addf %280, %281 : vector<64x128xf32>
    %c4_61 = arith.constant 4 : index
    %c1_62 = arith.constant 1 : index
    %283 = memref.load %arg8[%c4_61, %c1_62] : memref<8x4xf32, #tpu.memory_space<smem>>
    %284 = math.absf %282 : vector<64x128xf32>
    %285 = vector.broadcast %283 : f32 to vector<64x128xf32>
    %286 = arith.mulf %285, %284 : vector<64x128xf32>
    %287 = arith.addf %277, %286 : vector<64x128xf32>
    %288 = vector.extract_strided_slice %6 {offsets = [0, 18], sizes = [64, 1], strides = [1, 1]} : vector<64x32xf32> to vector<64x1xf32>
    %289 = vector.extract_strided_slice %16 {offsets = [18, 0], sizes = [1, 128], strides = [1, 1]} : vector<32x128xf32> to vector<1x128xf32>
    %290 = vector.broadcast %288 : vector<64x1xf32> to vector<64x128xf32>
    %291 = vector.broadcast %289 : vector<1x128xf32> to vector<64x128xf32>
    %292 = arith.addf %290, %291 : vector<64x128xf32>
    %c4_63 = arith.constant 4 : index
    %c2_64 = arith.constant 2 : index
    %293 = memref.load %arg8[%c4_63, %c2_64] : memref<8x4xf32, #tpu.memory_space<smem>>
    %294 = math.absf %292 : vector<64x128xf32>
    %295 = vector.broadcast %293 : f32 to vector<64x128xf32>
    %296 = arith.mulf %295, %294 : vector<64x128xf32>
    %297 = arith.addf %287, %296 : vector<64x128xf32>
    %298 = vector.extract_strided_slice %6 {offsets = [0, 19], sizes = [64, 1], strides = [1, 1]} : vector<64x32xf32> to vector<64x1xf32>
    %299 = vector.extract_strided_slice %16 {offsets = [19, 0], sizes = [1, 128], strides = [1, 1]} : vector<32x128xf32> to vector<1x128xf32>
    %300 = vector.broadcast %298 : vector<64x1xf32> to vector<64x128xf32>
    %301 = vector.broadcast %299 : vector<1x128xf32> to vector<64x128xf32>
    %302 = arith.addf %300, %301 : vector<64x128xf32>
    %c4_65 = arith.constant 4 : index
    %c3_66 = arith.constant 3 : index
    %303 = memref.load %arg8[%c4_65, %c3_66] : memref<8x4xf32, #tpu.memory_space<smem>>
    %304 = math.absf %302 : vector<64x128xf32>
    %305 = vector.broadcast %303 : f32 to vector<64x128xf32>
    %306 = arith.mulf %305, %304 : vector<64x128xf32>
    %307 = arith.addf %297, %306 : vector<64x128xf32>
    %cst_67 = arith.constant dense<0xFF800000> : vector<64xf32>
    %308 = vector.multi_reduction <maximumf>, %307, %cst_67 [1] : vector<64x128xf32> to vector<64xf32>
    %309 = vector.shape_cast %308 : vector<64xf32> to vector<64x1xf32>
    %310 = vector.broadcast %309 : vector<64x1xf32> to vector<64x128xf32>
    %311 = arith.subf %307, %310 : vector<64x128xf32>
    %312 = math.exp %311 : vector<64x128xf32>
    %313 = arith.mulf %312, %11 : vector<64x128xf32>
    %cst_68 = arith.constant dense<0.000000e+00> : vector<64xf32>
    %314 = vector.multi_reduction <add>, %313, %cst_68 [1] : vector<64x128xf32> to vector<64xf32>
    %315 = vector.shape_cast %314 : vector<64xf32> to vector<64x1xf32>
    %cst_69 = arith.constant 1.000000e-16 : f32
    %316 = vector.broadcast %cst_69 : f32 to vector<64x1xf32>
    %317 = arith.maximumf %315, %316 : vector<64x1xf32>
    %318 = tpu.reciprocal %317 : vector<64x1xf32> -> vector<64x1xf32>
    %319 = vector.broadcast %318 : vector<64x1xf32> to vector<64x128xf32>
    %320 = arith.mulf %313, %319 : vector<64x128xf32>
    %cst_70 = arith.constant dense<0.000000e+00> : vector<64x32xf32>
    %321 = tpu.matmul %320, %9, %cst_70 {dimension_numbers = #tpu.dot_dimension_numbers<[1], [0], [0], [1], [0, 0, 1, 1], [], []>} : vector<64x128xf32>, vector<128x32xf32>, vector<64x32xf32> -> vector<64x32xf32>
    %322 = vector.extract_strided_slice %321 {offsets = [0, 16], sizes = [64, 4], strides = [1, 1]} : vector<64x32xf32> to vector<64x4xf32>
    %323 = vector.extract_strided_slice %8 {offsets = [0, 5], sizes = [64, 1], strides = [1, 1]} : vector<64x8xf32> to vector<64x1xf32>
    %324 = vector.broadcast %323 : vector<64x1xf32> to vector<64x128xf32>
    %325 = arith.addf %15, %324 : vector<64x128xf32>
    %326 = vector.extract_strided_slice %17 {offsets = [5, 0], sizes = [1, 128], strides = [1, 1]} : vector<8x128xf32> to vector<1x128xf32>
    %327 = vector.broadcast %326 : vector<1x128xf32> to vector<64x128xf32>
    %328 = arith.addf %325, %327 : vector<64x128xf32>
    %329 = vector.extract_strided_slice %6 {offsets = [0, 20], sizes = [64, 1], strides = [1, 1]} : vector<64x32xf32> to vector<64x1xf32>
    %330 = vector.extract_strided_slice %16 {offsets = [20, 0], sizes = [1, 128], strides = [1, 1]} : vector<32x128xf32> to vector<1x128xf32>
    %331 = vector.broadcast %329 : vector<64x1xf32> to vector<64x128xf32>
    %332 = vector.broadcast %330 : vector<1x128xf32> to vector<64x128xf32>
    %333 = arith.addf %331, %332 : vector<64x128xf32>
    %c5 = arith.constant 5 : index
    %c0_71 = arith.constant 0 : index
    %334 = memref.load %arg8[%c5, %c0_71] : memref<8x4xf32, #tpu.memory_space<smem>>
    %335 = math.absf %333 : vector<64x128xf32>
    %336 = vector.broadcast %334 : f32 to vector<64x128xf32>
    %337 = arith.mulf %336, %335 : vector<64x128xf32>
    %338 = arith.addf %328, %337 : vector<64x128xf32>
    %339 = vector.extract_strided_slice %6 {offsets = [0, 21], sizes = [64, 1], strides = [1, 1]} : vector<64x32xf32> to vector<64x1xf32>
    %340 = vector.extract_strided_slice %16 {offsets = [21, 0], sizes = [1, 128], strides = [1, 1]} : vector<32x128xf32> to vector<1x128xf32>
    %341 = vector.broadcast %339 : vector<64x1xf32> to vector<64x128xf32>
    %342 = vector.broadcast %340 : vector<1x128xf32> to vector<64x128xf32>
    %343 = arith.addf %341, %342 : vector<64x128xf32>
    %c5_72 = arith.constant 5 : index
    %c1_73 = arith.constant 1 : index
    %344 = memref.load %arg8[%c5_72, %c1_73] : memref<8x4xf32, #tpu.memory_space<smem>>
    %345 = math.absf %343 : vector<64x128xf32>
    %346 = vector.broadcast %344 : f32 to vector<64x128xf32>
    %347 = arith.mulf %346, %345 : vector<64x128xf32>
    %348 = arith.addf %338, %347 : vector<64x128xf32>
    %349 = vector.extract_strided_slice %6 {offsets = [0, 22], sizes = [64, 1], strides = [1, 1]} : vector<64x32xf32> to vector<64x1xf32>
    %350 = vector.extract_strided_slice %16 {offsets = [22, 0], sizes = [1, 128], strides = [1, 1]} : vector<32x128xf32> to vector<1x128xf32>
    %351 = vector.broadcast %349 : vector<64x1xf32> to vector<64x128xf32>
    %352 = vector.broadcast %350 : vector<1x128xf32> to vector<64x128xf32>
    %353 = arith.addf %351, %352 : vector<64x128xf32>
    %c5_74 = arith.constant 5 : index
    %c2_75 = arith.constant 2 : index
    %354 = memref.load %arg8[%c5_74, %c2_75] : memref<8x4xf32, #tpu.memory_space<smem>>
    %355 = math.absf %353 : vector<64x128xf32>
    %356 = vector.broadcast %354 : f32 to vector<64x128xf32>
    %357 = arith.mulf %356, %355 : vector<64x128xf32>
    %358 = arith.addf %348, %357 : vector<64x128xf32>
    %359 = vector.extract_strided_slice %6 {offsets = [0, 23], sizes = [64, 1], strides = [1, 1]} : vector<64x32xf32> to vector<64x1xf32>
    %360 = vector.extract_strided_slice %16 {offsets = [23, 0], sizes = [1, 128], strides = [1, 1]} : vector<32x128xf32> to vector<1x128xf32>
    %361 = vector.broadcast %359 : vector<64x1xf32> to vector<64x128xf32>
    %362 = vector.broadcast %360 : vector<1x128xf32> to vector<64x128xf32>
    %363 = arith.addf %361, %362 : vector<64x128xf32>
    %c5_76 = arith.constant 5 : index
    %c3_77 = arith.constant 3 : index
    %364 = memref.load %arg8[%c5_76, %c3_77] : memref<8x4xf32, #tpu.memory_space<smem>>
    %365 = math.absf %363 : vector<64x128xf32>
    %366 = vector.broadcast %364 : f32 to vector<64x128xf32>
    %367 = arith.mulf %366, %365 : vector<64x128xf32>
    %368 = arith.addf %358, %367 : vector<64x128xf32>
    %cst_78 = arith.constant dense<0xFF800000> : vector<64xf32>
    %369 = vector.multi_reduction <maximumf>, %368, %cst_78 [1] : vector<64x128xf32> to vector<64xf32>
    %370 = vector.shape_cast %369 : vector<64xf32> to vector<64x1xf32>
    %371 = vector.broadcast %370 : vector<64x1xf32> to vector<64x128xf32>
    %372 = arith.subf %368, %371 : vector<64x128xf32>
    %373 = math.exp %372 : vector<64x128xf32>
    %374 = arith.mulf %373, %11 : vector<64x128xf32>
    %cst_79 = arith.constant dense<0.000000e+00> : vector<64xf32>
    %375 = vector.multi_reduction <add>, %374, %cst_79 [1] : vector<64x128xf32> to vector<64xf32>
    %376 = vector.shape_cast %375 : vector<64xf32> to vector<64x1xf32>
    %cst_80 = arith.constant 1.000000e-16 : f32
    %377 = vector.broadcast %cst_80 : f32 to vector<64x1xf32>
    %378 = arith.maximumf %376, %377 : vector<64x1xf32>
    %379 = tpu.reciprocal %378 : vector<64x1xf32> -> vector<64x1xf32>
    %380 = vector.broadcast %379 : vector<64x1xf32> to vector<64x128xf32>
    %381 = arith.mulf %374, %380 : vector<64x128xf32>
    %cst_81 = arith.constant dense<0.000000e+00> : vector<64x32xf32>
    %382 = tpu.matmul %381, %9, %cst_81 {dimension_numbers = #tpu.dot_dimension_numbers<[1], [0], [0], [1], [0, 0, 1, 1], [], []>} : vector<64x128xf32>, vector<128x32xf32>, vector<64x32xf32> -> vector<64x32xf32>
    %383 = vector.extract_strided_slice %382 {offsets = [0, 20], sizes = [64, 4], strides = [1, 1]} : vector<64x32xf32> to vector<64x4xf32>
    %384 = vector.extract_strided_slice %8 {offsets = [0, 6], sizes = [64, 1], strides = [1, 1]} : vector<64x8xf32> to vector<64x1xf32>
    %385 = vector.broadcast %384 : vector<64x1xf32> to vector<64x128xf32>
    %386 = arith.addf %15, %385 : vector<64x128xf32>
    %387 = vector.extract_strided_slice %17 {offsets = [6, 0], sizes = [1, 128], strides = [1, 1]} : vector<8x128xf32> to vector<1x128xf32>
    %388 = vector.broadcast %387 : vector<1x128xf32> to vector<64x128xf32>
    %389 = arith.addf %386, %388 : vector<64x128xf32>
    %390 = vector.extract_strided_slice %6 {offsets = [0, 24], sizes = [64, 1], strides = [1, 1]} : vector<64x32xf32> to vector<64x1xf32>
    %391 = vector.extract_strided_slice %16 {offsets = [24, 0], sizes = [1, 128], strides = [1, 1]} : vector<32x128xf32> to vector<1x128xf32>
    %392 = vector.broadcast %390 : vector<64x1xf32> to vector<64x128xf32>
    %393 = vector.broadcast %391 : vector<1x128xf32> to vector<64x128xf32>
    %394 = arith.addf %392, %393 : vector<64x128xf32>
    %c6 = arith.constant 6 : index
    %c0_82 = arith.constant 0 : index
    %395 = memref.load %arg8[%c6, %c0_82] : memref<8x4xf32, #tpu.memory_space<smem>>
    %396 = math.absf %394 : vector<64x128xf32>
    %397 = vector.broadcast %395 : f32 to vector<64x128xf32>
    %398 = arith.mulf %397, %396 : vector<64x128xf32>
    %399 = arith.addf %389, %398 : vector<64x128xf32>
    %400 = vector.extract_strided_slice %6 {offsets = [0, 25], sizes = [64, 1], strides = [1, 1]} : vector<64x32xf32> to vector<64x1xf32>
    %401 = vector.extract_strided_slice %16 {offsets = [25, 0], sizes = [1, 128], strides = [1, 1]} : vector<32x128xf32> to vector<1x128xf32>
    %402 = vector.broadcast %400 : vector<64x1xf32> to vector<64x128xf32>
    %403 = vector.broadcast %401 : vector<1x128xf32> to vector<64x128xf32>
    %404 = arith.addf %402, %403 : vector<64x128xf32>
    %c6_83 = arith.constant 6 : index
    %c1_84 = arith.constant 1 : index
    %405 = memref.load %arg8[%c6_83, %c1_84] : memref<8x4xf32, #tpu.memory_space<smem>>
    %406 = math.absf %404 : vector<64x128xf32>
    %407 = vector.broadcast %405 : f32 to vector<64x128xf32>
    %408 = arith.mulf %407, %406 : vector<64x128xf32>
    %409 = arith.addf %399, %408 : vector<64x128xf32>
    %410 = vector.extract_strided_slice %6 {offsets = [0, 26], sizes = [64, 1], strides = [1, 1]} : vector<64x32xf32> to vector<64x1xf32>
    %411 = vector.extract_strided_slice %16 {offsets = [26, 0], sizes = [1, 128], strides = [1, 1]} : vector<32x128xf32> to vector<1x128xf32>
    %412 = vector.broadcast %410 : vector<64x1xf32> to vector<64x128xf32>
    %413 = vector.broadcast %411 : vector<1x128xf32> to vector<64x128xf32>
    %414 = arith.addf %412, %413 : vector<64x128xf32>
    %c6_85 = arith.constant 6 : index
    %c2_86 = arith.constant 2 : index
    %415 = memref.load %arg8[%c6_85, %c2_86] : memref<8x4xf32, #tpu.memory_space<smem>>
    %416 = math.absf %414 : vector<64x128xf32>
    %417 = vector.broadcast %415 : f32 to vector<64x128xf32>
    %418 = arith.mulf %417, %416 : vector<64x128xf32>
    %419 = arith.addf %409, %418 : vector<64x128xf32>
    %420 = vector.extract_strided_slice %6 {offsets = [0, 27], sizes = [64, 1], strides = [1, 1]} : vector<64x32xf32> to vector<64x1xf32>
    %421 = vector.extract_strided_slice %16 {offsets = [27, 0], sizes = [1, 128], strides = [1, 1]} : vector<32x128xf32> to vector<1x128xf32>
    %422 = vector.broadcast %420 : vector<64x1xf32> to vector<64x128xf32>
    %423 = vector.broadcast %421 : vector<1x128xf32> to vector<64x128xf32>
    %424 = arith.addf %422, %423 : vector<64x128xf32>
    %c6_87 = arith.constant 6 : index
    %c3_88 = arith.constant 3 : index
    %425 = memref.load %arg8[%c6_87, %c3_88] : memref<8x4xf32, #tpu.memory_space<smem>>
    %426 = math.absf %424 : vector<64x128xf32>
    %427 = vector.broadcast %425 : f32 to vector<64x128xf32>
    %428 = arith.mulf %427, %426 : vector<64x128xf32>
    %429 = arith.addf %419, %428 : vector<64x128xf32>
    %cst_89 = arith.constant dense<0xFF800000> : vector<64xf32>
    %430 = vector.multi_reduction <maximumf>, %429, %cst_89 [1] : vector<64x128xf32> to vector<64xf32>
    %431 = vector.shape_cast %430 : vector<64xf32> to vector<64x1xf32>
    %432 = vector.broadcast %431 : vector<64x1xf32> to vector<64x128xf32>
    %433 = arith.subf %429, %432 : vector<64x128xf32>
    %434 = math.exp %433 : vector<64x128xf32>
    %435 = arith.mulf %434, %11 : vector<64x128xf32>
    %cst_90 = arith.constant dense<0.000000e+00> : vector<64xf32>
    %436 = vector.multi_reduction <add>, %435, %cst_90 [1] : vector<64x128xf32> to vector<64xf32>
    %437 = vector.shape_cast %436 : vector<64xf32> to vector<64x1xf32>
    %cst_91 = arith.constant 1.000000e-16 : f32
    %438 = vector.broadcast %cst_91 : f32 to vector<64x1xf32>
    %439 = arith.maximumf %437, %438 : vector<64x1xf32>
    %440 = tpu.reciprocal %439 : vector<64x1xf32> -> vector<64x1xf32>
    %441 = vector.broadcast %440 : vector<64x1xf32> to vector<64x128xf32>
    %442 = arith.mulf %435, %441 : vector<64x128xf32>
    %cst_92 = arith.constant dense<0.000000e+00> : vector<64x32xf32>
    %443 = tpu.matmul %442, %9, %cst_92 {dimension_numbers = #tpu.dot_dimension_numbers<[1], [0], [0], [1], [0, 0, 1, 1], [], []>} : vector<64x128xf32>, vector<128x32xf32>, vector<64x32xf32> -> vector<64x32xf32>
    %444 = vector.extract_strided_slice %443 {offsets = [0, 24], sizes = [64, 4], strides = [1, 1]} : vector<64x32xf32> to vector<64x4xf32>
    %445 = vector.extract_strided_slice %8 {offsets = [0, 7], sizes = [64, 1], strides = [1, 1]} : vector<64x8xf32> to vector<64x1xf32>
    %446 = vector.broadcast %445 : vector<64x1xf32> to vector<64x128xf32>
    %447 = arith.addf %15, %446 : vector<64x128xf32>
    %448 = vector.extract_strided_slice %17 {offsets = [7, 0], sizes = [1, 128], strides = [1, 1]} : vector<8x128xf32> to vector<1x128xf32>
    %449 = vector.broadcast %448 : vector<1x128xf32> to vector<64x128xf32>
    %450 = arith.addf %447, %449 : vector<64x128xf32>
    %451 = vector.extract_strided_slice %6 {offsets = [0, 28], sizes = [64, 1], strides = [1, 1]} : vector<64x32xf32> to vector<64x1xf32>
    %452 = vector.extract_strided_slice %16 {offsets = [28, 0], sizes = [1, 128], strides = [1, 1]} : vector<32x128xf32> to vector<1x128xf32>
    %453 = vector.broadcast %451 : vector<64x1xf32> to vector<64x128xf32>
    %454 = vector.broadcast %452 : vector<1x128xf32> to vector<64x128xf32>
    %455 = arith.addf %453, %454 : vector<64x128xf32>
    %c7 = arith.constant 7 : index
    %c0_93 = arith.constant 0 : index
    %456 = memref.load %arg8[%c7, %c0_93] : memref<8x4xf32, #tpu.memory_space<smem>>
    %457 = math.absf %455 : vector<64x128xf32>
    %458 = vector.broadcast %456 : f32 to vector<64x128xf32>
    %459 = arith.mulf %458, %457 : vector<64x128xf32>
    %460 = arith.addf %450, %459 : vector<64x128xf32>
    %461 = vector.extract_strided_slice %6 {offsets = [0, 29], sizes = [64, 1], strides = [1, 1]} : vector<64x32xf32> to vector<64x1xf32>
    %462 = vector.extract_strided_slice %16 {offsets = [29, 0], sizes = [1, 128], strides = [1, 1]} : vector<32x128xf32> to vector<1x128xf32>
    %463 = vector.broadcast %461 : vector<64x1xf32> to vector<64x128xf32>
    %464 = vector.broadcast %462 : vector<1x128xf32> to vector<64x128xf32>
    %465 = arith.addf %463, %464 : vector<64x128xf32>
    %c7_94 = arith.constant 7 : index
    %c1_95 = arith.constant 1 : index
    %466 = memref.load %arg8[%c7_94, %c1_95] : memref<8x4xf32, #tpu.memory_space<smem>>
    %467 = math.absf %465 : vector<64x128xf32>
    %468 = vector.broadcast %466 : f32 to vector<64x128xf32>
    %469 = arith.mulf %468, %467 : vector<64x128xf32>
    %470 = arith.addf %460, %469 : vector<64x128xf32>
    %471 = vector.extract_strided_slice %6 {offsets = [0, 30], sizes = [64, 1], strides = [1, 1]} : vector<64x32xf32> to vector<64x1xf32>
    %472 = vector.extract_strided_slice %16 {offsets = [30, 0], sizes = [1, 128], strides = [1, 1]} : vector<32x128xf32> to vector<1x128xf32>
    %473 = vector.broadcast %471 : vector<64x1xf32> to vector<64x128xf32>
    %474 = vector.broadcast %472 : vector<1x128xf32> to vector<64x128xf32>
    %475 = arith.addf %473, %474 : vector<64x128xf32>
    %c7_96 = arith.constant 7 : index
    %c2_97 = arith.constant 2 : index
    %476 = memref.load %arg8[%c7_96, %c2_97] : memref<8x4xf32, #tpu.memory_space<smem>>
    %477 = math.absf %475 : vector<64x128xf32>
    %478 = vector.broadcast %476 : f32 to vector<64x128xf32>
    %479 = arith.mulf %478, %477 : vector<64x128xf32>
    %480 = arith.addf %470, %479 : vector<64x128xf32>
    %481 = vector.extract_strided_slice %6 {offsets = [0, 31], sizes = [64, 1], strides = [1, 1]} : vector<64x32xf32> to vector<64x1xf32>
    %482 = vector.extract_strided_slice %16 {offsets = [31, 0], sizes = [1, 128], strides = [1, 1]} : vector<32x128xf32> to vector<1x128xf32>
    %483 = vector.broadcast %481 : vector<64x1xf32> to vector<64x128xf32>
    %484 = vector.broadcast %482 : vector<1x128xf32> to vector<64x128xf32>
    %485 = arith.addf %483, %484 : vector<64x128xf32>
    %c7_98 = arith.constant 7 : index
    %c3_99 = arith.constant 3 : index
    %486 = memref.load %arg8[%c7_98, %c3_99] : memref<8x4xf32, #tpu.memory_space<smem>>
    %487 = math.absf %485 : vector<64x128xf32>
    %488 = vector.broadcast %486 : f32 to vector<64x128xf32>
    %489 = arith.mulf %488, %487 : vector<64x128xf32>
    %490 = arith.addf %480, %489 : vector<64x128xf32>
    %cst_100 = arith.constant dense<0xFF800000> : vector<64xf32>
    %491 = vector.multi_reduction <maximumf>, %490, %cst_100 [1] : vector<64x128xf32> to vector<64xf32>
    %492 = vector.shape_cast %491 : vector<64xf32> to vector<64x1xf32>
    %493 = vector.broadcast %492 : vector<64x1xf32> to vector<64x128xf32>
    %494 = arith.subf %490, %493 : vector<64x128xf32>
    %495 = math.exp %494 : vector<64x128xf32>
    %496 = arith.mulf %495, %11 : vector<64x128xf32>
    %cst_101 = arith.constant dense<0.000000e+00> : vector<64xf32>
    %497 = vector.multi_reduction <add>, %496, %cst_101 [1] : vector<64x128xf32> to vector<64xf32>
    %498 = vector.shape_cast %497 : vector<64xf32> to vector<64x1xf32>
    %cst_102 = arith.constant 1.000000e-16 : f32
    %499 = vector.broadcast %cst_102 : f32 to vector<64x1xf32>
    %500 = arith.maximumf %498, %499 : vector<64x1xf32>
    %501 = tpu.reciprocal %500 : vector<64x1xf32> -> vector<64x1xf32>
    %502 = vector.broadcast %501 : vector<64x1xf32> to vector<64x128xf32>
    %503 = arith.mulf %496, %502 : vector<64x128xf32>
    %cst_103 = arith.constant dense<0.000000e+00> : vector<64x32xf32>
    %504 = tpu.matmul %503, %9, %cst_103 {dimension_numbers = #tpu.dot_dimension_numbers<[1], [0], [0], [1], [0, 0, 1, 1], [], []>} : vector<64x128xf32>, vector<128x32xf32>, vector<64x32xf32> -> vector<64x32xf32>
    %505 = vector.extract_strided_slice %504 {offsets = [0, 28], sizes = [64, 4], strides = [1, 1]} : vector<64x32xf32> to vector<64x4xf32>
    %506 = tpu.concatenate %78, %139, %200, %261, %322, %383, %444, %505 in 1 : vector<64x4xf32>, vector<64x4xf32>, vector<64x4xf32>, vector<64x4xf32>, vector<64x4xf32>, vector<64x4xf32>, vector<64x4xf32>, vector<64x4xf32> -> vector<64x32xf32>
    %507 = arith.addf %506, %7 : vector<64x32xf32>
    %cst_104 = arith.constant 0.000000e+00 : f32
    %508 = vector.broadcast %cst_104 : f32 to vector<64x32xf32>
    %509 = arith.cmpf ogt, %507, %508 : vector<64x32xf32>
    %cst_105 = arith.constant 0.000000e+00 : f32
    %510 = vector.broadcast %cst_105 : f32 to vector<64x32xf32>
    %511 = arith.minimumf %507, %510 : vector<64x32xf32>
    %512 = math.exp %511 : vector<64x32xf32>
    %cst_106 = arith.constant 1.000000e+00 : f32
    %513 = vector.broadcast %cst_106 : f32 to vector<64x32xf32>
    %514 = arith.subf %512, %513 : vector<64x32xf32>
    %515 = arith.select %509, %507, %514 : vector<64x32xi1>, vector<64x32xf32>
    %c0_107 = arith.constant 0 : index
    %c0_108 = arith.constant 0 : index
    %516 = vector.load %arg9[%c0_107, %c0_108] : memref<64x32xf32, #tpu.memory_space<vmem>>, vector<64x32xf32>
    tpu.vector_store %arg9[%c0_107, %c0_108], %515 {strides = array<i32>} : memref<64x32xf32, #tpu.memory_space<vmem>>, vector<64x32xf32>,
    return
  }
  func.func @transform_0(%arg0: i32) -> (i32, i32) {
    %c0_i32 = arith.constant 0 : i32
    %c0_i32_0 = arith.constant 0 : i32
    return %arg0, %c0_i32 : i32, i32
  }
  func.func @transform_1(%arg0: i32) -> (i32, i32) {
    %c0_i32 = arith.constant 0 : i32
    %c0_i32_0 = arith.constant 0 : i32
    return %arg0, %c0_i32 : i32, i32
  }
  func.func @transform_2(%arg0: i32) -> (i32, i32) {
    %c0_i32 = arith.constant 0 : i32
    %c0_i32_0 = arith.constant 0 : i32
    %c0_i32_1 = arith.constant 0 : i32
    return %c0_i32, %c0_i32_0 : i32, i32
  }
  func.func @transform_3(%arg0: i32) -> (i32, i32) {
    %c0_i32 = arith.constant 0 : i32
    %c0_i32_0 = arith.constant 0 : i32
    %c0_i32_1 = arith.constant 0 : i32
    return %c0_i32, %c0_i32_0 : i32, i32
  }
  func.func @transform_4(%arg0: i32) -> (i32, i32) {
    %c0_i32 = arith.constant 0 : i32
    %c0_i32_0 = arith.constant 0 : i32
    %c0_i32_1 = arith.constant 0 : i32
    return %c0_i32, %c0_i32_0 : i32, i32
  }
  func.func @transform_5(%arg0: i32) -> (i32, i32) {
    %c0_i32 = arith.constant 0 : i32
    %c0_i32_0 = arith.constant 0 : i32
    %c0_i32_1 = arith.constant 0 : i32
    return %c0_i32, %c0_i32_0 : i32, i32
  }
  func.func @transform_6(%arg0: i32) -> (i32, i32) {
    %c0_i32 = arith.constant 0 : i32
    %c0_i32_0 = arith.constant 0 : i32
    %c0_i32_1 = arith.constant 0 : i32
    return %c0_i32, %c0_i32_0 : i32, i32
  }
  func.func @transform_7(%arg0: i32) -> (i32, i32) {
    %c0_i32 = arith.constant 0 : i32
    %c0_i32_0 = arith.constant 0 : i32
    %c0_i32_1 = arith.constant 0 : i32
    return %c0_i32, %c0_i32_0 : i32, i32
  }
  func.func @transform_8(%arg0: i32) -> (i32, i32) {
    %c0_i32 = arith.constant 0 : i32
    %c0_i32_0 = arith.constant 0 : i32
    return %arg0, %c0_i32 : i32, i32
  }
}

</mosaic_0001>

<llo_original>
// kernel: tpu_custom_call.1
$region0: #{tpu_custom_call.1}
  #allocation0 [shape = 'u32[]', space=smem, size = 0x4, offset = 0x4, fixed_abs, tag = 'smem constant byte address 0x4 - core index']
  #allocation1 [shape = 'u32[72,128]{1,0:T(1,128)}', space=vmem, size = 0x9000, scoped, tag = 'internal scratch']
  %s0 = inlined_call_operand.vmem [shape: f32[128,16], index: 0, kind: input, shape index: {}]
  %s1 = inlined_call_operand.vmem [shape: s8[128,128], index: 1, kind: input, shape index: {}]
  %s2 = inlined_call_operand.vmem [shape: f32[128,32], index: 2, kind: input, shape index: {}]
  %s3 = inlined_call_operand.vmem [shape: f32[32,128], index: 3, kind: input, shape index: {}]
  %s4 = inlined_call_operand.vmem [shape: f32[8,128], index: 4, kind: input, shape index: {}]
  %s5 = inlined_call_operand.vmem [shape: f32[16,72], index: 5, kind: input, shape index: {}]
  %s6 = inlined_call_operand.vmem [shape: f32[1,72], index: 6, kind: input, shape index: {}]
  %s7 = inlined_call_operand.vmem [shape: f32[8,4], index: 7, kind: input, shape index: {}]
  %s8 = inlined_call_operand.vmem [shape: f32[128,32], index: 8, kind: output, shape index: {}]
  %s9 = sld [smem:[#allocation0]]
  $region69: #{tpu_custom_call.1} parent=0
    _
  %s11 = ssub.s32 1, %s9
  %s12 = scalar_select 0, %s11, %s9
  $region1: #{tpu_custom_call.1} parent=0
    #allocation2 [shape = 'u8[4096]{0}', space=smem, size = 0x1000, scoped, tag = 'input window, operand 7, single buffered']
    #allocation3 [shape = 's32[2]{0}', space=sflag, size = 0x8, scoped, tag = 'scoped memory for tpu_custom_call.1']
    %13 = vsyncpa [#allocation3], 0
    loop: start=0, step=1, limit=4
    $region2: #{tpu_custom_call.1} parent=1 // loop_pre_header
      _
    $region3: #{tpu_custom_call.1} parent=1 // loop_header
      %s15 = sphi 0, %s19
      %p16 = scmp.ge.s32.totalorder %s15, 4
      %s25 = sphi 0, %s27
      %s28 = sphi 0, %s25
      %s29 = sphi 0, %s28
      %s45 = sphi 0, %s29
      %s51 = sphi 0, %s53
      %s54 = sphi 0, %s51
      %s55 = sphi 0, %s54
      %s71 = sphi 0, %s55
      %s75 = sphi 0, %s75
      %s77 = sphi 0, %s75
      %s78 = sphi 0, %s77
      %s92 = sphi 0, %s78
      %s96 = sphi 0, %s96
      %s98 = sphi 0, %s96
      %s99 = sphi 0, %s98
      %s113 = sphi 0, %s99
      %s117 = sphi 0, %s117
      %s119 = sphi 0, %s117
      %s120 = sphi 0, %s119
      %s134 = sphi 0, %s120
      %s138 = sphi 0, %s138
      %s140 = sphi 0, %s138
      %s141 = sphi 0, %s140
      %s155 = sphi 0, %s141
      %s159 = sphi 0, %s159
      %s161 = sphi 0, %s159
      %s162 = sphi 0, %s161
      %s176 = sphi 0, %s162
      %s180 = sphi 0, %s180
      %s182 = sphi 0, %s180
      %s183 = sphi 0, %s182
      %s197 = sphi 0, %s183
      %s203 = sphi 0, %s205
      %s206 = sphi 0, %s203
      %s207 = sphi 0, %s206
      %s223 = sphi 0, %s207
    $region4: #{tpu_custom_call.1} parent=1 // loop_header_branch
      %18 = sbr.rel (%p16) target = $region8
    $region5: #{tpu_custom_call.1} parent=1 // loop_body
      %s20 = ssub.s32 %s15, 1
      %s21 = ssub.s32 %s15, 2
      %s22 = sadd.s32 %s15, 1
      %s23 = ssub.s32 %s15, %s22
      %p24 = scmp.eq.s32.totalorder %s23, 0
      %s26 = sadd.s32 %s25, 1
      %s27 = scalar_select %p24, %s25, %s26
      %p30 = pneg %p24
      %p31 = scmp.eq.s32.totalorder %s15, 1
      %p32 = por %p30, %p31
      %p33 = scmp.ne.s32.totalorder %s25, %s28
      %p34 = scmp.eq.s32.totalorder %s15, 0
      %p35 = por %p33, %p34
      %p36 = scmp.ne.s32.totalorder %s25, %s28
      %p37 = scmp.eq.s32.totalorder %s20, 1
      %p38 = por %p36, %p37
      %p39 = scmp.ne.s32.totalorder %s28, %s29
      %p40 = scmp.eq.s32.totalorder %s20, 0
      %p41 = por %p39, %p40
      %p42 = scmp.ne.s32.totalorder %s28, %s29
      %p43 = scmp.eq.s32.totalorder %s21, 1
      %p44 = por %p42, %p43
      %p46 = scmp.ne.s32.totalorder %s29, %s45
      %p47 = scmp.eq.s32.totalorder %s21, 0
      %p48 = por %p46, %p47
      %s49 = ssub.s32 %s15, %s22
      %p50 = scmp.eq.s32.totalorder %s49, 0
      %s52 = sadd.s32 %s51, 1
      %s53 = scalar_select %p50, %s51, %s52
      %p56 = pneg %p50
      %p57 = scmp.eq.s32.totalorder %s15, 1
      %p58 = por %p56, %p57
      %p59 = scmp.ne.s32.totalorder %s51, %s54
      %p60 = scmp.eq.s32.totalorder %s15, 0
      %p61 = por %p59, %p60
      %p62 = scmp.ne.s32.totalorder %s51, %s54
      %p63 = scmp.eq.s32.totalorder %s20, 1
      %p64 = por %p62, %p63
      %p65 = scmp.ne.s32.totalorder %s54, %s55
      %p66 = scmp.eq.s32.totalorder %s20, 0
      %p67 = por %p65, %p66
      %p68 = scmp.ne.s32.totalorder %s54, %s55
      %p69 = scmp.eq.s32.totalorder %s21, 1
      %p70 = por %p68, %p69
      %p72 = scmp.ne.s32.totalorder %s55, %s71
      %p73 = scmp.eq.s32.totalorder %s21, 0
      %p74 = por %p72, %p73
      %s76 = sadd.s32 %s75, 1
      %p79 = scmp.eq.s32.totalorder %s15, 1
      %p80 = scmp.ne.s32.totalorder %s75, %s77
      %p81 = scmp.eq.s32.totalorder %s15, 0
      %p82 = por %p80, %p81
      %p83 = scmp.ne.s32.totalorder %s75, %s77
      %p84 = scmp.eq.s32.totalorder %s20, 1
      %p85 = por %p83, %p84
      %p86 = scmp.ne.s32.totalorder %s77, %s78
      %p87 = scmp.eq.s32.totalorder %s20, 0
      %p88 = por %p86, %p87
      %p89 = scmp.ne.s32.totalorder %s77, %s78
      %p90 = scmp.eq.s32.totalorder %s21, 1
      %p91 = por %p89, %p90
      %p93 = scmp.ne.s32.totalorder %s78, %s92
      %p94 = scmp.eq.s32.totalorder %s21, 0
      %p95 = por %p93, %p94
      %s97 = sadd.s32 %s96, 1
      %p100 = scmp.eq.s32.totalorder %s15, 1
      %p101 = scmp.ne.s32.totalorder %s96, %s98
      %p102 = scmp.eq.s32.totalorder %s15, 0
      %p103 = por %p101, %p102
      %p104 = scmp.ne.s32.totalorder %s96, %s98
      %p105 = scmp.eq.s32.totalorder %s20, 1
      %p106 = por %p104, %p105
      %p107 = scmp.ne.s32.totalorder %s98, %s99
      %p108 = scmp.eq.s32.totalorder %s20, 0
      %p109 = por %p107, %p108
      %p110 = scmp.ne.s32.totalorder %s98, %s99
      %p111 = scmp.eq.s32.totalorder %s21, 1
      %p112 = por %p110, %p111
      %p114 = scmp.ne.s32.totalorder %s99, %s113
      %p115 = scmp.eq.s32.totalorder %s21, 0
      %p116 = por %p114, %p115
      %s118 = sadd.s32 %s117, 1
      %p121 = scmp.eq.s32.totalorder %s15, 1
      %p122 = scmp.ne.s32.totalorder %s117, %s119
      %p123 = scmp.eq.s32.totalorder %s15, 0
      %p124 = por %p122, %p123
      %p125 = scmp.ne.s32.totalorder %s117, %s119
      %p126 = scmp.eq.s32.totalorder %s20, 1
      %p127 = por %p125, %p126
      %p128 = scmp.ne.s32.totalorder %s119, %s120
      %p129 = scmp.eq.s32.totalorder %s20, 0
      %p130 = por %p128, %p129
      %p131 = scmp.ne.s32.totalorder %s119, %s120
      %p132 = scmp.eq.s32.totalorder %s21, 1
      %p133 = por %p131, %p132
      %p135 = scmp.ne.s32.totalorder %s120, %s134
      %p136 = scmp.eq.s32.totalorder %s21, 0
      %p137 = por %p135, %p136
      %s139 = sadd.s32 %s138, 1
      %p142 = scmp.eq.s32.totalorder %s15, 1
      %p143 = scmp.ne.s32.totalorder %s138, %s140
      %p144 = scmp.eq.s32.totalorder %s15, 0
      %p145 = por %p143, %p144
      %p146 = scmp.ne.s32.totalorder %s138, %s140
      %p147 = scmp.eq.s32.totalorder %s20, 1
      %p148 = por %p146, %p147
      %p149 = scmp.ne.s32.totalorder %s140, %s141
      %p150 = scmp.eq.s32.totalorder %s20, 0
      %p151 = por %p149, %p150
      %p152 = scmp.ne.s32.totalorder %s140, %s141
      %p153 = scmp.eq.s32.totalorder %s21, 1
      %p154 = por %p152, %p153
      %p156 = scmp.ne.s32.totalorder %s141, %s155
      %p157 = scmp.eq.s32.totalorder %s21, 0
      %p158 = por %p156, %p157
      %s160 = sadd.s32 %s159, 1
      %p163 = scmp.eq.s32.totalorder %s15, 1
      %p164 = scmp.ne.s32.totalorder %s159, %s161
      %p165 = scmp.eq.s32.totalorder %s15, 0
      %p166 = por %p164, %p165
      %p167 = scmp.ne.s32.totalorder %s159, %s161
      %p168 = scmp.eq.s32.totalorder %s20, 1
      %p169 = por %p167, %p168
      %p170 = scmp.ne.s32.totalorder %s161, %s162
      %p171 = scmp.eq.s32.totalorder %s20, 0
      %p172 = por %p170, %p171
      %p173 = scmp.ne.s32.totalorder %s161, %s162
      %p174 = scmp.eq.s32.totalorder %s21, 1
      %p175 = por %p173, %p174
      %p177 = scmp.ne.s32.totalorder %s162, %s176
      %p178 = scmp.eq.s32.totalorder %s21, 0
      %p179 = por %p177, %p178
      %s181 = sadd.s32 %s180, 1
      %p184 = scmp.eq.s32.totalorder %s15, 1
      %p185 = scmp.ne.s32.totalorder %s180, %s182
      %p186 = scmp.eq.s32.totalorder %s15, 0
      %p187 = por %p185, %p186
      %p188 = scmp.ne.s32.totalorder %s180, %s182
      %p189 = scmp.eq.s32.totalorder %s20, 1
      %p190 = por %p188, %p189
      %p191 = scmp.ne.s32.totalorder %s182, %s183
      %p192 = scmp.eq.s32.totalorder %s20, 0
      %p193 = por %p191, %p192
      %p194 = scmp.ne.s32.totalorder %s182, %s183
      %p195 = scmp.eq.s32.totalorder %s21, 1
      %p196 = por %p194, %p195
      %p198 = scmp.ne.s32.totalorder %s183, %s197
      %p199 = scmp.eq.s32.totalorder %s21, 0
      %p200 = por %p198, %p199
      %s201 = ssub.s32 %s15, %s22
      %p202 = scmp.eq.s32.totalorder %s201, 0
      %s204 = sadd.s32 %s203, 1
      %s205 = scalar_select %p202, %s203, %s204
      %p208 = pneg %p202
      %p209 = scmp.eq.s32.totalorder %s15, 1
      %p210 = por %p208, %p209
      %p211 = scmp.ne.s32.totalorder %s203, %s206
      %p212 = scmp.eq.s32.totalorder %s15, 0
      %p213 = por %p211, %p212
      %p214 = scmp.ne.s32.totalorder %s203, %s206
      %p215 = scmp.eq.s32.totalorder %s20, 1
      %p216 = por %p214, %p215
      %p217 = scmp.ne.s32.totalorder %s206, %s207
      %p218 = scmp.eq.s32.totalorder %s20, 0
      %p219 = por %p217, %p218
      %p220 = scmp.ne.s32.totalorder %s206, %s207
      %p221 = scmp.eq.s32.totalorder %s21, 1
      %p222 = por %p220, %p221
      %p224 = scmp.ne.s32.totalorder %s207, %s223
      %p225 = scmp.eq.s32.totalorder %s21, 0
      %p226 = por %p224, %p225
      %p227 = scmp.le.s32.totalorder 1, %s15
      %p228 = scmp.lt.s32.totalorder %s15, 3
      %p229 = pnand %p227, %p228
      %p230 = pneg %p229
      // Predicated region
      $region9: #{tpu_custom_call.1} parent=5 // pred_check
        _
      $region10: #{tpu_custom_call.1} parent=5 // pred_check_branch
        %232 = sbr.rel (%p229) target = $region12
      $region11: #{tpu_custom_call.1} parent=5 // pred_region
        %s233 = ssub.s32 %s15, 1
        // Predicated region
        $region13: #{tpu_custom_call.1} parent=11 // pred_check
          %p234 = pneg %p88
        $region14: #{tpu_custom_call.1} parent=11 // pred_check_branch
          %236 = sbr.rel (%p234) target = $region16
        $region15: #{tpu_custom_call.1} parent=11 // pred_region
          _
        $region16: #{tpu_custom_call.1} parent=11 // pred_fallthru
          _
        // Predicated region
        $region17: #{tpu_custom_call.1} parent=11 // pred_check
          %p237 = pneg %p109
        $region18: #{tpu_custom_call.1} parent=11 // pred_check_branch
          %239 = sbr.rel (%p237) target = $region20
        $region19: #{tpu_custom_call.1} parent=11 // pred_region
          _
        $region20: #{tpu_custom_call.1} parent=11 // pred_fallthru
          _
        // Predicated region
        $region21: #{tpu_custom_call.1} parent=11 // pred_check
          %p240 = pneg %p130
        $region22: #{tpu_custom_call.1} parent=11 // pred_check_branch
          %242 = sbr.rel (%p240) target = $region24
        $region23: #{tpu_custom_call.1} parent=11 // pred_region
          _
        $region24: #{tpu_custom_call.1} parent=11 // pred_fallthru
          _
        // Predicated region
        $region25: #{tpu_custom_call.1} parent=11 // pred_check
          %p243 = pneg %p151
        $region26: #{tpu_custom_call.1} parent=11 // pred_check_branch
          %245 = sbr.rel (%p243) target = $region28
        $region27: #{tpu_custom_call.1} parent=11 // pred_region
          _
        $region28: #{tpu_custom_call.1} parent=11 // pred_fallthru
          _
        // Predicated region
        $region29: #{tpu_custom_call.1} parent=11 // pred_check
          %p246 = pneg %p172
        $region30: #{tpu_custom_call.1} parent=11 // pred_check_branch
          %248 = sbr.rel (%p246) target = $region32
        $region31: #{tpu_custom_call.1} parent=11 // pred_region
          _
        $region32: #{tpu_custom_call.1} parent=11 // pred_fallthru
          _
        // Predicated region
        $region33: #{tpu_custom_call.1} parent=11 // pred_check
          %p249 = pneg %p193
        $region34: #{tpu_custom_call.1} parent=11 // pred_check_branch
          %251 = sbr.rel (%p249) target = $region36
        $region35: #{tpu_custom_call.1} parent=11 // pred_region
          %253 = vsyncadd [#allocation3], 0
          %s255 = sshll.u32 %s7, 4
          %s256 = int_to_ptr.vmem [resolvable:$true] %s255
          %258 = dma.vmem_to_smem %s256, 128, [#allocation2], [#allocation3]
        $region36: #{tpu_custom_call.1} parent=11 // pred_fallthru
          _
      $region12: #{tpu_custom_call.1} parent=5 // pred_fallthru
        _
      %p259 = scmp.lt.s32.totalorder %s15, 2
      // Predicated region
      $region37: #{tpu_custom_call.1} parent=5 // pred_check
        %p260 = pneg %p259
      $region38: #{tpu_custom_call.1} parent=5 // pred_check_branch
        %262 = sbr.rel (%p260) target = $region40
      $region39: #{tpu_custom_call.1} parent=5 // pred_region
        // Predicated region
        $region41: #{tpu_custom_call.1} parent=39 // pred_check
          %p263 = pneg %p35
        $region42: #{tpu_custom_call.1} parent=39 // pred_check_branch
          %265 = sbr.rel (%p263) target = $region44
        $region43: #{tpu_custom_call.1} parent=39 // pred_region
          %s266 = smul.u32 8, %s15
          %p267 = scmp.lt.s32.totalorder %s266, 15
          %s268 = scalar_select %p267, %s266, 15
          %s269 = smul.addr %s268, 8
          %s270 = scalar_lea.vmem %s0, %s269
          %s271 = smul.u32 8, %s15
        $region44: #{tpu_custom_call.1} parent=39 // pred_fallthru
          _
        // Predicated region
        $region45: #{tpu_custom_call.1} parent=39 // pred_check
          %p272 = pneg %p61
        $region46: #{tpu_custom_call.1} parent=39 // pred_check_branch
          %274 = sbr.rel (%p272) target = $region48
        $region47: #{tpu_custom_call.1} parent=39 // pred_region
          %s275 = smul.u32 2, %s15
          %p276 = scmp.lt.s32.totalorder %s275, 3
          %s277 = scalar_select %p276, %s275, 3
          %s278 = smul.addr %s277, 8
          %s279 = scalar_lea.vmem %s1, %s278
          %s280 = smul.u32 2, %s15
        $region48: #{tpu_custom_call.1} parent=39 // pred_fallthru
          _
      $region40: #{tpu_custom_call.1} parent=5 // pred_fallthru
        _
      %p281 = scmp.le.s32.totalorder 1, %s15
      %p282 = scmp.lt.s32.totalorder %s15, 3
      %p283 = pnand %p281, %p282
      %p284 = pneg %p283
      // Predicated region
      $region49: #{tpu_custom_call.1} parent=5 // pred_check
        _
      $region50: #{tpu_custom_call.1} parent=5 // pred_check_branch
        %286 = sbr.rel (%p283) target = $region52
      $region51: #{tpu_custom_call.1} parent=5 // pred_region
        %s287 = ssub.s32 %s15, 1
        // Predicated region
        $region53: #{tpu_custom_call.1} parent=51 // pred_check
          %p288 = pneg %p193
        $region54: #{tpu_custom_call.1} parent=51 // pred_check_branch
          %290 = sbr.rel (%p288) target = $region56
        $region55: #{tpu_custom_call.1} parent=51 // pred_region
          %292 = dma.done [#allocation3], 128
        $region56: #{tpu_custom_call.1} parent=51 // pred_fallthru
          _
        %293 = sfence
        %s294 = smul.u32 8, %s20
        %p295 = scmp.lt.s32.totalorder %s294, 15
        %s296 = scalar_select %p295, %s294, 15
        %s297 = smul.addr %s296, 8
        %s298 = scalar_lea.vmem %s0, %s297
        %p299 = pneg %p41
        %p300 = pneg %p38
        %s301 = smul.u32 2, %s20
        %p302 = scmp.lt.s32.totalorder %s301, 3
        %s303 = scalar_select %p302, %s301, 3
        %s304 = smul.addr %s303, 8
        %s305 = scalar_lea.vmem %s1, %s304
        %p306 = pneg %p67
        %p307 = pneg %p64
        %p308 = pneg %p88
        %p309 = pneg %p85
        %p310 = pneg %p109
        %p311 = pneg %p106
        %p312 = pneg %p130
        %p313 = pneg %p127
        %p314 = pneg %p151
        %p315 = pneg %p148
        %p316 = pneg %p172
        %p317 = pneg %p169
        %p318 = pneg %p193
        %p319 = pneg %p190
        %p320 = pneg %p219
        %p321 = pneg %p216
        %s322 = smul.u32 8, %s20
        %p323 = scmp.lt.s32.totalorder %s322, 15
        %s324 = scalar_select %p323, %s322, 15
        %s325 = smul.addr %s324, 8
        %s326 = scalar_lea.vmem %s8, %s325
        %s327 = smul.u32 8, %s20
        %p328 = scmp.lt.s32.totalorder %s327, 15
        %s329 = scalar_select %p328, %s327, 15
        %s330 = smul.addr %s329, 8
        %s331 = scalar_lea.vmem %s0, %s330
        %s332 = smul.u32 8, %s20
        %s333 = smul.u32 2, %s20
        %p334 = scmp.lt.s32.totalorder %s333, 3
        %s335 = scalar_select %p334, %s333, 3
        %s336 = smul.addr %s335, 8
        %s337 = scalar_lea.vmem %s1, %s336
        %s338 = smul.u32 2, %s20
        %s339 = smul.u32 8, %s20
        %p340 = scmp.lt.s32.totalorder %s339, 15
        %s341 = scalar_select %p340, %s339, 15
        %s342 = smul.addr %s341, 8
        %s343 = scalar_lea.vmem %s8, %s342
        %s344 = smul.u32 8, %s20
        %v345 = vld [vmem:[%s331] sm:$0xff]
        %v346 = vld [vmem:[%s331 + $0x8] sm:$0xff]
        %v347 = vld [vmem:[%s331 + $0x10] sm:$0xff]
        %v348 = vld [vmem:[%s331 + $0x18] sm:$0xff]
        %v349 = vld [vmem:[%s331 + $0x20] sm:$0xff]
        %v350 = vld [vmem:[%s331 + $0x28] sm:$0xff]
        %v351 = vld [vmem:[%s331 + $0x30] sm:$0xff]
        %v352 = vld [vmem:[%s331 + $0x38] sm:$0xff]
        %v353 = vld [vmem:[%s5] sm:$0xff]
        %v354 = vld [vmem:[%s5 + $0x8] sm:$0xff]
        %v355 = vld [vmem:[%s6] sm:$0x1]
        %v357 = vperm.slane %v355, 0
        %vm359 = vcmask 130048
        %v361 = vsel %vm359, %v345, 0
        %v364 = vsel %vm359, %v346, 0
        %v367 = vsel %vm359, %v347, 0
        %v370 = vsel %vm359, %v348, 0
        %v373 = vsel %vm359, %v349, 0
        %v376 = vsel %vm359, %v350, 0
        %v379 = vsel %vm359, %v351, 0
        %v382 = vsel %vm359, %v352, 0
        %384 = vmatpush.msra.mxu0 0.0
        %385 = vmatpush.msra.mxu0 0.0
        %386 = vmatpush.msra.mxu0 0.0
        %387 = vmatpush.msra.mxu0 0.0
        %388 = vmatpush.msra.mxu0 0.0
        %389 = vmatpush.msra.mxu0 0.0
        %390 = vmatpush.msra.mxu0 0.0
        %391 = vmatpush.msra.mxu0 0.0
        %392 = vmatpush.msra.mxu0 0.0
        %393 = vmatpush.msra.mxu0 0.0
        %394 = vmatpush.msra.mxu0 0.0
        %395 = vmatpush.msra.mxu0 0.0
        %396 = vmatpush.msra.mxu0 0.0
        %397 = vmatpush.msra.mxu0 0.0
        %398 = vmatpush.msra.mxu0 %v354
        %399 = vmatpush.msra.mxu0 %v353
        %400 = vmatmul.f32.gmra.mxu0 %v361
        %v401 = vpop.f32.mrf.mxu0
        %v402 = vadd.f32 %v357, %v401
        %403 = vmatmul.f32.gmra.mxu0 %v364
        %v404 = vpop.f32.mrf.mxu0
        %v405 = vadd.f32 %v357, %v404
        %406 = vmatmul.f32.gmra.mxu0 %v367
        %v407 = vpop.f32.mrf.mxu0
        %v408 = vadd.f32 %v357, %v407
        %409 = vmatmul.f32.gmra.mxu0 %v370
        %v410 = vpop.f32.mrf.mxu0
        %v411 = vadd.f32 %v357, %v410
        %412 = vmatmul.f32.gmra.mxu0 %v373
        %v413 = vpop.f32.mrf.mxu0
        %v414 = vadd.f32 %v357, %v413
        %415 = vmatmul.f32.gmra.mxu0 %v376
        %v416 = vpop.f32.mrf.mxu0
        %v417 = vadd.f32 %v357, %v416
        %418 = vmatmul.f32.gmra.mxu0 %v379
        %v419 = vpop.f32.mrf.mxu0
        %v420 = vadd.f32 %v357, %v419
        %421 = vmatmul.f32.gmra.mxu0 %v382
        %v422 = vpop.f32.mrf.mxu0
        %v423 = vadd.f32 %v357, %v422
        %424 = vdwg.mxu0
        %v425 = vld [vmem:[%s2] sm:$0xff]
        %v426 = vld [vmem:[%s2 + $0x8] sm:$0xff]
        %v427 = vld [vmem:[%s2 + $0x10] sm:$0xff]
        %v428 = vld [vmem:[%s2 + $0x18] sm:$0xff]
        %v429 = vld [vmem:[%s2 + $0x20] sm:$0xff]
        %v430 = vld [vmem:[%s2 + $0x28] sm:$0xff]
        %v431 = vld [vmem:[%s2 + $0x30] sm:$0xff]
        %v432 = vld [vmem:[%s2 + $0x38] sm:$0xff]
        %v433 = vld [vmem:[%s2 + $0x40] sm:$0xff]
        %v434 = vld [vmem:[%s2 + $0x48] sm:$0xff]
        %v435 = vld [vmem:[%s2 + $0x50] sm:$0xff]
        %v436 = vld [vmem:[%s2 + $0x58] sm:$0xff]
        %v437 = vld [vmem:[%s2 + $0x60] sm:$0xff]
        %v438 = vld [vmem:[%s2 + $0x68] sm:$0xff]
        %v439 = vld [vmem:[%s2 + $0x70] sm:$0xff]
        %v440 = vld [vmem:[%s2 + $0x78] sm:$0xff]
        %v441 = vld [vmem:[%s337] sm:$0xff]
        %v442 = vld [vmem:[%s337 + $0x8] sm:$0xff]
        %v443 = vunpack.c.0.s8 %v441
        %v444 = vunpack.c.1.s8 %v441
        %v445 = vunpack.c.2.s8 %v441
        %v446 = vunpack.c.3.s8 %v441
        %v447 = vunpack.c.0.s8 %v442
        %v448 = vunpack.c.1.s8 %v442
        %v449 = vunpack.c.2.s8 %v442
        %v450 = vunpack.c.3.s8 %v442
        %v451 = vcvt.s32.f32 %v443
        %v452 = vcvt.s32.f32 %v444
        %v453 = vcvt.s32.f32 %v445
        %v454 = vcvt.s32.f32 %v446
        %v455 = vcvt.s32.f32 %v447
        %v456 = vcvt.s32.f32 %v448
        %v457 = vcvt.s32.f32 %v449
        %v458 = vcvt.s32.f32 %v450
        %v459 = vsub.f32 %v451, 1.0
        %v460 = vsub.f32 %v452, 1.0
        %v461 = vsub.f32 %v453, 1.0
        %v462 = vsub.f32 %v454, 1.0
        %v463 = vsub.f32 %v455, 1.0
        %v464 = vsub.f32 %v456, 1.0
        %v465 = vsub.f32 %v457, 1.0
        %v466 = vsub.f32 %v458, 1.0
        %v467 = vmul.f32 %v459, 1e+30
        %v468 = vmul.f32 %v460, 1e+30
        %v469 = vmul.f32 %v461, 1e+30
        %v470 = vmul.f32 %v462, 1e+30
        %v471 = vmul.f32 %v463, 1e+30
        %v472 = vmul.f32 %v464, 1e+30
        %v473 = vmul.f32 %v465, 1e+30
        %v474 = vmul.f32 %v466, 1e+30
        %v475 = vld [vmem:[%s3] sm:$0xff]
        %v476 = vld [vmem:[%s3 + $0x8] sm:$0xff]
        %v477 = vld [vmem:[%s3 + $0x10] sm:$0xff]
        %v478 = vld [vmem:[%s3 + $0x18] sm:$0xff]
        %v479 = vld [vmem:[%s4] sm:$0xff]
        %481 = vset.pattern.permute.xlu0 64
        %482 = vperm.xlu0 %481, %v402
        %v483 = vpop.permute.xlu0 %482
        %486 = vset.pattern.permute.xlu0 64
        %487 = vperm.xlu0 %486, %v405
        %v488 = vpop.permute.xlu0 %487
        %491 = vset.pattern.permute.xlu0 64
        %492 = vperm.xlu0 %491, %v408
        %v493 = vpop.permute.xlu0 %492
        %496 = vset.pattern.permute.xlu0 64
        %497 = vperm.xlu0 %496, %v411
        %v498 = vpop.permute.xlu0 %497
        %501 = vset.pattern.permute.xlu0 64
        %502 = vperm.xlu0 %501, %v414
        %v503 = vpop.permute.xlu0 %502
        %506 = vset.pattern.permute.xlu0 64
        %507 = vperm.xlu0 %506, %v417
        %v508 = vpop.permute.xlu0 %507
        %511 = vset.pattern.permute.xlu0 64
        %512 = vperm.xlu0 %511, %v420
        %v513 = vpop.permute.xlu0 %512
        %516 = vset.pattern.permute.xlu0 64
        %517 = vperm.xlu0 %516, %v423
        %v518 = vpop.permute.xlu0 %517
        %v520 = vadd.f32 %v467, %v483
        %v521 = vadd.f32 %v468, %v488
        %v522 = vadd.f32 %v469, %v493
        %v523 = vadd.f32 %v470, %v498
        %v524 = vadd.f32 %v471, %v503
        %v525 = vadd.f32 %v472, %v508
        %v526 = vadd.f32 %v473, %v513
        %v527 = vadd.f32 %v474, %v518
        %v528 = vperm.slane %v479, 0
        %v529 = vadd.f32 %v520, %v528
        %v530 = vadd.f32 %v521, %v528
        %v531 = vadd.f32 %v522, %v528
        %v532 = vadd.f32 %v523, %v528
        %v533 = vadd.f32 %v524, %v528
        %v534 = vadd.f32 %v525, %v528
        %v535 = vadd.f32 %v526, %v528
        %v536 = vadd.f32 %v527, %v528
        %537 = vset.pattern.permute.xlu0 0
        %538 = vperm.xlu0 %537, %v402
        %v539 = vpop.permute.xlu0 %538
        %541 = vset.pattern.permute.xlu0 0
        %542 = vperm.xlu0 %541, %v405
        %v543 = vpop.permute.xlu0 %542
        %545 = vset.pattern.permute.xlu0 0
        %546 = vperm.xlu0 %545, %v408
        %v547 = vpop.permute.xlu0 %546
        %549 = vset.pattern.permute.xlu0 0
        %550 = vperm.xlu0 %549, %v411
        %v551 = vpop.permute.xlu0 %550
        %553 = vset.pattern.permute.xlu0 0
        %554 = vperm.xlu0 %553, %v414
        %v555 = vpop.permute.xlu0 %554
        %557 = vset.pattern.permute.xlu0 0
        %558 = vperm.xlu0 %557, %v417
        %v559 = vpop.permute.xlu0 %558
        %561 = vset.pattern.permute.xlu0 0
        %562 = vperm.xlu0 %561, %v420
        %v563 = vpop.permute.xlu0 %562
        %565 = vset.pattern.permute.xlu0 0
        %566 = vperm.xlu0 %565, %v423
        %v567 = vpop.permute.xlu0 %566
        %v569 = vperm.slane %v475, 0
        %v570 = vadd.f32 %v539, %v569
        %v571 = vadd.f32 %v543, %v569
        %v572 = vadd.f32 %v547, %v569
        %v573 = vadd.f32 %v551, %v569
        %v574 = vadd.f32 %v555, %v569
        %v575 = vadd.f32 %v559, %v569
        %v576 = vadd.f32 %v563, %v569
        %v577 = vadd.f32 %v567, %v569
        %s578 = sld [smem:[#allocation2]]
        %v579 = vand.u32 2147483647, %v570
        %v580 = vand.u32 2147483647, %v571
        %v581 = vand.u32 2147483647, %v572
        %v582 = vand.u32 2147483647, %v573
        %v583 = vand.u32 2147483647, %v574
        %v584 = vand.u32 2147483647, %v575
        %v585 = vand.u32 2147483647, %v576
        %v586 = vand.u32 2147483647, %v577
        %v587 = vstv %s578
        %v588 = vmul.f32 %v587, %v579
        %v589 = vmul.f32 %v587, %v580
        %v590 = vmul.f32 %v587, %v581
        %v591 = vmul.f32 %v587, %v582
        %v592 = vmul.f32 %v587, %v583
        %v593 = vmul.f32 %v587, %v584
        %v594 = vmul.f32 %v587, %v585
        %v595 = vmul.f32 %v587, %v586
        %v596 = vadd.f32 %v529, %v588
        %v597 = vadd.f32 %v530, %v589
        %v598 = vadd.f32 %v531, %v590
        %v599 = vadd.f32 %v532, %v591
        %v600 = vadd.f32 %v533, %v592
        %v601 = vadd.f32 %v534, %v593
        %v602 = vadd.f32 %v535, %v594
        %v603 = vadd.f32 %v536, %v595
        %604 = vset.pattern.permute.xlu0 1
        %605 = vperm.xlu0 %604, %v402
        %v606 = vpop.permute.xlu0 %605
        %608 = vset.pattern.permute.xlu0 1
        %609 = vperm.xlu0 %608, %v405
        %v610 = vpop.permute.xlu0 %609
        %612 = vset.pattern.permute.xlu0 1
        %613 = vperm.xlu0 %612, %v408
        %v614 = vpop.permute.xlu0 %613
        %616 = vset.pattern.permute.xlu0 1
        %617 = vperm.xlu0 %616, %v411
        %v618 = vpop.permute.xlu0 %617
        %620 = vset.pattern.permute.xlu0 1
        %621 = vperm.xlu0 %620, %v414
        %v622 = vpop.permute.xlu0 %621
        %624 = vset.pattern.permute.xlu0 1
        %625 = vperm.xlu0 %624, %v417
        %v626 = vpop.permute.xlu0 %625
        %628 = vset.pattern.permute.xlu0 1
        %629 = vperm.xlu0 %628, %v420
        %v630 = vpop.permute.xlu0 %629
        %632 = vset.pattern.permute.xlu0 1
        %633 = vperm.xlu0 %632, %v423
        %v634 = vpop.permute.xlu0 %633
        %v636 = vperm.slane %v475, 1
        %v637 = vadd.f32 %v606, %v636
        %v638 = vadd.f32 %v610, %v636
        %v639 = vadd.f32 %v614, %v636
        %v640 = vadd.f32 %v618, %v636
        %v641 = vadd.f32 %v622, %v636
        %v642 = vadd.f32 %v626, %v636
        %v643 = vadd.f32 %v630, %v636
        %v644 = vadd.f32 %v634, %v636
        %s645 = sld [smem:[#allocation2 + $0x1]]
        %v646 = vand.u32 2147483647, %v637
        %v647 = vand.u32 2147483647, %v638
        %v648 = vand.u32 2147483647, %v639
        %v649 = vand.u32 2147483647, %v640
        %v650 = vand.u32 2147483647, %v641
        %v651 = vand.u32 2147483647, %v642
        %v652 = vand.u32 2147483647, %v643
        %v653 = vand.u32 2147483647, %v644
        %v654 = vstv %s645
        %v655 = vmul.f32 %v654, %v646
        %v656 = vmul.f32 %v654, %v647
        %v657 = vmul.f32 %v654, %v648
        %v658 = vmul.f32 %v654, %v649
        %v659 = vmul.f32 %v654, %v650
        %v660 = vmul.f32 %v654, %v651
        %v661 = vmul.f32 %v654, %v652
        %v662 = vmul.f32 %v654, %v653
        %v663 = vadd.f32 %v596, %v655
        %v664 = vadd.f32 %v597, %v656
        %v665 = vadd.f32 %v598, %v657
        %v666 = vadd.f32 %v599, %v658
        %v667 = vadd.f32 %v600, %v659
        %v668 = vadd.f32 %v601, %v660
        %v669 = vadd.f32 %v602, %v661
        %v670 = vadd.f32 %v603, %v662
        %671 = vset.pattern.permute.xlu0 2
        %672 = vperm.xlu0 %671, %v402
        %v673 = vpop.permute.xlu0 %672
        %675 = vset.pattern.permute.xlu0 2
        %676 = vperm.xlu0 %675, %v405
        %v677 = vpop.permute.xlu0 %676
        %679 = vset.pattern.permute.xlu0 2
        %680 = vperm.xlu0 %679, %v408
        %v681 = vpop.permute.xlu0 %680
        %683 = vset.pattern.permute.xlu0 2
        %684 = vperm.xlu0 %683, %v411
        %v685 = vpop.permute.xlu0 %684
        %687 = vset.pattern.permute.xlu0 2
        %688 = vperm.xlu0 %687, %v414
        %v689 = vpop.permute.xlu0 %688
        %691 = vset.pattern.permute.xlu0 2
        %692 = vperm.xlu0 %691, %v417
        %v693 = vpop.permute.xlu0 %692
        %695 = vset.pattern.permute.xlu0 2
        %696 = vperm.xlu0 %695, %v420
        %v697 = vpop.permute.xlu0 %696
        %699 = vset.pattern.permute.xlu0 2
        %700 = vperm.xlu0 %699, %v423
        %v701 = vpop.permute.xlu0 %700
        %v703 = vperm.slane %v475, 2
        %v704 = vadd.f32 %v673, %v703
        %v705 = vadd.f32 %v677, %v703
        %v706 = vadd.f32 %v681, %v703
        %v707 = vadd.f32 %v685, %v703
        %v708 = vadd.f32 %v689, %v703
        %v709 = vadd.f32 %v693, %v703
        %v710 = vadd.f32 %v697, %v703
        %v711 = vadd.f32 %v701, %v703
        %s712 = sld [smem:[#allocation2 + $0x2]]
        %v713 = vand.u32 2147483647, %v704
        %v714 = vand.u32 2147483647, %v705
        %v715 = vand.u32 2147483647, %v706
        %v716 = vand.u32 2147483647, %v707
        %v717 = vand.u32 2147483647, %v708
        %v718 = vand.u32 2147483647, %v709
        %v719 = vand.u32 2147483647, %v710
        %v720 = vand.u32 2147483647, %v711
        %v721 = vstv %s712
        %v722 = vmul.f32 %v721, %v713
        %v723 = vmul.f32 %v721, %v714
        %v724 = vmul.f32 %v721, %v715
        %v725 = vmul.f32 %v721, %v716
        %v726 = vmul.f32 %v721, %v717
        %v727 = vmul.f32 %v721, %v718
        %v728 = vmul.f32 %v721, %v719
        %v729 = vmul.f32 %v721, %v720
        %v730 = vadd.f32 %v663, %v722
        %v731 = vadd.f32 %v664, %v723
        %v732 = vadd.f32 %v665, %v724
        %v733 = vadd.f32 %v666, %v725
        %v734 = vadd.f32 %v667, %v726
        %v735 = vadd.f32 %v668, %v727
        %v736 = vadd.f32 %v669, %v728
        %v737 = vadd.f32 %v670, %v729
        %738 = vset.pattern.permute.xlu0 3
        %739 = vperm.xlu0 %738, %v402
        %v740 = vpop.permute.xlu0 %739
        %742 = vset.pattern.permute.xlu0 3
        %743 = vperm.xlu0 %742, %v405
        %v744 = vpop.permute.xlu0 %743
        %746 = vset.pattern.permute.xlu0 3
        %747 = vperm.xlu0 %746, %v408
        %v748 = vpop.permute.xlu0 %747
        %750 = vset.pattern.permute.xlu0 3
        %751 = vperm.xlu0 %750, %v411
        %v752 = vpop.permute.xlu0 %751
        %754 = vset.pattern.permute.xlu0 3
        %755 = vperm.xlu0 %754, %v414
        %v756 = vpop.permute.xlu0 %755
        %758 = vset.pattern.permute.xlu0 3
        %759 = vperm.xlu0 %758, %v417
        %v760 = vpop.permute.xlu0 %759
        %762 = vset.pattern.permute.xlu0 3
        %763 = vperm.xlu0 %762, %v420
        %v764 = vpop.permute.xlu0 %763
        %766 = vset.pattern.permute.xlu0 3
        %767 = vperm.xlu0 %766, %v423
        %v768 = vpop.permute.xlu0 %767
        %v770 = vperm.slane %v475, 3
        %v771 = vadd.f32 %v740, %v770
        %v772 = vadd.f32 %v744, %v770
        %v773 = vadd.f32 %v748, %v770
        %v774 = vadd.f32 %v752, %v770
        %v775 = vadd.f32 %v756, %v770
        %v776 = vadd.f32 %v760, %v770
        %v777 = vadd.f32 %v764, %v770
        %v778 = vadd.f32 %v768, %v770
        %s779 = sld [smem:[#allocation2 + $0x3]]
        %v780 = vand.u32 2147483647, %v771
        %v781 = vand.u32 2147483647, %v772
        %v782 = vand.u32 2147483647, %v773
        %v783 = vand.u32 2147483647, %v774
        %v784 = vand.u32 2147483647, %v775
        %v785 = vand.u32 2147483647, %v776
        %v786 = vand.u32 2147483647, %v777
        %v787 = vand.u32 2147483647, %v778
        %v788 = vstv %s779
        %v789 = vmul.f32 %v788, %v780
        %v790 = vmul.f32 %v788, %v781
        %v791 = vmul.f32 %v788, %v782
        %v792 = vmul.f32 %v788, %v783
        %v793 = vmul.f32 %v788, %v784
        %v794 = vmul.f32 %v788, %v785
        %v795 = vmul.f32 %v788, %v786
        %v796 = vmul.f32 %v788, %v787
        %v797 = vadd.f32 %v730, %v789
        %v798 = vadd.f32 %v731, %v790
        %v799 = vadd.f32 %v732, %v791
        %v800 = vadd.f32 %v733, %v792
        %v801 = vadd.f32 %v734, %v793
        %v802 = vadd.f32 %v735, %v794
        %v803 = vadd.f32 %v736, %v795
        %v804 = vadd.f32 %v737, %v796
        %805 = vmax.xlane.f32.xlu0 %v797
        %v806 = vpop.xlane.xlu0 %805
        %807 = vmax.xlane.f32.xlu0 %v798
        %v808 = vpop.xlane.xlu0 %807
        %809 = vmax.xlane.f32.xlu0 %v799
        %v810 = vpop.xlane.xlu0 %809
        %811 = vmax.xlane.f32.xlu0 %v800
        %v812 = vpop.xlane.xlu0 %811
        %813 = vmax.xlane.f32.xlu0 %v801
        %v814 = vpop.xlane.xlu0 %813
        %815 = vmax.xlane.f32.xlu0 %v802
        %v816 = vpop.xlane.xlu0 %815
        %817 = vmax.xlane.f32.xlu0 %v803
        %v818 = vpop.xlane.xlu0 %817
        %819 = vmax.xlane.f32.xlu0 %v804
        %v820 = vpop.xlane.xlu0 %819
        %v821 = vsub.f32 %v797, %v806
        %v822 = vsub.f32 %v798, %v808
        %v823 = vsub.f32 %v799, %v810
        %v824 = vsub.f32 %v800, %v812
        %v825 = vsub.f32 %v801, %v814
        %v826 = vsub.f32 %v802, %v816
        %v827 = vsub.f32 %v803, %v818
        %v828 = vsub.f32 %v804, %v820
        %v829 = vmul.f32 %v821, 1.442695
        %v830 = vpow.pop %v829
        %v831 = vmul.f32 %v822, 1.442695
        %v832 = vpow.pop %v831
        %v833 = vmul.f32 %v823, 1.442695
        %v834 = vpow.pop %v833
        %v835 = vmul.f32 %v824, 1.442695
        %v836 = vpow.pop %v835
        %v837 = vmul.f32 %v825, 1.442695
        %v838 = vpow.pop %v837
        %v839 = vmul.f32 %v826, 1.442695
        %v840 = vpow.pop %v839
        %v841 = vmul.f32 %v827, 1.442695
        %v842 = vpow.pop %v841
        %v843 = vmul.f32 %v828, 1.442695
        %v844 = vpow.pop %v843
        %v845 = vmul.f32 %v830, %v451
        %v846 = vmul.f32 %v832, %v452
        %v847 = vmul.f32 %v834, %v453
        %v848 = vmul.f32 %v836, %v454
        %v849 = vmul.f32 %v838, %v455
        %v850 = vmul.f32 %v840, %v456
        %v851 = vmul.f32 %v842, %v457
        %v852 = vmul.f32 %v844, %v458
        %853 = vadd.xlane.f32.xlu0 %v845
        %v854 = vpop.xlane.xlu0 %853
        %855 = vadd.xlane.f32.xlu0 %v846
        %v856 = vpop.xlane.xlu0 %855
        %857 = vadd.xlane.f32.xlu0 %v847
        %v858 = vpop.xlane.xlu0 %857
        %859 = vadd.xlane.f32.xlu0 %v848
        %v860 = vpop.xlane.xlu0 %859
        %861 = vadd.xlane.f32.xlu0 %v849
        %v862 = vpop.xlane.xlu0 %861
        %863 = vadd.xlane.f32.xlu0 %v850
        %v864 = vpop.xlane.xlu0 %863
        %865 = vadd.xlane.f32.xlu0 %v851
        %v866 = vpop.xlane.xlu0 %865
        %867 = vadd.xlane.f32.xlu0 %v852
        %v868 = vpop.xlane.xlu0 %867
        %v869 = vmax.f32 %v854, 1e-16
        %v870 = vmax.f32 %v856, 1e-16
        %v871 = vmax.f32 %v858, 1e-16
        %v872 = vmax.f32 %v860, 1e-16
        %v873 = vmax.f32 %v862, 1e-16
        %v874 = vmax.f32 %v864, 1e-16
        %v875 = vmax.f32 %v866, 1e-16
        %v876 = vmax.f32 %v868, 1e-16
        %v877 = vrcp.pop %v869
        %v878 = vmul.f32 %v869, %v877
        %v879 = vsub.f32 1.0, %v878
        %v880 = vmul.f32 %v877, %v879
        %v881 = vadd.f32 %v877, %v880
        %vm882 = vweird.f32 %v869
        %vm883 = vweird.f32 %v877
        %vm884 = vmor %vm882, %vm883
        %v885 = vsel %vm884, %v877, %v881
        %v886 = vand.u32 2147483647, %v869
        %vm887 = vcmp.eq.f32.partialorder %v886, 8.507059e+37
        %v888 = vand.u32 %v869, 2147483648
        %v889 = vor.u32 1.1754944e-38, %v888
        %v890 = vsel %vm887, %v889, %v885
        %v891 = vrcp.pop %v870
        %v892 = vmul.f32 %v870, %v891
        %v893 = vsub.f32 1.0, %v892
        %v894 = vmul.f32 %v891, %v893
        %v895 = vadd.f32 %v891, %v894
        %vm896 = vweird.f32 %v870
        %vm897 = vweird.f32 %v891
        %vm898 = vmor %vm896, %vm897
        %v899 = vsel %vm898, %v891, %v895
        %v900 = vand.u32 2147483647, %v870
        %vm901 = vcmp.eq.f32.partialorder %v900, 8.507059e+37
        %v902 = vand.u32 %v870, 2147483648
        %v903 = vor.u32 1.1754944e-38, %v902
        %v904 = vsel %vm901, %v903, %v899
        %v905 = vrcp.pop %v871
        %v906 = vmul.f32 %v871, %v905
        %v907 = vsub.f32 1.0, %v906
        %v908 = vmul.f32 %v905, %v907
        %v909 = vadd.f32 %v905, %v908
        %vm910 = vweird.f32 %v871
        %vm911 = vweird.f32 %v905
        %vm912 = vmor %vm910, %vm911
        %v913 = vsel %vm912, %v905, %v909
        %v914 = vand.u32 2147483647, %v871
        %vm915 = vcmp.eq.f32.partialorder %v914, 8.507059e+37
        %v916 = vand.u32 %v871, 2147483648
        %v917 = vor.u32 1.1754944e-38, %v916
        %v918 = vsel %vm915, %v917, %v913
        %v919 = vrcp.pop %v872
        %v920 = vmul.f32 %v872, %v919
        %v921 = vsub.f32 1.0, %v920
        %v922 = vmul.f32 %v919, %v921
        %v923 = vadd.f32 %v919, %v922
        %vm924 = vweird.f32 %v872
        %vm925 = vweird.f32 %v919
        %vm926 = vmor %vm924, %vm925
        %v927 = vsel %vm926, %v919, %v923
        %v928 = vand.u32 2147483647, %v872
        %vm929 = vcmp.eq.f32.partialorder %v928, 8.507059e+37
        %v930 = vand.u32 %v872, 2147483648
        %v931 = vor.u32 1.1754944e-38, %v930
        %v932 = vsel %vm929, %v931, %v927
        %v933 = vrcp.pop %v873
        %v934 = vmul.f32 %v873, %v933
        %v935 = vsub.f32 1.0, %v934
        %v936 = vmul.f32 %v933, %v935
        %v937 = vadd.f32 %v933, %v936
        %vm938 = vweird.f32 %v873
        %vm939 = vweird.f32 %v933
        %vm940 = vmor %vm938, %vm939
        %v941 = vsel %vm940, %v933, %v937
        %v942 = vand.u32 2147483647, %v873
        %vm943 = vcmp.eq.f32.partialorder %v942, 8.507059e+37
        %v944 = vand.u32 %v873, 2147483648
        %v945 = vor.u32 1.1754944e-38, %v944
        %v946 = vsel %vm943, %v945, %v941
        %v947 = vrcp.pop %v874
        %v948 = vmul.f32 %v874, %v947
        %v949 = vsub.f32 1.0, %v948
        %v950 = vmul.f32 %v947, %v949
        %v951 = vadd.f32 %v947, %v950
        %vm952 = vweird.f32 %v874
        %vm953 = vweird.f32 %v947
        %vm954 = vmor %vm952, %vm953
        %v955 = vsel %vm954, %v947, %v951
        %v956 = vand.u32 2147483647, %v874
        %vm957 = vcmp.eq.f32.partialorder %v956, 8.507059e+37
        %v958 = vand.u32 %v874, 2147483648
        %v959 = vor.u32 1.1754944e-38, %v958
        %v960 = vsel %vm957, %v959, %v955
        %v961 = vrcp.pop %v875
        %v962 = vmul.f32 %v875, %v961
        %v963 = vsub.f32 1.0, %v962
        %v964 = vmul.f32 %v961, %v963
        %v965 = vadd.f32 %v961, %v964
        %vm966 = vweird.f32 %v875
        %vm967 = vweird.f32 %v961
        %vm968 = vmor %vm966, %vm967
        %v969 = vsel %vm968, %v961, %v965
        %v970 = vand.u32 2147483647, %v875
        %vm971 = vcmp.eq.f32.partialorder %v970, 8.507059e+37
        %v972 = vand.u32 %v875, 2147483648
        %v973 = vor.u32 1.1754944e-38, %v972
        %v974 = vsel %vm971, %v973, %v969
        %v975 = vrcp.pop %v876
        %v976 = vmul.f32 %v876, %v975
        %v977 = vsub.f32 1.0, %v976
        %v978 = vmul.f32 %v975, %v977
        %v979 = vadd.f32 %v975, %v978
        %vm980 = vweird.f32 %v876
        %vm981 = vweird.f32 %v975
        %vm982 = vmor %vm980, %vm981
        %v983 = vsel %vm982, %v975, %v979
        %v984 = vand.u32 2147483647, %v876
        %vm985 = vcmp.eq.f32.partialorder %v984, 8.507059e+37
        %v986 = vand.u32 %v876, 2147483648
        %v987 = vor.u32 1.1754944e-38, %v986
        %v988 = vsel %vm985, %v987, %v983
        %v989 = vmul.f32 %v845, %v890
        %v990 = vmul.f32 %v846, %v904
        %v991 = vmul.f32 %v847, %v918
        %v992 = vmul.f32 %v848, %v932
        %v993 = vmul.f32 %v849, %v946
        %v994 = vmul.f32 %v850, %v960
        %v995 = vmul.f32 %v851, %v974
        %v996 = vmul.f32 %v852, %v988
        %997 = vmatpush.msra.mxu0 %v440
        %998 = vmatpush.msra.mxu0 %v439
        %999 = vmatpush.msra.mxu0 %v438
        %1000 = vmatpush.msra.mxu0 %v437
        %1001 = vmatpush.msra.mxu0 %v436
        %1002 = vmatpush.msra.mxu0 %v435
        %1003 = vmatpush.msra.mxu0 %v434
        %1004 = vmatpush.msra.mxu0 %v433
        %1005 = vmatpush.msra.mxu0 %v432
        %1006 = vmatpush.msra.mxu0 %v431
        %1007 = vmatpush.msra.mxu0 %v430
        %1008 = vmatpush.msra.mxu0 %v429
        %1009 = vmatpush.msra.mxu0 %v428
        %1010 = vmatpush.msra.mxu0 %v427
        %1011 = vmatpush.msra.mxu0 %v426
        %1012 = vmatpush.msra.mxu0 %v425
        %1013 = vmatmul.f32.gmra.mxu0 %v989
        %v1014 = vpop.f32.mrf.mxu0
        %v1015 = vadd.f32 0.0, %v1014
        %1016 = vmatmul.f32.gmra.mxu0 %v990
        %v1017 = vpop.f32.mrf.mxu0
        %v1018 = vadd.f32 0.0, %v1017
        %1019 = vmatmul.f32.gmra.mxu0 %v991
        %v1020 = vpop.f32.mrf.mxu0
        %v1021 = vadd.f32 0.0, %v1020
        %1022 = vmatmul.f32.gmra.mxu0 %v992
        %v1023 = vpop.f32.mrf.mxu0
        %v1024 = vadd.f32 0.0, %v1023
        %1025 = vmatmul.f32.gmra.mxu0 %v993
        %v1026 = vpop.f32.mrf.mxu0
        %v1027 = vadd.f32 0.0, %v1026
        %1028 = vmatmul.f32.gmra.mxu0 %v994
        %v1029 = vpop.f32.mrf.mxu0
        %v1030 = vadd.f32 0.0, %v1029
        %1031 = vmatmul.f32.gmra.mxu0 %v995
        %v1032 = vpop.f32.mrf.mxu0
        %v1033 = vadd.f32 0.0, %v1032
        %1034 = vmatmul.f32.gmra.mxu0 %v996
        %v1035 = vpop.f32.mrf.mxu0
        %v1036 = vadd.f32 0.0, %v1035
        %1037 = vdwg.mxu0
        %1038 = vset.pattern.permute.xlu0 65
        %1039 = vperm.xlu0 %1038, %v402
        %v1040 = vpop.permute.xlu0 %1039
        %1042 = vset.pattern.permute.xlu0 65
        %1043 = vperm.xlu0 %1042, %v405
        %v1044 = vpop.permute.xlu0 %1043
        %1046 = vset.pattern.permute.xlu0 65
        %1047 = vperm.xlu0 %1046, %v408
        %v1048 = vpop.permute.xlu0 %1047
        %1050 = vset.pattern.permute.xlu0 65
        %1051 = vperm.xlu0 %1050, %v411
        %v1052 = vpop.permute.xlu0 %1051
        %1054 = vset.pattern.permute.xlu0 65
        %1055 = vperm.xlu0 %1054, %v414
        %v1056 = vpop.permute.xlu0 %1055
        %1058 = vset.pattern.permute.xlu0 65
        %1059 = vperm.xlu0 %1058, %v417
        %v1060 = vpop.permute.xlu0 %1059
        %1062 = vset.pattern.permute.xlu0 65
        %1063 = vperm.xlu0 %1062, %v420
        %v1064 = vpop.permute.xlu0 %1063
        %1066 = vset.pattern.permute.xlu0 65
        %1067 = vperm.xlu0 %1066, %v423
        %v1068 = vpop.permute.xlu0 %1067
        %v1070 = vadd.f32 %v467, %v1040
        %v1071 = vadd.f32 %v468, %v1044
        %v1072 = vadd.f32 %v469, %v1048
        %v1073 = vadd.f32 %v470, %v1052
        %v1074 = vadd.f32 %v471, %v1056
        %v1075 = vadd.f32 %v472, %v1060
        %v1076 = vadd.f32 %v473, %v1064
        %v1077 = vadd.f32 %v474, %v1068
        %v1078 = vperm.slane %v479, 1
        %v1079 = vadd.f32 %v1070, %v1078
        %v1080 = vadd.f32 %v1071, %v1078
        %v1081 = vadd.f32 %v1072, %v1078
        %v1082 = vadd.f32 %v1073, %v1078
        %v1083 = vadd.f32 %v1074, %v1078
        %v1084 = vadd.f32 %v1075, %v1078
        %v1085 = vadd.f32 %v1076, %v1078
        %v1086 = vadd.f32 %v1077, %v1078
        %1087 = vset.pattern.permute.xlu0 4
        %1088 = vperm.xlu0 %1087, %v402
        %v1089 = vpop.permute.xlu0 %1088
        %1091 = vset.pattern.permute.xlu0 4
        %1092 = vperm.xlu0 %1091, %v405
        %v1093 = vpop.permute.xlu0 %1092
        %1095 = vset.pattern.permute.xlu0 4
        %1096 = vperm.xlu0 %1095, %v408
        %v1097 = vpop.permute.xlu0 %1096
        %1099 = vset.pattern.permute.xlu0 4
        %1100 = vperm.xlu0 %1099, %v411
        %v1101 = vpop.permute.xlu0 %1100
        %1103 = vset.pattern.permute.xlu0 4
        %1104 = vperm.xlu0 %1103, %v414
        %v1105 = vpop.permute.xlu0 %1104
        %1107 = vset.pattern.permute.xlu0 4
        %1108 = vperm.xlu0 %1107, %v417
        %v1109 = vpop.permute.xlu0 %1108
        %1111 = vset.pattern.permute.xlu0 4
        %1112 = vperm.xlu0 %1111, %v420
        %v1113 = vpop.permute.xlu0 %1112
        %1115 = vset.pattern.permute.xlu0 4
        %1116 = vperm.xlu0 %1115, %v423
        %v1117 = vpop.permute.xlu0 %1116
        %v1119 = vperm.slane %v475, 4
        %v1120 = vadd.f32 %v1089, %v1119
        %v1121 = vadd.f32 %v1093, %v1119
        %v1122 = vadd.f32 %v1097, %v1119
        %v1123 = vadd.f32 %v1101, %v1119
        %v1124 = vadd.f32 %v1105, %v1119
        %v1125 = vadd.f32 %v1109, %v1119
        %v1126 = vadd.f32 %v1113, %v1119
        %v1127 = vadd.f32 %v1117, %v1119
        %s1128 = sld [smem:[#allocation2 + $0x80]]
        %v1129 = vand.u32 2147483647, %v1120
        %v1130 = vand.u32 2147483647, %v1121
        %v1131 = vand.u32 2147483647, %v1122
        %v1132 = vand.u32 2147483647, %v1123
        %v1133 = vand.u32 2147483647, %v1124
        %v1134 = vand.u32 2147483647, %v1125
        %v1135 = vand.u32 2147483647, %v1126
        %v1136 = vand.u32 2147483647, %v1127
        %v1137 = vstv %s1128
        %v1138 = vmul.f32 %v1137, %v1129
        %v1139 = vmul.f32 %v1137, %v1130
        %v1140 = vmul.f32 %v1137, %v1131
        %v1141 = vmul.f32 %v1137, %v1132
        %v1142 = vmul.f32 %v1137, %v1133
        %v1143 = vmul.f32 %v1137, %v1134
        %v1144 = vmul.f32 %v1137, %v1135
        %v1145 = vmul.f32 %v1137, %v1136
        %v1146 = vadd.f32 %v1079, %v1138
        %v1147 = vadd.f32 %v1080, %v1139
        %v1148 = vadd.f32 %v1081, %v1140
        %v1149 = vadd.f32 %v1082, %v1141
        %v1150 = vadd.f32 %v1083, %v1142
        %v1151 = vadd.f32 %v1084, %v1143
        %v1152 = vadd.f32 %v1085, %v1144
        %v1153 = vadd.f32 %v1086, %v1145
        %1154 = vset.pattern.permute.xlu0 5
        %1155 = vperm.xlu0 %1154, %v402
        %v1156 = vpop.permute.xlu0 %1155
        %1158 = vset.pattern.permute.xlu0 5
        %1159 = vperm.xlu0 %1158, %v405
        %v1160 = vpop.permute.xlu0 %1159
        %1162 = vset.pattern.permute.xlu0 5
        %1163 = vperm.xlu0 %1162, %v408
        %v1164 = vpop.permute.xlu0 %1163
        %1166 = vset.pattern.permute.xlu0 5
        %1167 = vperm.xlu0 %1166, %v411
        %v1168 = vpop.permute.xlu0 %1167
        %1170 = vset.pattern.permute.xlu0 5
        %1171 = vperm.xlu0 %1170, %v414
        %v1172 = vpop.permute.xlu0 %1171
        %1174 = vset.pattern.permute.xlu0 5
        %1175 = vperm.xlu0 %1174, %v417
        %v1176 = vpop.permute.xlu0 %1175
        %1178 = vset.pattern.permute.xlu0 5
        %1179 = vperm.xlu0 %1178, %v420
        %v1180 = vpop.permute.xlu0 %1179
        %1182 = vset.pattern.permute.xlu0 5
        %1183 = vperm.xlu0 %1182, %v423
        %v1184 = vpop.permute.xlu0 %1183
        %v1186 = vperm.slane %v475, 5
        %v1187 = vadd.f32 %v1156, %v1186
        %v1188 = vadd.f32 %v1160, %v1186
        %v1189 = vadd.f32 %v1164, %v1186
        %v1190 = vadd.f32 %v1168, %v1186
        %v1191 = vadd.f32 %v1172, %v1186
        %v1192 = vadd.f32 %v1176, %v1186
        %v1193 = vadd.f32 %v1180, %v1186
        %v1194 = vadd.f32 %v1184, %v1186
        %s1195 = sld [smem:[#allocation2 + $0x81]]
        %v1196 = vand.u32 2147483647, %v1187
        %v1197 = vand.u32 2147483647, %v1188
        %v1198 = vand.u32 2147483647, %v1189
        %v1199 = vand.u32 2147483647, %v1190
        %v1200 = vand.u32 2147483647, %v1191
        %v1201 = vand.u32 2147483647, %v1192
        %v1202 = vand.u32 2147483647, %v1193
        %v1203 = vand.u32 2147483647, %v1194
        %v1204 = vstv %s1195
        %v1205 = vmul.f32 %v1204, %v1196
        %v1206 = vmul.f32 %v1204, %v1197
        %v1207 = vmul.f32 %v1204, %v1198
        %v1208 = vmul.f32 %v1204, %v1199
        %v1209 = vmul.f32 %v1204, %v1200
        %v1210 = vmul.f32 %v1204, %v1201
        %v1211 = vmul.f32 %v1204, %v1202
        %v1212 = vmul.f32 %v1204, %v1203
        %v1213 = vadd.f32 %v1146, %v1205
        %v1214 = vadd.f32 %v1147, %v1206
        %v1215 = vadd.f32 %v1148, %v1207
        %v1216 = vadd.f32 %v1149, %v1208
        %v1217 = vadd.f32 %v1150, %v1209
        %v1218 = vadd.f32 %v1151, %v1210
        %v1219 = vadd.f32 %v1152, %v1211
        %v1220 = vadd.f32 %v1153, %v1212
        %1221 = vset.pattern.permute.xlu0 6
        %1222 = vperm.xlu0 %1221, %v402
        %v1223 = vpop.permute.xlu0 %1222
        %1225 = vset.pattern.permute.xlu0 6
        %1226 = vperm.xlu0 %1225, %v405
        %v1227 = vpop.permute.xlu0 %1226
        %1229 = vset.pattern.permute.xlu0 6
        %1230 = vperm.xlu0 %1229, %v408
        %v1231 = vpop.permute.xlu0 %1230
        %1233 = vset.pattern.permute.xlu0 6
        %1234 = vperm.xlu0 %1233, %v411
        %v1235 = vpop.permute.xlu0 %1234
        %1237 = vset.pattern.permute.xlu0 6
        %1238 = vperm.xlu0 %1237, %v414
        %v1239 = vpop.permute.xlu0 %1238
        %1241 = vset.pattern.permute.xlu0 6
        %1242 = vperm.xlu0 %1241, %v417
        %v1243 = vpop.permute.xlu0 %1242
        %1245 = vset.pattern.permute.xlu0 6
        %1246 = vperm.xlu0 %1245, %v420
        %v1247 = vpop.permute.xlu0 %1246
        %1249 = vset.pattern.permute.xlu0 6
        %1250 = vperm.xlu0 %1249, %v423
        %v1251 = vpop.permute.xlu0 %1250
        %v1253 = vperm.slane %v475, 6
        %v1254 = vadd.f32 %v1223, %v1253
        %v1255 = vadd.f32 %v1227, %v1253
        %v1256 = vadd.f32 %v1231, %v1253
        %v1257 = vadd.f32 %v1235, %v1253
        %v1258 = vadd.f32 %v1239, %v1253
        %v1259 = vadd.f32 %v1243, %v1253
        %v1260 = vadd.f32 %v1247, %v1253
        %v1261 = vadd.f32 %v1251, %v1253
        %s1262 = sld [smem:[#allocation2 + $0x82]]
        %v1263 = vand.u32 2147483647, %v1254
        %v1264 = vand.u32 2147483647, %v1255
        %v1265 = vand.u32 2147483647, %v1256
        %v1266 = vand.u32 2147483647, %v1257
        %v1267 = vand.u32 2147483647, %v1258
        %v1268 = vand.u32 2147483647, %v1259
        %v1269 = vand.u32 2147483647, %v1260
        %v1270 = vand.u32 2147483647, %v1261
        %v1271 = vstv %s1262
        %v1272 = vmul.f32 %v1271, %v1263
        %v1273 = vmul.f32 %v1271, %v1264
        %v1274 = vmul.f32 %v1271, %v1265
        %v1275 = vmul.f32 %v1271, %v1266
        %v1276 = vmul.f32 %v1271, %v1267
        %v1277 = vmul.f32 %v1271, %v1268
        %v1278 = vmul.f32 %v1271, %v1269
        %v1279 = vmul.f32 %v1271, %v1270
        %v1280 = vadd.f32 %v1213, %v1272
        %v1281 = vadd.f32 %v1214, %v1273
        %v1282 = vadd.f32 %v1215, %v1274
        %v1283 = vadd.f32 %v1216, %v1275
        %v1284 = vadd.f32 %v1217, %v1276
        %v1285 = vadd.f32 %v1218, %v1277
        %v1286 = vadd.f32 %v1219, %v1278
        %v1287 = vadd.f32 %v1220, %v1279
        %1288 = vset.pattern.permute.xlu0 7
        %1289 = vperm.xlu0 %1288, %v402
        %v1290 = vpop.permute.xlu0 %1289
        %1292 = vset.pattern.permute.xlu0 7
        %1293 = vperm.xlu0 %1292, %v405
        %v1294 = vpop.permute.xlu0 %1293
        %1296 = vset.pattern.permute.xlu0 7
        %1297 = vperm.xlu0 %1296, %v408
        %v1298 = vpop.permute.xlu0 %1297
        %1300 = vset.pattern.permute.xlu0 7
        %1301 = vperm.xlu0 %1300, %v411
        %v1302 = vpop.permute.xlu0 %1301
        %1304 = vset.pattern.permute.xlu0 7
        %1305 = vperm.xlu0 %1304, %v414
        %v1306 = vpop.permute.xlu0 %1305
        %1308 = vset.pattern.permute.xlu0 7
        %1309 = vperm.xlu0 %1308, %v417
        %v1310 = vpop.permute.xlu0 %1309
        %1312 = vset.pattern.permute.xlu0 7
        %1313 = vperm.xlu0 %1312, %v420
        %v1314 = vpop.permute.xlu0 %1313
        %1316 = vset.pattern.permute.xlu0 7
        %1317 = vperm.xlu0 %1316, %v423
        %v1318 = vpop.permute.xlu0 %1317
        %v1320 = vperm.slane %v475, 7
        %v1321 = vadd.f32 %v1290, %v1320
        %v1322 = vadd.f32 %v1294, %v1320
        %v1323 = vadd.f32 %v1298, %v1320
        %v1324 = vadd.f32 %v1302, %v1320
        %v1325 = vadd.f32 %v1306, %v1320
        %v1326 = vadd.f32 %v1310, %v1320
        %v1327 = vadd.f32 %v1314, %v1320
        %v1328 = vadd.f32 %v1318, %v1320
        %s1329 = sld [smem:[#allocation2 + $0x83]]
        %v1330 = vand.u32 2147483647, %v1321
        %v1331 = vand.u32 2147483647, %v1322
        %v1332 = vand.u32 2147483647, %v1323
        %v1333 = vand.u32 2147483647, %v1324
        %v1334 = vand.u32 2147483647, %v1325
        %v1335 = vand.u32 2147483647, %v1326
        %v1336 = vand.u32 2147483647, %v1327
        %v1337 = vand.u32 2147483647, %v1328
        %v1338 = vstv %s1329
        %v1339 = vmul.f32 %v1338, %v1330
        %v1340 = vmul.f32 %v1338, %v1331
        %v1341 = vmul.f32 %v1338, %v1332
        %v1342 = vmul.f32 %v1338, %v1333
        %v1343 = vmul.f32 %v1338, %v1334
        %v1344 = vmul.f32 %v1338, %v1335
        %v1345 = vmul.f32 %v1338, %v1336
        %v1346 = vmul.f32 %v1338, %v1337
        %v1347 = vadd.f32 %v1280, %v1339
        %v1348 = vadd.f32 %v1281, %v1340
        %v1349 = vadd.f32 %v1282, %v1341
        %v1350 = vadd.f32 %v1283, %v1342
        %v1351 = vadd.f32 %v1284, %v1343
        %v1352 = vadd.f32 %v1285, %v1344
        %v1353 = vadd.f32 %v1286, %v1345
        %v1354 = vadd.f32 %v1287, %v1346
        %1355 = vmax.xlane.f32.xlu0 %v1347
        %v1356 = vpop.xlane.xlu0 %1355
        %1357 = vmax.xlane.f32.xlu0 %v1348
        %v1358 = vpop.xlane.xlu0 %1357
        %1359 = vmax.xlane.f32.xlu0 %v1349
        %v1360 = vpop.xlane.xlu0 %1359
        %1361 = vmax.xlane.f32.xlu0 %v1350
        %v1362 = vpop.xlane.xlu0 %1361
        %1363 = vmax.xlane.f32.xlu0 %v1351
        %v1364 = vpop.xlane.xlu0 %1363
        %1365 = vmax.xlane.f32.xlu0 %v1352
        %v1366 = vpop.xlane.xlu0 %1365
        %1367 = vmax.xlane.f32.xlu0 %v1353
        %v1368 = vpop.xlane.xlu0 %1367
        %1369 = vmax.xlane.f32.xlu0 %v1354
        %v1370 = vpop.xlane.xlu0 %1369
        %v1371 = vsub.f32 %v1347, %v1356
        %v1372 = vsub.f32 %v1348, %v1358
        %v1373 = vsub.f32 %v1349, %v1360
        %v1374 = vsub.f32 %v1350, %v1362
        %v1375 = vsub.f32 %v1351, %v1364
        %v1376 = vsub.f32 %v1352, %v1366
        %v1377 = vsub.f32 %v1353, %v1368
        %v1378 = vsub.f32 %v1354, %v1370
        %v1379 = vmul.f32 %v1371, 1.442695
        %v1380 = vpow.pop %v1379
        %v1381 = vmul.f32 %v1372, 1.442695
        %v1382 = vpow.pop %v1381
        %v1383 = vmul.f32 %v1373, 1.442695
        %v1384 = vpow.pop %v1383
        %v1385 = vmul.f32 %v1374, 1.442695
        %v1386 = vpow.pop %v1385
        %v1387 = vmul.f32 %v1375, 1.442695
        %v1388 = vpow.pop %v1387
        %v1389 = vmul.f32 %v1376, 1.442695
        %v1390 = vpow.pop %v1389
        %v1391 = vmul.f32 %v1377, 1.442695
        %v1392 = vpow.pop %v1391
        %v1393 = vmul.f32 %v1378, 1.442695
        %v1394 = vpow.pop %v1393
        %v1395 = vmul.f32 %v1380, %v451
        %v1396 = vmul.f32 %v1382, %v452
        %v1397 = vmul.f32 %v1384, %v453
        %v1398 = vmul.f32 %v1386, %v454
        %v1399 = vmul.f32 %v1388, %v455
        %v1400 = vmul.f32 %v1390, %v456
        %v1401 = vmul.f32 %v1392, %v457
        %v1402 = vmul.f32 %v1394, %v458
        %1403 = vadd.xlane.f32.xlu0 %v1395
        %v1404 = vpop.xlane.xlu0 %1403
        %1405 = vadd.xlane.f32.xlu0 %v1396
        %v1406 = vpop.xlane.xlu0 %1405
        %1407 = vadd.xlane.f32.xlu0 %v1397
        %v1408 = vpop.xlane.xlu0 %1407
        %1409 = vadd.xlane.f32.xlu0 %v1398
        %v1410 = vpop.xlane.xlu0 %1409
        %1411 = vadd.xlane.f32.xlu0 %v1399
        %v1412 = vpop.xlane.xlu0 %1411
        %1413 = vadd.xlane.f32.xlu0 %v1400
        %v1414 = vpop.xlane.xlu0 %1413
        %1415 = vadd.xlane.f32.xlu0 %v1401
        %v1416 = vpop.xlane.xlu0 %1415
        %1417 = vadd.xlane.f32.xlu0 %v1402
        %v1418 = vpop.xlane.xlu0 %1417
        %v1419 = vmax.f32 %v1404, 1e-16
        %v1420 = vmax.f32 %v1406, 1e-16
        %v1421 = vmax.f32 %v1408, 1e-16
        %v1422 = vmax.f32 %v1410, 1e-16
        %v1423 = vmax.f32 %v1412, 1e-16
        %v1424 = vmax.f32 %v1414, 1e-16
        %v1425 = vmax.f32 %v1416, 1e-16
        %v1426 = vmax.f32 %v1418, 1e-16
        %v1427 = vrcp.pop %v1419
        %v1428 = vmul.f32 %v1419, %v1427
        %v1429 = vsub.f32 1.0, %v1428
        %v1430 = vmul.f32 %v1427, %v1429
        %v1431 = vadd.f32 %v1427, %v1430
        %vm1432 = vweird.f32 %v1419
        %vm1433 = vweird.f32 %v1427
        %vm1434 = vmor %vm1432, %vm1433
        %v1435 = vsel %vm1434, %v1427, %v1431
        %v1436 = vand.u32 2147483647, %v1419
        %vm1437 = vcmp.eq.f32.partialorder %v1436, 8.507059e+37
        %v1438 = vand.u32 %v1419, 2147483648
        %v1439 = vor.u32 1.1754944e-38, %v1438
        %v1440 = vsel %vm1437, %v1439, %v1435
        %v1441 = vrcp.pop %v1420
        %v1442 = vmul.f32 %v1420, %v1441
        %v1443 = vsub.f32 1.0, %v1442
        %v1444 = vmul.f32 %v1441, %v1443
        %v1445 = vadd.f32 %v1441, %v1444
        %vm1446 = vweird.f32 %v1420
        %vm1447 = vweird.f32 %v1441
        %vm1448 = vmor %vm1446, %vm1447
        %v1449 = vsel %vm1448, %v1441, %v1445
        %v1450 = vand.u32 2147483647, %v1420
        %vm1451 = vcmp.eq.f32.partialorder %v1450, 8.507059e+37
        %v1452 = vand.u32 %v1420, 2147483648
        %v1453 = vor.u32 1.1754944e-38, %v1452
        %v1454 = vsel %vm1451, %v1453, %v1449
        %v1455 = vrcp.pop %v1421
        %v1456 = vmul.f32 %v1421, %v1455
        %v1457 = vsub.f32 1.0, %v1456
        %v1458 = vmul.f32 %v1455, %v1457
        %v1459 = vadd.f32 %v1455, %v1458
        %vm1460 = vweird.f32 %v1421
        %vm1461 = vweird.f32 %v1455
        %vm1462 = vmor %vm1460, %vm1461
        %v1463 = vsel %vm1462, %v1455, %v1459
        %v1464 = vand.u32 2147483647, %v1421
        %vm1465 = vcmp.eq.f32.partialorder %v1464, 8.507059e+37
        %v1466 = vand.u32 %v1421, 2147483648
        %v1467 = vor.u32 1.1754944e-38, %v1466
        %v1468 = vsel %vm1465, %v1467, %v1463
        %v1469 = vrcp.pop %v1422
        %v1470 = vmul.f32 %v1422, %v1469
        %v1471 = vsub.f32 1.0, %v1470
        %v1472 = vmul.f32 %v1469, %v1471
        %v1473 = vadd.f32 %v1469, %v1472
        %vm1474 = vweird.f32 %v1422
        %vm1475 = vweird.f32 %v1469
        %vm1476 = vmor %vm1474, %vm1475
        %v1477 = vsel %vm1476, %v1469, %v1473
        %v1478 = vand.u32 2147483647, %v1422
        %vm1479 = vcmp.eq.f32.partialorder %v1478, 8.507059e+37
        %v1480 = vand.u32 %v1422, 2147483648
        %v1481 = vor.u32 1.1754944e-38, %v1480
        %v1482 = vsel %vm1479, %v1481, %v1477
        %v1483 = vrcp.pop %v1423
        %v1484 = vmul.f32 %v1423, %v1483
        %v1485 = vsub.f32 1.0, %v1484
        %v1486 = vmul.f32 %v1483, %v1485
        %v1487 = vadd.f32 %v1483, %v1486
        %vm1488 = vweird.f32 %v1423
        %vm1489 = vweird.f32 %v1483
        %vm1490 = vmor %vm1488, %vm1489
        %v1491 = vsel %vm1490, %v1483, %v1487
        %v1492 = vand.u32 2147483647, %v1423
        %vm1493 = vcmp.eq.f32.partialorder %v1492, 8.507059e+37
        %v1494 = vand.u32 %v1423, 2147483648
        %v1495 = vor.u32 1.1754944e-38, %v1494
        %v1496 = vsel %vm1493, %v1495, %v1491
        %v1497 = vrcp.pop %v1424
        %v1498 = vmul.f32 %v1424, %v1497
        %v1499 = vsub.f32 1.0, %v1498
        %v1500 = vmul.f32 %v1497, %v1499
        %v1501 = vadd.f32 %v1497, %v1500
        %vm1502 = vweird.f32 %v1424
        %vm1503 = vweird.f32 %v1497
        %vm1504 = vmor %vm1502, %vm1503
        %v1505 = vsel %vm1504, %v1497, %v1501
        %v1506 = vand.u32 2147483647, %v1424
        %vm1507 = vcmp.eq.f32.partialorder %v1506, 8.507059e+37
        %v1508 = vand.u32 %v1424, 2147483648
        %v1509 = vor.u32 1.1754944e-38, %v1508
        %v1510 = vsel %vm1507, %v1509, %v1505
        %v1511 = vrcp.pop %v1425
        %v1512 = vmul.f32 %v1425, %v1511
        %v1513 = vsub.f32 1.0, %v1512
        %v1514 = vmul.f32 %v1511, %v1513
        %v1515 = vadd.f32 %v1511, %v1514
        %vm1516 = vweird.f32 %v1425
        %vm1517 = vweird.f32 %v1511
        %vm1518 = vmor %vm1516, %vm1517
        %v1519 = vsel %vm1518, %v1511, %v1515
        %v1520 = vand.u32 2147483647, %v1425
        %vm1521 = vcmp.eq.f32.partialorder %v1520, 8.507059e+37
        %v1522 = vand.u32 %v1425, 2147483648
        %v1523 = vor.u32 1.1754944e-38, %v1522
        %v1524 = vsel %vm1521, %v1523, %v1519
        %v1525 = vrcp.pop %v1426
        %v1526 = vmul.f32 %v1426, %v1525
        %v1527 = vsub.f32 1.0, %v1526
        %v1528 = vmul.f32 %v1525, %v1527
        %v1529 = vadd.f32 %v1525, %v1528
        %vm1530 = vweird.f32 %v1426
        %vm1531 = vweird.f32 %v1525
        %vm1532 = vmor %vm1530, %vm1531
        %v1533 = vsel %vm1532, %v1525, %v1529
        %v1534 = vand.u32 2147483647, %v1426
        %vm1535 = vcmp.eq.f32.partialorder %v1534, 8.507059e+37
        %v1536 = vand.u32 %v1426, 2147483648
        %v1537 = vor.u32 1.1754944e-38, %v1536
        %v1538 = vsel %vm1535, %v1537, %v1533
        %v1539 = vmul.f32 %v1395, %v1440
        %v1540 = vmul.f32 %v1396, %v1454
        %v1541 = vmul.f32 %v1397, %v1468
        %v1542 = vmul.f32 %v1398, %v1482
        %v1543 = vmul.f32 %v1399, %v1496
        %v1544 = vmul.f32 %v1400, %v1510
        %v1545 = vmul.f32 %v1401, %v1524
        %v1546 = vmul.f32 %v1402, %v1538
        %1547 = vmatpush.msra.mxu0 %v440
        %1548 = vmatpush.msra.mxu0 %v439
        %1549 = vmatpush.msra.mxu0 %v438
        %1550 = vmatpush.msra.mxu0 %v437
        %1551 = vmatpush.msra.mxu0 %v436
        %1552 = vmatpush.msra.mxu0 %v435
        %1553 = vmatpush.msra.mxu0 %v434
        %1554 = vmatpush.msra.mxu0 %v433
        %1555 = vmatpush.msra.mxu0 %v432
        %1556 = vmatpush.msra.mxu0 %v431
        %1557 = vmatpush.msra.mxu0 %v430
        %1558 = vmatpush.msra.mxu0 %v429
        %1559 = vmatpush.msra.mxu0 %v428
        %1560 = vmatpush.msra.mxu0 %v427
        %1561 = vmatpush.msra.mxu0 %v426
        %1562 = vmatpush.msra.mxu0 %v425
        %1563 = vmatmul.f32.gmra.mxu0 %v1539
        %v1564 = vpop.f32.mrf.mxu0
        %v1565 = vadd.f32 0.0, %v1564
        %1566 = vmatmul.f32.gmra.mxu0 %v1540
        %v1567 = vpop.f32.mrf.mxu0
        %v1568 = vadd.f32 0.0, %v1567
        %1569 = vmatmul.f32.gmra.mxu0 %v1541
        %v1570 = vpop.f32.mrf.mxu0
        %v1571 = vadd.f32 0.0, %v1570
        %1572 = vmatmul.f32.gmra.mxu0 %v1542
        %v1573 = vpop.f32.mrf.mxu0
        %v1574 = vadd.f32 0.0, %v1573
        %1575 = vmatmul.f32.gmra.mxu0 %v1543
        %v1576 = vpop.f32.mrf.mxu0
        %v1577 = vadd.f32 0.0, %v1576
        %1578 = vmatmul.f32.gmra.mxu0 %v1544
        %v1579 = vpop.f32.mrf.mxu0
        %v1580 = vadd.f32 0.0, %v1579
        %1581 = vmatmul.f32.gmra.mxu0 %v1545
        %v1582 = vpop.f32.mrf.mxu0
        %v1583 = vadd.f32 0.0, %v1582
        %1584 = vmatmul.f32.gmra.mxu0 %v1546
        %v1585 = vpop.f32.mrf.mxu0
        %v1586 = vadd.f32 0.0, %v1585
        %1587 = vdwg.mxu0
        %1588 = vset.pattern.permute.xlu0 66
        %1589 = vperm.xlu0 %1588, %v402
        %v1590 = vpop.permute.xlu0 %1589
        %1592 = vset.pattern.permute.xlu0 66
        %1593 = vperm.xlu0 %1592, %v405
        %v1594 = vpop.permute.xlu0 %1593
        %1596 = vset.pattern.permute.xlu0 66
        %1597 = vperm.xlu0 %1596, %v408
        %v1598 = vpop.permute.xlu0 %1597
        %1600 = vset.pattern.permute.xlu0 66
        %1601 = vperm.xlu0 %1600, %v411
        %v1602 = vpop.permute.xlu0 %1601
        %1604 = vset.pattern.permute.xlu0 66
        %1605 = vperm.xlu0 %1604, %v414
        %v1606 = vpop.permute.xlu0 %1605
        %1608 = vset.pattern.permute.xlu0 66
        %1609 = vperm.xlu0 %1608, %v417
        %v1610 = vpop.permute.xlu0 %1609
        %1612 = vset.pattern.permute.xlu0 66
        %1613 = vperm.xlu0 %1612, %v420
        %v1614 = vpop.permute.xlu0 %1613
        %1616 = vset.pattern.permute.xlu0 66
        %1617 = vperm.xlu0 %1616, %v423
        %v1618 = vpop.permute.xlu0 %1617
        %v1620 = vadd.f32 %v467, %v1590
        %v1621 = vadd.f32 %v468, %v1594
        %v1622 = vadd.f32 %v469, %v1598
        %v1623 = vadd.f32 %v470, %v1602
        %v1624 = vadd.f32 %v471, %v1606
        %v1625 = vadd.f32 %v472, %v1610
        %v1626 = vadd.f32 %v473, %v1614
        %v1627 = vadd.f32 %v474, %v1618
        %v1628 = vperm.slane %v479, 2
        %v1629 = vadd.f32 %v1620, %v1628
        %v1630 = vadd.f32 %v1621, %v1628
        %v1631 = vadd.f32 %v1622, %v1628
        %v1632 = vadd.f32 %v1623, %v1628
        %v1633 = vadd.f32 %v1624, %v1628
        %v1634 = vadd.f32 %v1625, %v1628
        %v1635 = vadd.f32 %v1626, %v1628
        %v1636 = vadd.f32 %v1627, %v1628
        %1637 = vset.pattern.permute.xlu0 8
        %1638 = vperm.xlu0 %1637, %v402
        %v1639 = vpop.permute.xlu0 %1638
        %1641 = vset.pattern.permute.xlu0 8
        %1642 = vperm.xlu0 %1641, %v405
        %v1643 = vpop.permute.xlu0 %1642
        %1645 = vset.pattern.permute.xlu0 8
        %1646 = vperm.xlu0 %1645, %v408
        %v1647 = vpop.permute.xlu0 %1646
        %1649 = vset.pattern.permute.xlu0 8
        %1650 = vperm.xlu0 %1649, %v411
        %v1651 = vpop.permute.xlu0 %1650
        %1653 = vset.pattern.permute.xlu0 8
        %1654 = vperm.xlu0 %1653, %v414
        %v1655 = vpop.permute.xlu0 %1654
        %1657 = vset.pattern.permute.xlu0 8
        %1658 = vperm.xlu0 %1657, %v417
        %v1659 = vpop.permute.xlu0 %1658
        %1661 = vset.pattern.permute.xlu0 8
        %1662 = vperm.xlu0 %1661, %v420
        %v1663 = vpop.permute.xlu0 %1662
        %1665 = vset.pattern.permute.xlu0 8
        %1666 = vperm.xlu0 %1665, %v423
        %v1667 = vpop.permute.xlu0 %1666
        %v1669 = vperm.slane %v476, 0
        %v1670 = vadd.f32 %v1639, %v1669
        %v1671 = vadd.f32 %v1643, %v1669
        %v1672 = vadd.f32 %v1647, %v1669
        %v1673 = vadd.f32 %v1651, %v1669
        %v1674 = vadd.f32 %v1655, %v1669
        %v1675 = vadd.f32 %v1659, %v1669
        %v1676 = vadd.f32 %v1663, %v1669
        %v1677 = vadd.f32 %v1667, %v1669
        %s1678 = sld [smem:[#allocation2 + $0x100]]
        %v1679 = vand.u32 2147483647, %v1670
        %v1680 = vand.u32 2147483647, %v1671
        %v1681 = vand.u32 2147483647, %v1672
        %v1682 = vand.u32 2147483647, %v1673
        %v1683 = vand.u32 2147483647, %v1674
        %v1684 = vand.u32 2147483647, %v1675
        %v1685 = vand.u32 2147483647, %v1676
        %v1686 = vand.u32 2147483647, %v1677
        %v1687 = vstv %s1678
        %v1688 = vmul.f32 %v1687, %v1679
        %v1689 = vmul.f32 %v1687, %v1680
        %v1690 = vmul.f32 %v1687, %v1681
        %v1691 = vmul.f32 %v1687, %v1682
        %v1692 = vmul.f32 %v1687, %v1683
        %v1693 = vmul.f32 %v1687, %v1684
        %v1694 = vmul.f32 %v1687, %v1685
        %v1695 = vmul.f32 %v1687, %v1686
        %v1696 = vadd.f32 %v1629, %v1688
        %v1697 = vadd.f32 %v1630, %v1689
        %v1698 = vadd.f32 %v1631, %v1690
        %v1699 = vadd.f32 %v1632, %v1691
        %v1700 = vadd.f32 %v1633, %v1692
        %v1701 = vadd.f32 %v1634, %v1693
        %v1702 = vadd.f32 %v1635, %v1694
        %v1703 = vadd.f32 %v1636, %v1695
        %1704 = vset.pattern.permute.xlu0 9
        %1705 = vperm.xlu0 %1704, %v402
        %v1706 = vpop.permute.xlu0 %1705
        %1708 = vset.pattern.permute.xlu0 9
        %1709 = vperm.xlu0 %1708, %v405
        %v1710 = vpop.permute.xlu0 %1709
        %1712 = vset.pattern.permute.xlu0 9
        %1713 = vperm.xlu0 %1712, %v408
        %v1714 = vpop.permute.xlu0 %1713
        %1716 = vset.pattern.permute.xlu0 9
        %1717 = vperm.xlu0 %1716, %v411
        %v1718 = vpop.permute.xlu0 %1717
        %1720 = vset.pattern.permute.xlu0 9
        %1721 = vperm.xlu0 %1720, %v414
        %v1722 = vpop.permute.xlu0 %1721
        %1724 = vset.pattern.permute.xlu0 9
        %1725 = vperm.xlu0 %1724, %v417
        %v1726 = vpop.permute.xlu0 %1725
        %1728 = vset.pattern.permute.xlu0 9
        %1729 = vperm.xlu0 %1728, %v420
        %v1730 = vpop.permute.xlu0 %1729
        %1732 = vset.pattern.permute.xlu0 9
        %1733 = vperm.xlu0 %1732, %v423
        %v1734 = vpop.permute.xlu0 %1733
        %v1736 = vperm.slane %v476, 1
        %v1737 = vadd.f32 %v1706, %v1736
        %v1738 = vadd.f32 %v1710, %v1736
        %v1739 = vadd.f32 %v1714, %v1736
        %v1740 = vadd.f32 %v1718, %v1736
        %v1741 = vadd.f32 %v1722, %v1736
        %v1742 = vadd.f32 %v1726, %v1736
        %v1743 = vadd.f32 %v1730, %v1736
        %v1744 = vadd.f32 %v1734, %v1736
        %s1745 = sld [smem:[#allocation2 + $0x101]]
        %v1746 = vand.u32 2147483647, %v1737
        %v1747 = vand.u32 2147483647, %v1738
        %v1748 = vand.u32 2147483647, %v1739
        %v1749 = vand.u32 2147483647, %v1740
        %v1750 = vand.u32 2147483647, %v1741
        %v1751 = vand.u32 2147483647, %v1742
        %v1752 = vand.u32 2147483647, %v1743
        %v1753 = vand.u32 2147483647, %v1744
        %v1754 = vstv %s1745
        %v1755 = vmul.f32 %v1754, %v1746
        %v1756 = vmul.f32 %v1754, %v1747
        %v1757 = vmul.f32 %v1754, %v1748
        %v1758 = vmul.f32 %v1754, %v1749
        %v1759 = vmul.f32 %v1754, %v1750
        %v1760 = vmul.f32 %v1754, %v1751
        %v1761 = vmul.f32 %v1754, %v1752
        %v1762 = vmul.f32 %v1754, %v1753
        %v1763 = vadd.f32 %v1696, %v1755
        %v1764 = vadd.f32 %v1697, %v1756
        %v1765 = vadd.f32 %v1698, %v1757
        %v1766 = vadd.f32 %v1699, %v1758
        %v1767 = vadd.f32 %v1700, %v1759
        %v1768 = vadd.f32 %v1701, %v1760
        %v1769 = vadd.f32 %v1702, %v1761
        %v1770 = vadd.f32 %v1703, %v1762
        %1771 = vset.pattern.permute.xlu0 10
        %1772 = vperm.xlu0 %1771, %v402
        %v1773 = vpop.permute.xlu0 %1772
        %1775 = vset.pattern.permute.xlu0 10
        %1776 = vperm.xlu0 %1775, %v405
        %v1777 = vpop.permute.xlu0 %1776
        %1779 = vset.pattern.permute.xlu0 10
        %1780 = vperm.xlu0 %1779, %v408
        %v1781 = vpop.permute.xlu0 %1780
        %1783 = vset.pattern.permute.xlu0 10
        %1784 = vperm.xlu0 %1783, %v411
        %v1785 = vpop.permute.xlu0 %1784
        %1787 = vset.pattern.permute.xlu0 10
        %1788 = vperm.xlu0 %1787, %v414
        %v1789 = vpop.permute.xlu0 %1788
        %1791 = vset.pattern.permute.xlu0 10
        %1792 = vperm.xlu0 %1791, %v417
        %v1793 = vpop.permute.xlu0 %1792
        %1795 = vset.pattern.permute.xlu0 10
        %1796 = vperm.xlu0 %1795, %v420
        %v1797 = vpop.permute.xlu0 %1796
        %1799 = vset.pattern.permute.xlu0 10
        %1800 = vperm.xlu0 %1799, %v423
        %v1801 = vpop.permute.xlu0 %1800
        %v1803 = vperm.slane %v476, 2
        %v1804 = vadd.f32 %v1773, %v1803
        %v1805 = vadd.f32 %v1777, %v1803
        %v1806 = vadd.f32 %v1781, %v1803
        %v1807 = vadd.f32 %v1785, %v1803
        %v1808 = vadd.f32 %v1789, %v1803
        %v1809 = vadd.f32 %v1793, %v1803
        %v1810 = vadd.f32 %v1797, %v1803
        %v1811 = vadd.f32 %v1801, %v1803
        %s1812 = sld [smem:[#allocation2 + $0x102]]
        %v1813 = vand.u32 2147483647, %v1804
        %v1814 = vand.u32 2147483647, %v1805
        %v1815 = vand.u32 2147483647, %v1806
        %v1816 = vand.u32 2147483647, %v1807
        %v1817 = vand.u32 2147483647, %v1808
        %v1818 = vand.u32 2147483647, %v1809
        %v1819 = vand.u32 2147483647, %v1810
        %v1820 = vand.u32 2147483647, %v1811
        %v1821 = vstv %s1812
        %v1822 = vmul.f32 %v1821, %v1813
        %v1823 = vmul.f32 %v1821, %v1814
        %v1824 = vmul.f32 %v1821, %v1815
        %v1825 = vmul.f32 %v1821, %v1816
        %v1826 = vmul.f32 %v1821, %v1817
        %v1827 = vmul.f32 %v1821, %v1818
        %v1828 = vmul.f32 %v1821, %v1819
        %v1829 = vmul.f32 %v1821, %v1820
        %v1830 = vadd.f32 %v1763, %v1822
        %v1831 = vadd.f32 %v1764, %v1823
        %v1832 = vadd.f32 %v1765, %v1824
        %v1833 = vadd.f32 %v1766, %v1825
        %v1834 = vadd.f32 %v1767, %v1826
        %v1835 = vadd.f32 %v1768, %v1827
        %v1836 = vadd.f32 %v1769, %v1828
        %v1837 = vadd.f32 %v1770, %v1829
        %1838 = vset.pattern.permute.xlu0 11
        %1839 = vperm.xlu0 %1838, %v402
        %v1840 = vpop.permute.xlu0 %1839
        %1842 = vset.pattern.permute.xlu0 11
        %1843 = vperm.xlu0 %1842, %v405
        %v1844 = vpop.permute.xlu0 %1843
        %1846 = vset.pattern.permute.xlu0 11
        %1847 = vperm.xlu0 %1846, %v408
        %v1848 = vpop.permute.xlu0 %1847
        %1850 = vset.pattern.permute.xlu0 11
        %1851 = vperm.xlu0 %1850, %v411
        %v1852 = vpop.permute.xlu0 %1851
        %1854 = vset.pattern.permute.xlu0 11
        %1855 = vperm.xlu0 %1854, %v414
        %v1856 = vpop.permute.xlu0 %1855
        %1858 = vset.pattern.permute.xlu0 11
        %1859 = vperm.xlu0 %1858, %v417
        %v1860 = vpop.permute.xlu0 %1859
        %1862 = vset.pattern.permute.xlu0 11
        %1863 = vperm.xlu0 %1862, %v420
        %v1864 = vpop.permute.xlu0 %1863
        %1866 = vset.pattern.permute.xlu0 11
        %1867 = vperm.xlu0 %1866, %v423
        %v1868 = vpop.permute.xlu0 %1867
        %v1870 = vperm.slane %v476, 3
        %v1871 = vadd.f32 %v1840, %v1870
        %v1872 = vadd.f32 %v1844, %v1870
        %v1873 = vadd.f32 %v1848, %v1870
        %v1874 = vadd.f32 %v1852, %v1870
        %v1875 = vadd.f32 %v1856, %v1870
        %v1876 = vadd.f32 %v1860, %v1870
        %v1877 = vadd.f32 %v1864, %v1870
        %v1878 = vadd.f32 %v1868, %v1870
        %s1879 = sld [smem:[#allocation2 + $0x103]]
        %v1880 = vand.u32 2147483647, %v1871
        %v1881 = vand.u32 2147483647, %v1872
        %v1882 = vand.u32 2147483647, %v1873
        %v1883 = vand.u32 2147483647, %v1874
        %v1884 = vand.u32 2147483647, %v1875
        %v1885 = vand.u32 2147483647, %v1876
        %v1886 = vand.u32 2147483647, %v1877
        %v1887 = vand.u32 2147483647, %v1878
        %v1888 = vstv %s1879
        %v1889 = vmul.f32 %v1888, %v1880
        %v1890 = vmul.f32 %v1888, %v1881
        %v1891 = vmul.f32 %v1888, %v1882
        %v1892 = vmul.f32 %v1888, %v1883
        %v1893 = vmul.f32 %v1888, %v1884
        %v1894 = vmul.f32 %v1888, %v1885
        %v1895 = vmul.f32 %v1888, %v1886
        %v1896 = vmul.f32 %v1888, %v1887
        %v1897 = vadd.f32 %v1830, %v1889
        %v1898 = vadd.f32 %v1831, %v1890
        %v1899 = vadd.f32 %v1832, %v1891
        %v1900 = vadd.f32 %v1833, %v1892
        %v1901 = vadd.f32 %v1834, %v1893
        %v1902 = vadd.f32 %v1835, %v1894
        %v1903 = vadd.f32 %v1836, %v1895
        %v1904 = vadd.f32 %v1837, %v1896
        %1905 = vmax.xlane.f32.xlu0 %v1897
        %v1906 = vpop.xlane.xlu0 %1905
        %1907 = vmax.xlane.f32.xlu0 %v1898
        %v1908 = vpop.xlane.xlu0 %1907
        %1909 = vmax.xlane.f32.xlu0 %v1899
        %v1910 = vpop.xlane.xlu0 %1909
        %1911 = vmax.xlane.f32.xlu0 %v1900
        %v1912 = vpop.xlane.xlu0 %1911
        %1913 = vmax.xlane.f32.xlu0 %v1901
        %v1914 = vpop.xlane.xlu0 %1913
        %1915 = vmax.xlane.f32.xlu0 %v1902
        %v1916 = vpop.xlane.xlu0 %1915
        %1917 = vmax.xlane.f32.xlu0 %v1903
        %v1918 = vpop.xlane.xlu0 %1917
        %1919 = vmax.xlane.f32.xlu0 %v1904
        %v1920 = vpop.xlane.xlu0 %1919
        %v1921 = vsub.f32 %v1897, %v1906
        %v1922 = vsub.f32 %v1898, %v1908
        %v1923 = vsub.f32 %v1899, %v1910
        %v1924 = vsub.f32 %v1900, %v1912
        %v1925 = vsub.f32 %v1901, %v1914
        %v1926 = vsub.f32 %v1902, %v1916
        %v1927 = vsub.f32 %v1903, %v1918
        %v1928 = vsub.f32 %v1904, %v1920
        %v1929 = vmul.f32 %v1921, 1.442695
        %v1930 = vpow.pop %v1929
        %v1931 = vmul.f32 %v1922, 1.442695
        %v1932 = vpow.pop %v1931
        %v1933 = vmul.f32 %v1923, 1.442695
        %v1934 = vpow.pop %v1933
        %v1935 = vmul.f32 %v1924, 1.442695
        %v1936 = vpow.pop %v1935
        %v1937 = vmul.f32 %v1925, 1.442695
        %v1938 = vpow.pop %v1937
        %v1939 = vmul.f32 %v1926, 1.442695
        %v1940 = vpow.pop %v1939
        %v1941 = vmul.f32 %v1927, 1.442695
        %v1942 = vpow.pop %v1941
        %v1943 = vmul.f32 %v1928, 1.442695
        %v1944 = vpow.pop %v1943
        %v1945 = vmul.f32 %v1930, %v451
        %v1946 = vmul.f32 %v1932, %v452
        %v1947 = vmul.f32 %v1934, %v453
        %v1948 = vmul.f32 %v1936, %v454
        %v1949 = vmul.f32 %v1938, %v455
        %v1950 = vmul.f32 %v1940, %v456
        %v1951 = vmul.f32 %v1942, %v457
        %v1952 = vmul.f32 %v1944, %v458
        %1953 = vadd.xlane.f32.xlu0 %v1945
        %v1954 = vpop.xlane.xlu0 %1953
        %1955 = vadd.xlane.f32.xlu0 %v1946
        %v1956 = vpop.xlane.xlu0 %1955
        %1957 = vadd.xlane.f32.xlu0 %v1947
        %v1958 = vpop.xlane.xlu0 %1957
        %1959 = vadd.xlane.f32.xlu0 %v1948
        %v1960 = vpop.xlane.xlu0 %1959
        %1961 = vadd.xlane.f32.xlu0 %v1949
        %v1962 = vpop.xlane.xlu0 %1961
        %1963 = vadd.xlane.f32.xlu0 %v1950
        %v1964 = vpop.xlane.xlu0 %1963
        %1965 = vadd.xlane.f32.xlu0 %v1951
        %v1966 = vpop.xlane.xlu0 %1965
        %1967 = vadd.xlane.f32.xlu0 %v1952
        %v1968 = vpop.xlane.xlu0 %1967
        %v1969 = vmax.f32 %v1954, 1e-16
        %v1970 = vmax.f32 %v1956, 1e-16
        %v1971 = vmax.f32 %v1958, 1e-16
        %v1972 = vmax.f32 %v1960, 1e-16
        %v1973 = vmax.f32 %v1962, 1e-16
        %v1974 = vmax.f32 %v1964, 1e-16
        %v1975 = vmax.f32 %v1966, 1e-16
        %v1976 = vmax.f32 %v1968, 1e-16
        %v1977 = vrcp.pop %v1969
        %v1978 = vmul.f32 %v1969, %v1977
        %v1979 = vsub.f32 1.0, %v1978
        %v1980 = vmul.f32 %v1977, %v1979
        %v1981 = vadd.f32 %v1977, %v1980
        %vm1982 = vweird.f32 %v1969
        %vm1983 = vweird.f32 %v1977
        %vm1984 = vmor %vm1982, %vm1983
        %v1985 = vsel %vm1984, %v1977, %v1981
        %v1986 = vand.u32 2147483647, %v1969
        %vm1987 = vcmp.eq.f32.partialorder %v1986, 8.507059e+37
        %v1988 = vand.u32 %v1969, 2147483648
        %v1989 = vor.u32 1.1754944e-38, %v1988
        %v1990 = vsel %vm1987, %v1989, %v1985
        %v1991 = vrcp.pop %v1970
        %v1992 = vmul.f32 %v1970, %v1991
        %v1993 = vsub.f32 1.0, %v1992
        %v1994 = vmul.f32 %v1991, %v1993
        %v1995 = vadd.f32 %v1991, %v1994
        %vm1996 = vweird.f32 %v1970
        %vm1997 = vweird.f32 %v1991
        %vm1998 = vmor %vm1996, %vm1997
        %v1999 = vsel %vm1998, %v1991, %v1995
        %v2000 = vand.u32 2147483647, %v1970
        %vm2001 = vcmp.eq.f32.partialorder %v2000, 8.507059e+37
        %v2002 = vand.u32 %v1970, 2147483648
        %v2003 = vor.u32 1.1754944e-38, %v2002
        %v2004 = vsel %vm2001, %v2003, %v1999
        %v2005 = vrcp.pop %v1971
        %v2006 = vmul.f32 %v1971, %v2005
        %v2007 = vsub.f32 1.0, %v2006
        %v2008 = vmul.f32 %v2005, %v2007
        %v2009 = vadd.f32 %v2005, %v2008
        %vm2010 = vweird.f32 %v1971
        %vm2011 = vweird.f32 %v2005
        %vm2012 = vmor %vm2010, %vm2011
        %v2013 = vsel %vm2012, %v2005, %v2009
        %v2014 = vand.u32 2147483647, %v1971
        %vm2015 = vcmp.eq.f32.partialorder %v2014, 8.507059e+37
        %v2016 = vand.u32 %v1971, 2147483648
        %v2017 = vor.u32 1.1754944e-38, %v2016
        %v2018 = vsel %vm2015, %v2017, %v2013
        %v2019 = vrcp.pop %v1972
        %v2020 = vmul.f32 %v1972, %v2019
        %v2021 = vsub.f32 1.0, %v2020
        %v2022 = vmul.f32 %v2019, %v2021
        %v2023 = vadd.f32 %v2019, %v2022
        %vm2024 = vweird.f32 %v1972
        %vm2025 = vweird.f32 %v2019
        %vm2026 = vmor %vm2024, %vm2025
        %v2027 = vsel %vm2026, %v2019, %v2023
        %v2028 = vand.u32 2147483647, %v1972
        %vm2029 = vcmp.eq.f32.partialorder %v2028, 8.507059e+37
        %v2030 = vand.u32 %v1972, 2147483648
        %v2031 = vor.u32 1.1754944e-38, %v2030
        %v2032 = vsel %vm2029, %v2031, %v2027
        %v2033 = vrcp.pop %v1973
        %v2034 = vmul.f32 %v1973, %v2033
        %v2035 = vsub.f32 1.0, %v2034
        %v2036 = vmul.f32 %v2033, %v2035
        %v2037 = vadd.f32 %v2033, %v2036
        %vm2038 = vweird.f32 %v1973
        %vm2039 = vweird.f32 %v2033
        %vm2040 = vmor %vm2038, %vm2039
        %v2041 = vsel %vm2040, %v2033, %v2037
        %v2042 = vand.u32 2147483647, %v1973
        %vm2043 = vcmp.eq.f32.partialorder %v2042, 8.507059e+37
        %v2044 = vand.u32 %v1973, 2147483648
        %v2045 = vor.u32 1.1754944e-38, %v2044
        %v2046 = vsel %vm2043, %v2045, %v2041
        %v2047 = vrcp.pop %v1974
        %v2048 = vmul.f32 %v1974, %v2047
        %v2049 = vsub.f32 1.0, %v2048
        %v2050 = vmul.f32 %v2047, %v2049
        %v2051 = vadd.f32 %v2047, %v2050
        %vm2052 = vweird.f32 %v1974
        %vm2053 = vweird.f32 %v2047
        %vm2054 = vmor %vm2052, %vm2053
        %v2055 = vsel %vm2054, %v2047, %v2051
        %v2056 = vand.u32 2147483647, %v1974
        %vm2057 = vcmp.eq.f32.partialorder %v2056, 8.507059e+37
        %v2058 = vand.u32 %v1974, 2147483648
        %v2059 = vor.u32 1.1754944e-38, %v2058
        %v2060 = vsel %vm2057, %v2059, %v2055
        %v2061 = vrcp.pop %v1975
        %v2062 = vmul.f32 %v1975, %v2061
        %v2063 = vsub.f32 1.0, %v2062
        %v2064 = vmul.f32 %v2061, %v2063
        %v2065 = vadd.f32 %v2061, %v2064
        %vm2066 = vweird.f32 %v1975
        %vm2067 = vweird.f32 %v2061
        %vm2068 = vmor %vm2066, %vm2067
        %v2069 = vsel %vm2068, %v2061, %v2065
        %v2070 = vand.u32 2147483647, %v1975
        %vm2071 = vcmp.eq.f32.partialorder %v2070, 8.507059e+37
        %v2072 = vand.u32 %v1975, 2147483648
        %v2073 = vor.u32 1.1754944e-38, %v2072
        %v2074 = vsel %vm2071, %v2073, %v2069
        %v2075 = vrcp.pop %v1976
        %v2076 = vmul.f32 %v1976, %v2075
        %v2077 = vsub.f32 1.0, %v2076
        %v2078 = vmul.f32 %v2075, %v2077
        %v2079 = vadd.f32 %v2075, %v2078
        %vm2080 = vweird.f32 %v1976
        %vm2081 = vweird.f32 %v2075
        %vm2082 = vmor %vm2080, %vm2081
        %v2083 = vsel %vm2082, %v2075, %v2079
        %v2084 = vand.u32 2147483647, %v1976
        %vm2085 = vcmp.eq.f32.partialorder %v2084, 8.507059e+37
        %v2086 = vand.u32 %v1976, 2147483648
        %v2087 = vor.u32 1.1754944e-38, %v2086
        %v2088 = vsel %vm2085, %v2087, %v2083
        %v2089 = vmul.f32 %v1945, %v1990
        %v2090 = vmul.f32 %v1946, %v2004
        %v2091 = vmul.f32 %v1947, %v2018
        %v2092 = vmul.f32 %v1948, %v2032
        %v2093 = vmul.f32 %v1949, %v2046
        %v2094 = vmul.f32 %v1950, %v2060
        %v2095 = vmul.f32 %v1951, %v2074
        %v2096 = vmul.f32 %v1952, %v2088
        %2097 = vmatpush.msra.mxu0 %v440
        %2098 = vmatpush.msra.mxu0 %v439
        %2099 = vmatpush.msra.mxu0 %v438
        %2100 = vmatpush.msra.mxu0 %v437
        %2101 = vmatpush.msra.mxu0 %v436
        %2102 = vmatpush.msra.mxu0 %v435
        %2103 = vmatpush.msra.mxu0 %v434
        %2104 = vmatpush.msra.mxu0 %v433
        %2105 = vmatpush.msra.mxu0 %v432
        %2106 = vmatpush.msra.mxu0 %v431
        %2107 = vmatpush.msra.mxu0 %v430
        %2108 = vmatpush.msra.mxu0 %v429
        %2109 = vmatpush.msra.mxu0 %v428
        %2110 = vmatpush.msra.mxu0 %v427
        %2111 = vmatpush.msra.mxu0 %v426
        %2112 = vmatpush.msra.mxu0 %v425
        %2113 = vmatmul.f32.gmra.mxu0 %v2089
        %v2114 = vpop.f32.mrf.mxu0
        %v2115 = vadd.f32 0.0, %v2114
        %2116 = vmatmul.f32.gmra.mxu0 %v2090
        %v2117 = vpop.f32.mrf.mxu0
        %v2118 = vadd.f32 0.0, %v2117
        %2119 = vmatmul.f32.gmra.mxu0 %v2091
        %v2120 = vpop.f32.mrf.mxu0
        %v2121 = vadd.f32 0.0, %v2120
        %2122 = vmatmul.f32.gmra.mxu0 %v2092
        %v2123 = vpop.f32.mrf.mxu0
        %v2124 = vadd.f32 0.0, %v2123
        %2125 = vmatmul.f32.gmra.mxu0 %v2093
        %v2126 = vpop.f32.mrf.mxu0
        %v2127 = vadd.f32 0.0, %v2126
        %2128 = vmatmul.f32.gmra.mxu0 %v2094
        %v2129 = vpop.f32.mrf.mxu0
        %v2130 = vadd.f32 0.0, %v2129
        %2131 = vmatmul.f32.gmra.mxu0 %v2095
        %v2132 = vpop.f32.mrf.mxu0
        %v2133 = vadd.f32 0.0, %v2132
        %2134 = vmatmul.f32.gmra.mxu0 %v2096
        %v2135 = vpop.f32.mrf.mxu0
        %v2136 = vadd.f32 0.0, %v2135
        %2137 = vdwg.mxu0
        %2138 = vset.pattern.permute.xlu0 67
        %2139 = vperm.xlu0 %2138, %v402
        %v2140 = vpop.permute.xlu0 %2139
        %2142 = vset.pattern.permute.xlu0 67
        %2143 = vperm.xlu0 %2142, %v405
        %v2144 = vpop.permute.xlu0 %2143
        %2146 = vset.pattern.permute.xlu0 67
        %2147 = vperm.xlu0 %2146, %v408
        %v2148 = vpop.permute.xlu0 %2147
        %2150 = vset.pattern.permute.xlu0 67
        %2151 = vperm.xlu0 %2150, %v411
        %v2152 = vpop.permute.xlu0 %2151
        %2154 = vset.pattern.permute.xlu0 67
        %2155 = vperm.xlu0 %2154, %v414
        %v2156 = vpop.permute.xlu0 %2155
        %2158 = vset.pattern.permute.xlu0 67
        %2159 = vperm.xlu0 %2158, %v417
        %v2160 = vpop.permute.xlu0 %2159
        %2162 = vset.pattern.permute.xlu0 67
        %2163 = vperm.xlu0 %2162, %v420
        %v2164 = vpop.permute.xlu0 %2163
        %2166 = vset.pattern.permute.xlu0 67
        %2167 = vperm.xlu0 %2166, %v423
        %v2168 = vpop.permute.xlu0 %2167
        %v2170 = vadd.f32 %v467, %v2140
        %v2171 = vadd.f32 %v468, %v2144
        %v2172 = vadd.f32 %v469, %v2148
        %v2173 = vadd.f32 %v470, %v2152
        %v2174 = vadd.f32 %v471, %v2156
        %v2175 = vadd.f32 %v472, %v2160
        %v2176 = vadd.f32 %v473, %v2164
        %v2177 = vadd.f32 %v474, %v2168
        %v2178 = vperm.slane %v479, 3
        %v2179 = vadd.f32 %v2170, %v2178
        %v2180 = vadd.f32 %v2171, %v2178
        %v2181 = vadd.f32 %v2172, %v2178
        %v2182 = vadd.f32 %v2173, %v2178
        %v2183 = vadd.f32 %v2174, %v2178
        %v2184 = vadd.f32 %v2175, %v2178
        %v2185 = vadd.f32 %v2176, %v2178
        %v2186 = vadd.f32 %v2177, %v2178
        %2187 = vset.pattern.permute.xlu0 12
        %2188 = vperm.xlu0 %2187, %v402
        %v2189 = vpop.permute.xlu0 %2188
        %2191 = vset.pattern.permute.xlu0 12
        %2192 = vperm.xlu0 %2191, %v405
        %v2193 = vpop.permute.xlu0 %2192
        %2195 = vset.pattern.permute.xlu0 12
        %2196 = vperm.xlu0 %2195, %v408
        %v2197 = vpop.permute.xlu0 %2196
        %2199 = vset.pattern.permute.xlu0 12
        %2200 = vperm.xlu0 %2199, %v411
        %v2201 = vpop.permute.xlu0 %2200
        %2203 = vset.pattern.permute.xlu0 12
        %2204 = vperm.xlu0 %2203, %v414
        %v2205 = vpop.permute.xlu0 %2204
        %2207 = vset.pattern.permute.xlu0 12
        %2208 = vperm.xlu0 %2207, %v417
        %v2209 = vpop.permute.xlu0 %2208
        %2211 = vset.pattern.permute.xlu0 12
        %2212 = vperm.xlu0 %2211, %v420
        %v2213 = vpop.permute.xlu0 %2212
        %2215 = vset.pattern.permute.xlu0 12
        %2216 = vperm.xlu0 %2215, %v423
        %v2217 = vpop.permute.xlu0 %2216
        %v2219 = vperm.slane %v476, 4
        %v2220 = vadd.f32 %v2189, %v2219
        %v2221 = vadd.f32 %v2193, %v2219
        %v2222 = vadd.f32 %v2197, %v2219
        %v2223 = vadd.f32 %v2201, %v2219
        %v2224 = vadd.f32 %v2205, %v2219
        %v2225 = vadd.f32 %v2209, %v2219
        %v2226 = vadd.f32 %v2213, %v2219
        %v2227 = vadd.f32 %v2217, %v2219
        %s2228 = sld [smem:[#allocation2 + $0x180]]
        %v2229 = vand.u32 2147483647, %v2220
        %v2230 = vand.u32 2147483647, %v2221
        %v2231 = vand.u32 2147483647, %v2222
        %v2232 = vand.u32 2147483647, %v2223
        %v2233 = vand.u32 2147483647, %v2224
        %v2234 = vand.u32 2147483647, %v2225
        %v2235 = vand.u32 2147483647, %v2226
        %v2236 = vand.u32 2147483647, %v2227
        %v2237 = vstv %s2228
        %v2238 = vmul.f32 %v2237, %v2229
        %v2239 = vmul.f32 %v2237, %v2230
        %v2240 = vmul.f32 %v2237, %v2231
        %v2241 = vmul.f32 %v2237, %v2232
        %v2242 = vmul.f32 %v2237, %v2233
        %v2243 = vmul.f32 %v2237, %v2234
        %v2244 = vmul.f32 %v2237, %v2235
        %v2245 = vmul.f32 %v2237, %v2236
        %v2246 = vadd.f32 %v2179, %v2238
        %v2247 = vadd.f32 %v2180, %v2239
        %v2248 = vadd.f32 %v2181, %v2240
        %v2249 = vadd.f32 %v2182, %v2241
        %v2250 = vadd.f32 %v2183, %v2242
        %v2251 = vadd.f32 %v2184, %v2243
        %v2252 = vadd.f32 %v2185, %v2244
        %v2253 = vadd.f32 %v2186, %v2245
        %2254 = vset.pattern.permute.xlu0 13
        %2255 = vperm.xlu0 %2254, %v402
        %v2256 = vpop.permute.xlu0 %2255
        %2258 = vset.pattern.permute.xlu0 13
        %2259 = vperm.xlu0 %2258, %v405
        %v2260 = vpop.permute.xlu0 %2259
        %2262 = vset.pattern.permute.xlu0 13
        %2263 = vperm.xlu0 %2262, %v408
        %v2264 = vpop.permute.xlu0 %2263
        %2266 = vset.pattern.permute.xlu0 13
        %2267 = vperm.xlu0 %2266, %v411
        %v2268 = vpop.permute.xlu0 %2267
        %2270 = vset.pattern.permute.xlu0 13
        %2271 = vperm.xlu0 %2270, %v414
        %v2272 = vpop.permute.xlu0 %2271
        %2274 = vset.pattern.permute.xlu0 13
        %2275 = vperm.xlu0 %2274, %v417
        %v2276 = vpop.permute.xlu0 %2275
        %2278 = vset.pattern.permute.xlu0 13
        %2279 = vperm.xlu0 %2278, %v420
        %v2280 = vpop.permute.xlu0 %2279
        %2282 = vset.pattern.permute.xlu0 13
        %2283 = vperm.xlu0 %2282, %v423
        %v2284 = vpop.permute.xlu0 %2283
        %v2286 = vperm.slane %v476, 5
        %v2287 = vadd.f32 %v2256, %v2286
        %v2288 = vadd.f32 %v2260, %v2286
        %v2289 = vadd.f32 %v2264, %v2286
        %v2290 = vadd.f32 %v2268, %v2286
        %v2291 = vadd.f32 %v2272, %v2286
        %v2292 = vadd.f32 %v2276, %v2286
        %v2293 = vadd.f32 %v2280, %v2286
        %v2294 = vadd.f32 %v2284, %v2286
        %s2295 = sld [smem:[#allocation2 + $0x181]]
        %v2296 = vand.u32 2147483647, %v2287
        %v2297 = vand.u32 2147483647, %v2288
        %v2298 = vand.u32 2147483647, %v2289
        %v2299 = vand.u32 2147483647, %v2290
        %v2300 = vand.u32 2147483647, %v2291
        %v2301 = vand.u32 2147483647, %v2292
        %v2302 = vand.u32 2147483647, %v2293
        %v2303 = vand.u32 2147483647, %v2294
        %v2304 = vstv %s2295
        %v2305 = vmul.f32 %v2304, %v2296
        %v2306 = vmul.f32 %v2304, %v2297
        %v2307 = vmul.f32 %v2304, %v2298
        %v2308 = vmul.f32 %v2304, %v2299
        %v2309 = vmul.f32 %v2304, %v2300
        %v2310 = vmul.f32 %v2304, %v2301
        %v2311 = vmul.f32 %v2304, %v2302
        %v2312 = vmul.f32 %v2304, %v2303
        %v2313 = vadd.f32 %v2246, %v2305
        %v2314 = vadd.f32 %v2247, %v2306
        %v2315 = vadd.f32 %v2248, %v2307
        %v2316 = vadd.f32 %v2249, %v2308
        %v2317 = vadd.f32 %v2250, %v2309
        %v2318 = vadd.f32 %v2251, %v2310
        %v2319 = vadd.f32 %v2252, %v2311
        %v2320 = vadd.f32 %v2253, %v2312
        %2321 = vset.pattern.permute.xlu0 14
        %2322 = vperm.xlu0 %2321, %v402
        %v2323 = vpop.permute.xlu0 %2322
        %2325 = vset.pattern.permute.xlu0 14
        %2326 = vperm.xlu0 %2325, %v405
        %v2327 = vpop.permute.xlu0 %2326
        %2329 = vset.pattern.permute.xlu0 14
        %2330 = vperm.xlu0 %2329, %v408
        %v2331 = vpop.permute.xlu0 %2330
        %2333 = vset.pattern.permute.xlu0 14
        %2334 = vperm.xlu0 %2333, %v411
        %v2335 = vpop.permute.xlu0 %2334
        %2337 = vset.pattern.permute.xlu0 14
        %2338 = vperm.xlu0 %2337, %v414
        %v2339 = vpop.permute.xlu0 %2338
        %2341 = vset.pattern.permute.xlu0 14
        %2342 = vperm.xlu0 %2341, %v417
        %v2343 = vpop.permute.xlu0 %2342
        %2345 = vset.pattern.permute.xlu0 14
        %2346 = vperm.xlu0 %2345, %v420
        %v2347 = vpop.permute.xlu0 %2346
        %2349 = vset.pattern.permute.xlu0 14
        %2350 = vperm.xlu0 %2349, %v423
        %v2351 = vpop.permute.xlu0 %2350
        %v2353 = vperm.slane %v476, 6
        %v2354 = vadd.f32 %v2323, %v2353
        %v2355 = vadd.f32 %v2327, %v2353
        %v2356 = vadd.f32 %v2331, %v2353
        %v2357 = vadd.f32 %v2335, %v2353
        %v2358 = vadd.f32 %v2339, %v2353
        %v2359 = vadd.f32 %v2343, %v2353
        %v2360 = vadd.f32 %v2347, %v2353
        %v2361 = vadd.f32 %v2351, %v2353
        %s2362 = sld [smem:[#allocation2 + $0x182]]
        %v2363 = vand.u32 2147483647, %v2354
        %v2364 = vand.u32 2147483647, %v2355
        %v2365 = vand.u32 2147483647, %v2356
        %v2366 = vand.u32 2147483647, %v2357
        %v2367 = vand.u32 2147483647, %v2358
        %v2368 = vand.u32 2147483647, %v2359
        %v2369 = vand.u32 2147483647, %v2360
        %v2370 = vand.u32 2147483647, %v2361
        %v2371 = vstv %s2362
        %v2372 = vmul.f32 %v2371, %v2363
        %v2373 = vmul.f32 %v2371, %v2364
        %v2374 = vmul.f32 %v2371, %v2365
        %v2375 = vmul.f32 %v2371, %v2366
        %v2376 = vmul.f32 %v2371, %v2367
        %v2377 = vmul.f32 %v2371, %v2368
        %v2378 = vmul.f32 %v2371, %v2369
        %v2379 = vmul.f32 %v2371, %v2370
        %v2380 = vadd.f32 %v2313, %v2372
        %v2381 = vadd.f32 %v2314, %v2373
        %v2382 = vadd.f32 %v2315, %v2374
        %v2383 = vadd.f32 %v2316, %v2375
        %v2384 = vadd.f32 %v2317, %v2376
        %v2385 = vadd.f32 %v2318, %v2377
        %v2386 = vadd.f32 %v2319, %v2378
        %v2387 = vadd.f32 %v2320, %v2379
        %2388 = vset.pattern.permute.xlu0 15
        %2389 = vperm.xlu0 %2388, %v402
        %v2390 = vpop.permute.xlu0 %2389
        %2392 = vset.pattern.permute.xlu0 15
        %2393 = vperm.xlu0 %2392, %v405
        %v2394 = vpop.permute.xlu0 %2393
        %2396 = vset.pattern.permute.xlu0 15
        %2397 = vperm.xlu0 %2396, %v408
        %v2398 = vpop.permute.xlu0 %2397
        %2400 = vset.pattern.permute.xlu0 15
        %2401 = vperm.xlu0 %2400, %v411
        %v2402 = vpop.permute.xlu0 %2401
        %2404 = vset.pattern.permute.xlu0 15
        %2405 = vperm.xlu0 %2404, %v414
        %v2406 = vpop.permute.xlu0 %2405
        %2408 = vset.pattern.permute.xlu0 15
        %2409 = vperm.xlu0 %2408, %v417
        %v2410 = vpop.permute.xlu0 %2409
        %2412 = vset.pattern.permute.xlu0 15
        %2413 = vperm.xlu0 %2412, %v420
        %v2414 = vpop.permute.xlu0 %2413
        %2416 = vset.pattern.permute.xlu0 15
        %2417 = vperm.xlu0 %2416, %v423
        %v2418 = vpop.permute.xlu0 %2417
        %v2420 = vperm.slane %v476, 7
        %v2421 = vadd.f32 %v2390, %v2420
        %v2422 = vadd.f32 %v2394, %v2420
        %v2423 = vadd.f32 %v2398, %v2420
        %v2424 = vadd.f32 %v2402, %v2420
        %v2425 = vadd.f32 %v2406, %v2420
        %v2426 = vadd.f32 %v2410, %v2420
        %v2427 = vadd.f32 %v2414, %v2420
        %v2428 = vadd.f32 %v2418, %v2420
        %s2429 = sld [smem:[#allocation2 + $0x183]]
        %v2430 = vand.u32 2147483647, %v2421
        %v2431 = vand.u32 2147483647, %v2422
        %v2432 = vand.u32 2147483647, %v2423
        %v2433 = vand.u32 2147483647, %v2424
        %v2434 = vand.u32 2147483647, %v2425
        %v2435 = vand.u32 2147483647, %v2426
        %v2436 = vand.u32 2147483647, %v2427
        %v2437 = vand.u32 2147483647, %v2428
        %v2438 = vstv %s2429
        %v2439 = vmul.f32 %v2438, %v2430
        %v2440 = vmul.f32 %v2438, %v2431
        %v2441 = vmul.f32 %v2438, %v2432
        %v2442 = vmul.f32 %v2438, %v2433
        %v2443 = vmul.f32 %v2438, %v2434
        %v2444 = vmul.f32 %v2438, %v2435
        %v2445 = vmul.f32 %v2438, %v2436
        %v2446 = vmul.f32 %v2438, %v2437
        %v2447 = vadd.f32 %v2380, %v2439
        %v2448 = vadd.f32 %v2381, %v2440
        %v2449 = vadd.f32 %v2382, %v2441
        %v2450 = vadd.f32 %v2383, %v2442
        %v2451 = vadd.f32 %v2384, %v2443
        %v2452 = vadd.f32 %v2385, %v2444
        %v2453 = vadd.f32 %v2386, %v2445
        %v2454 = vadd.f32 %v2387, %v2446
        %2455 = vmax.xlane.f32.xlu0 %v2447
        %v2456 = vpop.xlane.xlu0 %2455
        %2457 = vmax.xlane.f32.xlu0 %v2448
        %v2458 = vpop.xlane.xlu0 %2457
        %2459 = vmax.xlane.f32.xlu0 %v2449
        %v2460 = vpop.xlane.xlu0 %2459
        %2461 = vmax.xlane.f32.xlu0 %v2450
        %v2462 = vpop.xlane.xlu0 %2461
        %2463 = vmax.xlane.f32.xlu0 %v2451
        %v2464 = vpop.xlane.xlu0 %2463
        %2465 = vmax.xlane.f32.xlu0 %v2452
        %v2466 = vpop.xlane.xlu0 %2465
        %2467 = vmax.xlane.f32.xlu0 %v2453
        %v2468 = vpop.xlane.xlu0 %2467
        %2469 = vmax.xlane.f32.xlu0 %v2454
        %v2470 = vpop.xlane.xlu0 %2469
        %v2471 = vsub.f32 %v2447, %v2456
        %v2472 = vsub.f32 %v2448, %v2458
        %v2473 = vsub.f32 %v2449, %v2460
        %v2474 = vsub.f32 %v2450, %v2462
        %v2475 = vsub.f32 %v2451, %v2464
        %v2476 = vsub.f32 %v2452, %v2466
        %v2477 = vsub.f32 %v2453, %v2468
        %v2478 = vsub.f32 %v2454, %v2470
        %v2479 = vmul.f32 %v2471, 1.442695
        %v2480 = vpow.pop %v2479
        %v2481 = vmul.f32 %v2472, 1.442695
        %v2482 = vpow.pop %v2481
        %v2483 = vmul.f32 %v2473, 1.442695
        %v2484 = vpow.pop %v2483
        %v2485 = vmul.f32 %v2474, 1.442695
        %v2486 = vpow.pop %v2485
        %v2487 = vmul.f32 %v2475, 1.442695
        %v2488 = vpow.pop %v2487
        %v2489 = vmul.f32 %v2476, 1.442695
        %v2490 = vpow.pop %v2489
        %v2491 = vmul.f32 %v2477, 1.442695
        %v2492 = vpow.pop %v2491
        %v2493 = vmul.f32 %v2478, 1.442695
        %v2494 = vpow.pop %v2493
        %v2495 = vmul.f32 %v2480, %v451
        %v2496 = vmul.f32 %v2482, %v452
        %v2497 = vmul.f32 %v2484, %v453
        %v2498 = vmul.f32 %v2486, %v454
        %v2499 = vmul.f32 %v2488, %v455
        %v2500 = vmul.f32 %v2490, %v456
        %v2501 = vmul.f32 %v2492, %v457
        %v2502 = vmul.f32 %v2494, %v458
        %2503 = vadd.xlane.f32.xlu0 %v2495
        %v2504 = vpop.xlane.xlu0 %2503
        %2505 = vadd.xlane.f32.xlu0 %v2496
        %v2506 = vpop.xlane.xlu0 %2505
        %2507 = vadd.xlane.f32.xlu0 %v2497
        %v2508 = vpop.xlane.xlu0 %2507
        %2509 = vadd.xlane.f32.xlu0 %v2498
        %v2510 = vpop.xlane.xlu0 %2509
        %2511 = vadd.xlane.f32.xlu0 %v2499
        %v2512 = vpop.xlane.xlu0 %2511
        %2513 = vadd.xlane.f32.xlu0 %v2500
        %v2514 = vpop.xlane.xlu0 %2513
        %2515 = vadd.xlane.f32.xlu0 %v2501
        %v2516 = vpop.xlane.xlu0 %2515
        %2517 = vadd.xlane.f32.xlu0 %v2502
        %v2518 = vpop.xlane.xlu0 %2517
        %v2519 = vmax.f32 %v2504, 1e-16
        %v2520 = vmax.f32 %v2506, 1e-16
        %v2521 = vmax.f32 %v2508, 1e-16
        %v2522 = vmax.f32 %v2510, 1e-16
        %v2523 = vmax.f32 %v2512, 1e-16
        %v2524 = vmax.f32 %v2514, 1e-16
        %v2525 = vmax.f32 %v2516, 1e-16
        %v2526 = vmax.f32 %v2518, 1e-16
        %v2527 = vrcp.pop %v2519
        %v2528 = vmul.f32 %v2519, %v2527
        %v2529 = vsub.f32 1.0, %v2528
        %v2530 = vmul.f32 %v2527, %v2529
        %v2531 = vadd.f32 %v2527, %v2530
        %vm2532 = vweird.f32 %v2519
        %vm2533 = vweird.f32 %v2527
        %vm2534 = vmor %vm2532, %vm2533
        %v2535 = vsel %vm2534, %v2527, %v2531
        %v2536 = vand.u32 2147483647, %v2519
        %vm2537 = vcmp.eq.f32.partialorder %v2536, 8.507059e+37
        %v2538 = vand.u32 %v2519, 2147483648
        %v2539 = vor.u32 1.1754944e-38, %v2538
        %v2540 = vsel %vm2537, %v2539, %v2535
        %v2541 = vrcp.pop %v2520
        %v2542 = vmul.f32 %v2520, %v2541
        %v2543 = vsub.f32 1.0, %v2542
        %v2544 = vmul.f32 %v2541, %v2543
        %v2545 = vadd.f32 %v2541, %v2544
        %vm2546 = vweird.f32 %v2520
        %vm2547 = vweird.f32 %v2541
        %vm2548 = vmor %vm2546, %vm2547
        %v2549 = vsel %vm2548, %v2541, %v2545
        %v2550 = vand.u32 2147483647, %v2520
        %vm2551 = vcmp.eq.f32.partialorder %v2550, 8.507059e+37
        %v2552 = vand.u32 %v2520, 2147483648
        %v2553 = vor.u32 1.1754944e-38, %v2552
        %v2554 = vsel %vm2551, %v2553, %v2549
        %v2555 = vrcp.pop %v2521
        %v2556 = vmul.f32 %v2521, %v2555
        %v2557 = vsub.f32 1.0, %v2556
        %v2558 = vmul.f32 %v2555, %v2557
        %v2559 = vadd.f32 %v2555, %v2558
        %vm2560 = vweird.f32 %v2521
        %vm2561 = vweird.f32 %v2555
        %vm2562 = vmor %vm2560, %vm2561
        %v2563 = vsel %vm2562, %v2555, %v2559
        %v2564 = vand.u32 2147483647, %v2521
        %vm2565 = vcmp.eq.f32.partialorder %v2564, 8.507059e+37
        %v2566 = vand.u32 %v2521, 2147483648
        %v2567 = vor.u32 1.1754944e-38, %v2566
        %v2568 = vsel %vm2565, %v2567, %v2563
        %v2569 = vrcp.pop %v2522
        %v2570 = vmul.f32 %v2522, %v2569
        %v2571 = vsub.f32 1.0, %v2570
        %v2572 = vmul.f32 %v2569, %v2571
        %v2573 = vadd.f32 %v2569, %v2572
        %vm2574 = vweird.f32 %v2522
        %vm2575 = vweird.f32 %v2569
        %vm2576 = vmor %vm2574, %vm2575
        %v2577 = vsel %vm2576, %v2569, %v2573
        %v2578 = vand.u32 2147483647, %v2522
        %vm2579 = vcmp.eq.f32.partialorder %v2578, 8.507059e+37
        %v2580 = vand.u32 %v2522, 2147483648
        %v2581 = vor.u32 1.1754944e-38, %v2580
        %v2582 = vsel %vm2579, %v2581, %v2577
        %v2583 = vrcp.pop %v2523
        %v2584 = vmul.f32 %v2523, %v2583
        %v2585 = vsub.f32 1.0, %v2584
        %v2586 = vmul.f32 %v2583, %v2585
        %v2587 = vadd.f32 %v2583, %v2586
        %vm2588 = vweird.f32 %v2523
        %vm2589 = vweird.f32 %v2583
        %vm2590 = vmor %vm2588, %vm2589
        %v2591 = vsel %vm2590, %v2583, %v2587
        %v2592 = vand.u32 2147483647, %v2523
        %vm2593 = vcmp.eq.f32.partialorder %v2592, 8.507059e+37
        %v2594 = vand.u32 %v2523, 2147483648
        %v2595 = vor.u32 1.1754944e-38, %v2594
        %v2596 = vsel %vm2593, %v2595, %v2591
        %v2597 = vrcp.pop %v2524
        %v2598 = vmul.f32 %v2524, %v2597
        %v2599 = vsub.f32 1.0, %v2598
        %v2600 = vmul.f32 %v2597, %v2599
        %v2601 = vadd.f32 %v2597, %v2600
        %vm2602 = vweird.f32 %v2524
        %vm2603 = vweird.f32 %v2597
        %vm2604 = vmor %vm2602, %vm2603
        %v2605 = vsel %vm2604, %v2597, %v2601
        %v2606 = vand.u32 2147483647, %v2524
        %vm2607 = vcmp.eq.f32.partialorder %v2606, 8.507059e+37
        %v2608 = vand.u32 %v2524, 2147483648
        %v2609 = vor.u32 1.1754944e-38, %v2608
        %v2610 = vsel %vm2607, %v2609, %v2605
        %v2611 = vrcp.pop %v2525
        %v2612 = vmul.f32 %v2525, %v2611
        %v2613 = vsub.f32 1.0, %v2612
        %v2614 = vmul.f32 %v2611, %v2613
        %v2615 = vadd.f32 %v2611, %v2614
        %vm2616 = vweird.f32 %v2525
        %vm2617 = vweird.f32 %v2611
        %vm2618 = vmor %vm2616, %vm2617
        %v2619 = vsel %vm2618, %v2611, %v2615
        %v2620 = vand.u32 2147483647, %v2525
        %vm2621 = vcmp.eq.f32.partialorder %v2620, 8.507059e+37
        %v2622 = vand.u32 %v2525, 2147483648
        %v2623 = vor.u32 1.1754944e-38, %v2622
        %v2624 = vsel %vm2621, %v2623, %v2619
        %v2625 = vrcp.pop %v2526
        %v2626 = vmul.f32 %v2526, %v2625
        %v2627 = vsub.f32 1.0, %v2626
        %v2628 = vmul.f32 %v2625, %v2627
        %v2629 = vadd.f32 %v2625, %v2628
        %vm2630 = vweird.f32 %v2526
        %vm2631 = vweird.f32 %v2625
        %vm2632 = vmor %vm2630, %vm2631
        %v2633 = vsel %vm2632, %v2625, %v2629
        %v2634 = vand.u32 2147483647, %v2526
        %vm2635 = vcmp.eq.f32.partialorder %v2634, 8.507059e+37
        %v2636 = vand.u32 %v2526, 2147483648
        %v2637 = vor.u32 1.1754944e-38, %v2636
        %v2638 = vsel %vm2635, %v2637, %v2633
        %v2639 = vmul.f32 %v2495, %v2540
        %v2640 = vmul.f32 %v2496, %v2554
        %v2641 = vmul.f32 %v2497, %v2568
        %v2642 = vmul.f32 %v2498, %v2582
        %v2643 = vmul.f32 %v2499, %v2596
        %v2644 = vmul.f32 %v2500, %v2610
        %v2645 = vmul.f32 %v2501, %v2624
        %v2646 = vmul.f32 %v2502, %v2638
        %2647 = vmatpush.msra.mxu0 %v440
        %2648 = vmatpush.msra.mxu0 %v439
        %2649 = vmatpush.msra.mxu0 %v438
        %2650 = vmatpush.msra.mxu0 %v437
        %2651 = vmatpush.msra.mxu0 %v436
        %2652 = vmatpush.msra.mxu0 %v435
        %2653 = vmatpush.msra.mxu0 %v434
        %2654 = vmatpush.msra.mxu0 %v433
        %2655 = vmatpush.msra.mxu0 %v432
        %2656 = vmatpush.msra.mxu0 %v431
        %2657 = vmatpush.msra.mxu0 %v430
        %2658 = vmatpush.msra.mxu0 %v429
        %2659 = vmatpush.msra.mxu0 %v428
        %2660 = vmatpush.msra.mxu0 %v427
        %2661 = vmatpush.msra.mxu0 %v426
        %2662 = vmatpush.msra.mxu0 %v425
        %2663 = vmatmul.f32.gmra.mxu0 %v2639
        %v2664 = vpop.f32.mrf.mxu0
        %v2665 = vadd.f32 0.0, %v2664
        %2666 = vmatmul.f32.gmra.mxu0 %v2640
        %v2667 = vpop.f32.mrf.mxu0
        %v2668 = vadd.f32 0.0, %v2667
        %2669 = vmatmul.f32.gmra.mxu0 %v2641
        %v2670 = vpop.f32.mrf.mxu0
        %v2671 = vadd.f32 0.0, %v2670
        %2672 = vmatmul.f32.gmra.mxu0 %v2642
        %v2673 = vpop.f32.mrf.mxu0
        %v2674 = vadd.f32 0.0, %v2673
        %2675 = vmatmul.f32.gmra.mxu0 %v2643
        %v2676 = vpop.f32.mrf.mxu0
        %v2677 = vadd.f32 0.0, %v2676
        %2678 = vmatmul.f32.gmra.mxu0 %v2644
        %v2679 = vpop.f32.mrf.mxu0
        %v2680 = vadd.f32 0.0, %v2679
        %2681 = vmatmul.f32.gmra.mxu0 %v2645
        %v2682 = vpop.f32.mrf.mxu0
        %v2683 = vadd.f32 0.0, %v2682
        %2684 = vmatmul.f32.gmra.mxu0 %v2646
        %v2685 = vpop.f32.mrf.mxu0
        %v2686 = vadd.f32 0.0, %v2685
        %2687 = vdwg.mxu0
        %2688 = vset.pattern.permute.xlu0 68
        %2689 = vperm.xlu0 %2688, %v402
        %v2690 = vpop.permute.xlu0 %2689
        %2692 = vset.pattern.permute.xlu0 68
        %2693 = vperm.xlu0 %2692, %v405
        %v2694 = vpop.permute.xlu0 %2693
        %2696 = vset.pattern.permute.xlu0 68
        %2697 = vperm.xlu0 %2696, %v408
        %v2698 = vpop.permute.xlu0 %2697
        %2700 = vset.pattern.permute.xlu0 68
        %2701 = vperm.xlu0 %2700, %v411
        %v2702 = vpop.permute.xlu0 %2701
        %2704 = vset.pattern.permute.xlu0 68
        %2705 = vperm.xlu0 %2704, %v414
        %v2706 = vpop.permute.xlu0 %2705
        %2708 = vset.pattern.permute.xlu0 68
        %2709 = vperm.xlu0 %2708, %v417
        %v2710 = vpop.permute.xlu0 %2709
        %2712 = vset.pattern.permute.xlu0 68
        %2713 = vperm.xlu0 %2712, %v420
        %v2714 = vpop.permute.xlu0 %2713
        %2716 = vset.pattern.permute.xlu0 68
        %2717 = vperm.xlu0 %2716, %v423
        %v2718 = vpop.permute.xlu0 %2717
        %v2720 = vadd.f32 %v467, %v2690
        %v2721 = vadd.f32 %v468, %v2694
        %v2722 = vadd.f32 %v469, %v2698
        %v2723 = vadd.f32 %v470, %v2702
        %v2724 = vadd.f32 %v471, %v2706
        %v2725 = vadd.f32 %v472, %v2710
        %v2726 = vadd.f32 %v473, %v2714
        %v2727 = vadd.f32 %v474, %v2718
        %v2728 = vperm.slane %v479, 4
        %v2729 = vadd.f32 %v2720, %v2728
        %v2730 = vadd.f32 %v2721, %v2728
        %v2731 = vadd.f32 %v2722, %v2728
        %v2732 = vadd.f32 %v2723, %v2728
        %v2733 = vadd.f32 %v2724, %v2728
        %v2734 = vadd.f32 %v2725, %v2728
        %v2735 = vadd.f32 %v2726, %v2728
        %v2736 = vadd.f32 %v2727, %v2728
        %2737 = vset.pattern.permute.xlu0 16
        %2738 = vperm.xlu0 %2737, %v402
        %v2739 = vpop.permute.xlu0 %2738
        %2741 = vset.pattern.permute.xlu0 16
        %2742 = vperm.xlu0 %2741, %v405
        %v2743 = vpop.permute.xlu0 %2742
        %2745 = vset.pattern.permute.xlu0 16
        %2746 = vperm.xlu0 %2745, %v408
        %v2747 = vpop.permute.xlu0 %2746
        %2749 = vset.pattern.permute.xlu0 16
        %2750 = vperm.xlu0 %2749, %v411
        %v2751 = vpop.permute.xlu0 %2750
        %2753 = vset.pattern.permute.xlu0 16
        %2754 = vperm.xlu0 %2753, %v414
        %v2755 = vpop.permute.xlu0 %2754
        %2757 = vset.pattern.permute.xlu0 16
        %2758 = vperm.xlu0 %2757, %v417
        %v2759 = vpop.permute.xlu0 %2758
        %2761 = vset.pattern.permute.xlu0 16
        %2762 = vperm.xlu0 %2761, %v420
        %v2763 = vpop.permute.xlu0 %2762
        %2765 = vset.pattern.permute.xlu0 16
        %2766 = vperm.xlu0 %2765, %v423
        %v2767 = vpop.permute.xlu0 %2766
        %v2769 = vperm.slane %v477, 0
        %v2770 = vadd.f32 %v2739, %v2769
        %v2771 = vadd.f32 %v2743, %v2769
        %v2772 = vadd.f32 %v2747, %v2769
        %v2773 = vadd.f32 %v2751, %v2769
        %v2774 = vadd.f32 %v2755, %v2769
        %v2775 = vadd.f32 %v2759, %v2769
        %v2776 = vadd.f32 %v2763, %v2769
        %v2777 = vadd.f32 %v2767, %v2769
        %s2778 = sld [smem:[#allocation2 + $0x200]]
        %v2779 = vand.u32 2147483647, %v2770
        %v2780 = vand.u32 2147483647, %v2771
        %v2781 = vand.u32 2147483647, %v2772
        %v2782 = vand.u32 2147483647, %v2773
        %v2783 = vand.u32 2147483647, %v2774
        %v2784 = vand.u32 2147483647, %v2775
        %v2785 = vand.u32 2147483647, %v2776
        %v2786 = vand.u32 2147483647, %v2777
        %v2787 = vstv %s2778
        %v2788 = vmul.f32 %v2787, %v2779
        %v2789 = vmul.f32 %v2787, %v2780
        %v2790 = vmul.f32 %v2787, %v2781
        %v2791 = vmul.f32 %v2787, %v2782
        %v2792 = vmul.f32 %v2787, %v2783
        %v2793 = vmul.f32 %v2787, %v2784
        %v2794 = vmul.f32 %v2787, %v2785
        %v2795 = vmul.f32 %v2787, %v2786
        %v2796 = vadd.f32 %v2729, %v2788
        %v2797 = vadd.f32 %v2730, %v2789
        %v2798 = vadd.f32 %v2731, %v2790
        %v2799 = vadd.f32 %v2732, %v2791
        %v2800 = vadd.f32 %v2733, %v2792
        %v2801 = vadd.f32 %v2734, %v2793
        %v2802 = vadd.f32 %v2735, %v2794
        %v2803 = vadd.f32 %v2736, %v2795
        %2804 = vset.pattern.permute.xlu0 17
        %2805 = vperm.xlu0 %2804, %v402
        %v2806 = vpop.permute.xlu0 %2805
        %2808 = vset.pattern.permute.xlu0 17
        %2809 = vperm.xlu0 %2808, %v405
        %v2810 = vpop.permute.xlu0 %2809
        %2812 = vset.pattern.permute.xlu0 17
        %2813 = vperm.xlu0 %2812, %v408
        %v2814 = vpop.permute.xlu0 %2813
        %2816 = vset.pattern.permute.xlu0 17
        %2817 = vperm.xlu0 %2816, %v411
        %v2818 = vpop.permute.xlu0 %2817
        %2820 = vset.pattern.permute.xlu0 17
        %2821 = vperm.xlu0 %2820, %v414
        %v2822 = vpop.permute.xlu0 %2821
        %2824 = vset.pattern.permute.xlu0 17
        %2825 = vperm.xlu0 %2824, %v417
        %v2826 = vpop.permute.xlu0 %2825
        %2828 = vset.pattern.permute.xlu0 17
        %2829 = vperm.xlu0 %2828, %v420
        %v2830 = vpop.permute.xlu0 %2829
        %2832 = vset.pattern.permute.xlu0 17
        %2833 = vperm.xlu0 %2832, %v423
        %v2834 = vpop.permute.xlu0 %2833
        %v2836 = vperm.slane %v477, 1
        %v2837 = vadd.f32 %v2806, %v2836
        %v2838 = vadd.f32 %v2810, %v2836
        %v2839 = vadd.f32 %v2814, %v2836
        %v2840 = vadd.f32 %v2818, %v2836
        %v2841 = vadd.f32 %v2822, %v2836
        %v2842 = vadd.f32 %v2826, %v2836
        %v2843 = vadd.f32 %v2830, %v2836
        %v2844 = vadd.f32 %v2834, %v2836
        %s2845 = sld [smem:[#allocation2 + $0x201]]
        %v2846 = vand.u32 2147483647, %v2837
        %v2847 = vand.u32 2147483647, %v2838
        %v2848 = vand.u32 2147483647, %v2839
        %v2849 = vand.u32 2147483647, %v2840
        %v2850 = vand.u32 2147483647, %v2841
        %v2851 = vand.u32 2147483647, %v2842
        %v2852 = vand.u32 2147483647, %v2843
        %v2853 = vand.u32 2147483647, %v2844
        %v2854 = vstv %s2845
        %v2855 = vmul.f32 %v2854, %v2846
        %v2856 = vmul.f32 %v2854, %v2847
        %v2857 = vmul.f32 %v2854, %v2848
        %v2858 = vmul.f32 %v2854, %v2849
        %v2859 = vmul.f32 %v2854, %v2850
        %v2860 = vmul.f32 %v2854, %v2851
        %v2861 = vmul.f32 %v2854, %v2852
        %v2862 = vmul.f32 %v2854, %v2853
        %v2863 = vadd.f32 %v2796, %v2855
        %v2864 = vadd.f32 %v2797, %v2856
        %v2865 = vadd.f32 %v2798, %v2857
        %v2866 = vadd.f32 %v2799, %v2858
        %v2867 = vadd.f32 %v2800, %v2859
        %v2868 = vadd.f32 %v2801, %v2860
        %v2869 = vadd.f32 %v2802, %v2861
        %v2870 = vadd.f32 %v2803, %v2862
        %2871 = vset.pattern.permute.xlu0 18
        %2872 = vperm.xlu0 %2871, %v402
        %v2873 = vpop.permute.xlu0 %2872
        %2875 = vset.pattern.permute.xlu0 18
        %2876 = vperm.xlu0 %2875, %v405
        %v2877 = vpop.permute.xlu0 %2876
        %2879 = vset.pattern.permute.xlu0 18
        %2880 = vperm.xlu0 %2879, %v408
        %v2881 = vpop.permute.xlu0 %2880
        %2883 = vset.pattern.permute.xlu0 18
        %2884 = vperm.xlu0 %2883, %v411
        %v2885 = vpop.permute.xlu0 %2884
        %2887 = vset.pattern.permute.xlu0 18
        %2888 = vperm.xlu0 %2887, %v414
        %v2889 = vpop.permute.xlu0 %2888
        %2891 = vset.pattern.permute.xlu0 18
        %2892 = vperm.xlu0 %2891, %v417
        %v2893 = vpop.permute.xlu0 %2892
        %2895 = vset.pattern.permute.xlu0 18
        %2896 = vperm.xlu0 %2895, %v420
        %v2897 = vpop.permute.xlu0 %2896
        %2899 = vset.pattern.permute.xlu0 18
        %2900 = vperm.xlu0 %2899, %v423
        %v2901 = vpop.permute.xlu0 %2900
        %v2903 = vperm.slane %v477, 2
        %v2904 = vadd.f32 %v2873, %v2903
        %v2905 = vadd.f32 %v2877, %v2903
        %v2906 = vadd.f32 %v2881, %v2903
        %v2907 = vadd.f32 %v2885, %v2903
        %v2908 = vadd.f32 %v2889, %v2903
        %v2909 = vadd.f32 %v2893, %v2903
        %v2910 = vadd.f32 %v2897, %v2903
        %v2911 = vadd.f32 %v2901, %v2903
        %s2912 = sld [smem:[#allocation2 + $0x202]]
        %v2913 = vand.u32 2147483647, %v2904
        %v2914 = vand.u32 2147483647, %v2905
        %v2915 = vand.u32 2147483647, %v2906
        %v2916 = vand.u32 2147483647, %v2907
        %v2917 = vand.u32 2147483647, %v2908
        %v2918 = vand.u32 2147483647, %v2909
        %v2919 = vand.u32 2147483647, %v2910
        %v2920 = vand.u32 2147483647, %v2911
        %v2921 = vstv %s2912
        %v2922 = vmul.f32 %v2921, %v2913
        %v2923 = vmul.f32 %v2921, %v2914
        %v2924 = vmul.f32 %v2921, %v2915
        %v2925 = vmul.f32 %v2921, %v2916
        %v2926 = vmul.f32 %v2921, %v2917
        %v2927 = vmul.f32 %v2921, %v2918
        %v2928 = vmul.f32 %v2921, %v2919
        %v2929 = vmul.f32 %v2921, %v2920
        %v2930 = vadd.f32 %v2863, %v2922
        %v2931 = vadd.f32 %v2864, %v2923
        %v2932 = vadd.f32 %v2865, %v2924
        %v2933 = vadd.f32 %v2866, %v2925
        %v2934 = vadd.f32 %v2867, %v2926
        %v2935 = vadd.f32 %v2868, %v2927
        %v2936 = vadd.f32 %v2869, %v2928
        %v2937 = vadd.f32 %v2870, %v2929
        %2938 = vset.pattern.permute.xlu0 19
        %2939 = vperm.xlu0 %2938, %v402
        %v2940 = vpop.permute.xlu0 %2939
        %2942 = vset.pattern.permute.xlu0 19
        %2943 = vperm.xlu0 %2942, %v405
        %v2944 = vpop.permute.xlu0 %2943
        %2946 = vset.pattern.permute.xlu0 19
        %2947 = vperm.xlu0 %2946, %v408
        %v2948 = vpop.permute.xlu0 %2947
        %2950 = vset.pattern.permute.xlu0 19
        %2951 = vperm.xlu0 %2950, %v411
        %v2952 = vpop.permute.xlu0 %2951
        %2954 = vset.pattern.permute.xlu0 19
        %2955 = vperm.xlu0 %2954, %v414
        %v2956 = vpop.permute.xlu0 %2955
        %2958 = vset.pattern.permute.xlu0 19
        %2959 = vperm.xlu0 %2958, %v417
        %v2960 = vpop.permute.xlu0 %2959
        %2962 = vset.pattern.permute.xlu0 19
        %2963 = vperm.xlu0 %2962, %v420
        %v2964 = vpop.permute.xlu0 %2963
        %2966 = vset.pattern.permute.xlu0 19
        %2967 = vperm.xlu0 %2966, %v423
        %v2968 = vpop.permute.xlu0 %2967
        %v2970 = vperm.slane %v477, 3
        %v2971 = vadd.f32 %v2940, %v2970
        %v2972 = vadd.f32 %v2944, %v2970
        %v2973 = vadd.f32 %v2948, %v2970
        %v2974 = vadd.f32 %v2952, %v2970
        %v2975 = vadd.f32 %v2956, %v2970
        %v2976 = vadd.f32 %v2960, %v2970
        %v2977 = vadd.f32 %v2964, %v2970
        %v2978 = vadd.f32 %v2968, %v2970
        %s2979 = sld [smem:[#allocation2 + $0x203]]
        %v2980 = vand.u32 2147483647, %v2971
        %v2981 = vand.u32 2147483647, %v2972
        %v2982 = vand.u32 2147483647, %v2973
        %v2983 = vand.u32 2147483647, %v2974
        %v2984 = vand.u32 2147483647, %v2975
        %v2985 = vand.u32 2147483647, %v2976
        %v2986 = vand.u32 2147483647, %v2977
        %v2987 = vand.u32 2147483647, %v2978
        %v2988 = vstv %s2979
        %v2989 = vmul.f32 %v2988, %v2980
        %v2990 = vmul.f32 %v2988, %v2981
        %v2991 = vmul.f32 %v2988, %v2982
        %v2992 = vmul.f32 %v2988, %v2983
        %v2993 = vmul.f32 %v2988, %v2984
        %v2994 = vmul.f32 %v2988, %v2985
        %v2995 = vmul.f32 %v2988, %v2986
        %v2996 = vmul.f32 %v2988, %v2987
        %v2997 = vadd.f32 %v2930, %v2989
        %v2998 = vadd.f32 %v2931, %v2990
        %v2999 = vadd.f32 %v2932, %v2991
        %v3000 = vadd.f32 %v2933, %v2992
        %v3001 = vadd.f32 %v2934, %v2993
        %v3002 = vadd.f32 %v2935, %v2994
        %v3003 = vadd.f32 %v2936, %v2995
        %v3004 = vadd.f32 %v2937, %v2996
        %3005 = vmax.xlane.f32.xlu0 %v2997
        %v3006 = vpop.xlane.xlu0 %3005
        %3007 = vmax.xlane.f32.xlu0 %v2998
        %v3008 = vpop.xlane.xlu0 %3007
        %3009 = vmax.xlane.f32.xlu0 %v2999
        %v3010 = vpop.xlane.xlu0 %3009
        %3011 = vmax.xlane.f32.xlu0 %v3000
        %v3012 = vpop.xlane.xlu0 %3011
        %3013 = vmax.xlane.f32.xlu0 %v3001
        %v3014 = vpop.xlane.xlu0 %3013
        %3015 = vmax.xlane.f32.xlu0 %v3002
        %v3016 = vpop.xlane.xlu0 %3015
        %3017 = vmax.xlane.f32.xlu0 %v3003
        %v3018 = vpop.xlane.xlu0 %3017
        %3019 = vmax.xlane.f32.xlu0 %v3004
        %v3020 = vpop.xlane.xlu0 %3019
        %v3021 = vsub.f32 %v2997, %v3006
        %v3022 = vsub.f32 %v2998, %v3008
        %v3023 = vsub.f32 %v2999, %v3010
        %v3024 = vsub.f32 %v3000, %v3012
        %v3025 = vsub.f32 %v3001, %v3014
        %v3026 = vsub.f32 %v3002, %v3016
        %v3027 = vsub.f32 %v3003, %v3018
        %v3028 = vsub.f32 %v3004, %v3020
        %v3029 = vmul.f32 %v3021, 1.442695
        %v3030 = vpow.pop %v3029
        %v3031 = vmul.f32 %v3022, 1.442695
        %v3032 = vpow.pop %v3031
        %v3033 = vmul.f32 %v3023, 1.442695
        %v3034 = vpow.pop %v3033
        %v3035 = vmul.f32 %v3024, 1.442695
        %v3036 = vpow.pop %v3035
        %v3037 = vmul.f32 %v3025, 1.442695
        %v3038 = vpow.pop %v3037
        %v3039 = vmul.f32 %v3026, 1.442695
        %v3040 = vpow.pop %v3039
        %v3041 = vmul.f32 %v3027, 1.442695
        %v3042 = vpow.pop %v3041
        %v3043 = vmul.f32 %v3028, 1.442695
        %v3044 = vpow.pop %v3043
        %v3045 = vmul.f32 %v3030, %v451
        %v3046 = vmul.f32 %v3032, %v452
        %v3047 = vmul.f32 %v3034, %v453
        %v3048 = vmul.f32 %v3036, %v454
        %v3049 = vmul.f32 %v3038, %v455
        %v3050 = vmul.f32 %v3040, %v456
        %v3051 = vmul.f32 %v3042, %v457
        %v3052 = vmul.f32 %v3044, %v458
        %3053 = vadd.xlane.f32.xlu0 %v3045
        %v3054 = vpop.xlane.xlu0 %3053
        %3055 = vadd.xlane.f32.xlu0 %v3046
        %v3056 = vpop.xlane.xlu0 %3055
        %3057 = vadd.xlane.f32.xlu0 %v3047
        %v3058 = vpop.xlane.xlu0 %3057
        %3059 = vadd.xlane.f32.xlu0 %v3048
        %v3060 = vpop.xlane.xlu0 %3059
        %3061 = vadd.xlane.f32.xlu0 %v3049
        %v3062 = vpop.xlane.xlu0 %3061
        %3063 = vadd.xlane.f32.xlu0 %v3050
        %v3064 = vpop.xlane.xlu0 %3063
        %3065 = vadd.xlane.f32.xlu0 %v3051
        %v3066 = vpop.xlane.xlu0 %3065
        %3067 = vadd.xlane.f32.xlu0 %v3052
        %v3068 = vpop.xlane.xlu0 %3067
        %v3069 = vmax.f32 %v3054, 1e-16
        %v3070 = vmax.f32 %v3056, 1e-16
        %v3071 = vmax.f32 %v3058, 1e-16
        %v3072 = vmax.f32 %v3060, 1e-16
        %v3073 = vmax.f32 %v3062, 1e-16
        %v3074 = vmax.f32 %v3064, 1e-16
        %v3075 = vmax.f32 %v3066, 1e-16
        %v3076 = vmax.f32 %v3068, 1e-16
        %v3077 = vrcp.pop %v3069
        %v3078 = vmul.f32 %v3069, %v3077
        %v3079 = vsub.f32 1.0, %v3078
        %v3080 = vmul.f32 %v3077, %v3079
        %v3081 = vadd.f32 %v3077, %v3080
        %vm3082 = vweird.f32 %v3069
        %vm3083 = vweird.f32 %v3077
        %vm3084 = vmor %vm3082, %vm3083
        %v3085 = vsel %vm3084, %v3077, %v3081
        %v3086 = vand.u32 2147483647, %v3069
        %vm3087 = vcmp.eq.f32.partialorder %v3086, 8.507059e+37
        %v3088 = vand.u32 %v3069, 2147483648
        %v3089 = vor.u32 1.1754944e-38, %v3088
        %v3090 = vsel %vm3087, %v3089, %v3085
        %v3091 = vrcp.pop %v3070
        %v3092 = vmul.f32 %v3070, %v3091
        %v3093 = vsub.f32 1.0, %v3092
        %v3094 = vmul.f32 %v3091, %v3093
        %v3095 = vadd.f32 %v3091, %v3094
        %vm3096 = vweird.f32 %v3070
        %vm3097 = vweird.f32 %v3091
        %vm3098 = vmor %vm3096, %vm3097
        %v3099 = vsel %vm3098, %v3091, %v3095
        %v3100 = vand.u32 2147483647, %v3070
        %vm3101 = vcmp.eq.f32.partialorder %v3100, 8.507059e+37
        %v3102 = vand.u32 %v3070, 2147483648
        %v3103 = vor.u32 1.1754944e-38, %v3102
        %v3104 = vsel %vm3101, %v3103, %v3099
        %v3105 = vrcp.pop %v3071
        %v3106 = vmul.f32 %v3071, %v3105
        %v3107 = vsub.f32 1.0, %v3106
        %v3108 = vmul.f32 %v3105, %v3107
        %v3109 = vadd.f32 %v3105, %v3108
        %vm3110 = vweird.f32 %v3071
        %vm3111 = vweird.f32 %v3105
        %vm3112 = vmor %vm3110, %vm3111
        %v3113 = vsel %vm3112, %v3105, %v3109
        %v3114 = vand.u32 2147483647, %v3071
        %vm3115 = vcmp.eq.f32.partialorder %v3114, 8.507059e+37
        %v3116 = vand.u32 %v3071, 2147483648
        %v3117 = vor.u32 1.1754944e-38, %v3116
        %v3118 = vsel %vm3115, %v3117, %v3113
        %v3119 = vrcp.pop %v3072
        %v3120 = vmul.f32 %v3072, %v3119
        %v3121 = vsub.f32 1.0, %v3120
        %v3122 = vmul.f32 %v3119, %v3121
        %v3123 = vadd.f32 %v3119, %v3122
        %vm3124 = vweird.f32 %v3072
        %vm3125 = vweird.f32 %v3119
        %vm3126 = vmor %vm3124, %vm3125
        %v3127 = vsel %vm3126, %v3119, %v3123
        %v3128 = vand.u32 2147483647, %v3072
        %vm3129 = vcmp.eq.f32.partialorder %v3128, 8.507059e+37
        %v3130 = vand.u32 %v3072, 2147483648
        %v3131 = vor.u32 1.1754944e-38, %v3130
        %v3132 = vsel %vm3129, %v3131, %v3127
        %v3133 = vrcp.pop %v3073
        %v3134 = vmul.f32 %v3073, %v3133
        %v3135 = vsub.f32 1.0, %v3134
        %v3136 = vmul.f32 %v3133, %v3135
        %v3137 = vadd.f32 %v3133, %v3136
        %vm3138 = vweird.f32 %v3073
        %vm3139 = vweird.f32 %v3133
        %vm3140 = vmor %vm3138, %vm3139
        %v3141 = vsel %vm3140, %v3133, %v3137
        %v3142 = vand.u32 2147483647, %v3073
        %vm3143 = vcmp.eq.f32.partialorder %v3142, 8.507059e+37
        %v3144 = vand.u32 %v3073, 2147483648
        %v3145 = vor.u32 1.1754944e-38, %v3144
        %v3146 = vsel %vm3143, %v3145, %v3141
        %v3147 = vrcp.pop %v3074
        %v3148 = vmul.f32 %v3074, %v3147
        %v3149 = vsub.f32 1.0, %v3148
        %v3150 = vmul.f32 %v3147, %v3149
        %v3151 = vadd.f32 %v3147, %v3150
        %vm3152 = vweird.f32 %v3074
        %vm3153 = vweird.f32 %v3147
        %vm3154 = vmor %vm3152, %vm3153
        %v3155 = vsel %vm3154, %v3147, %v3151
        %v3156 = vand.u32 2147483647, %v3074
        %vm3157 = vcmp.eq.f32.partialorder %v3156, 8.507059e+37
        %v3158 = vand.u32 %v3074, 2147483648
        %v3159 = vor.u32 1.1754944e-38, %v3158
        %v3160 = vsel %vm3157, %v3159, %v3155
        %v3161 = vrcp.pop %v3075
        %v3162 = vmul.f32 %v3075, %v3161
        %v3163 = vsub.f32 1.0, %v3162
        %v3164 = vmul.f32 %v3161, %v3163
        %v3165 = vadd.f32 %v3161, %v3164
        %vm3166 = vweird.f32 %v3075
        %vm3167 = vweird.f32 %v3161
        %vm3168 = vmor %vm3166, %vm3167
        %v3169 = vsel %vm3168, %v3161, %v3165
        %v3170 = vand.u32 2147483647, %v3075
        %vm3171 = vcmp.eq.f32.partialorder %v3170, 8.507059e+37
        %v3172 = vand.u32 %v3075, 2147483648
        %v3173 = vor.u32 1.1754944e-38, %v3172
        %v3174 = vsel %vm3171, %v3173, %v3169
        %v3175 = vrcp.pop %v3076
        %v3176 = vmul.f32 %v3076, %v3175
        %v3177 = vsub.f32 1.0, %v3176
        %v3178 = vmul.f32 %v3175, %v3177
        %v3179 = vadd.f32 %v3175, %v3178
        %vm3180 = vweird.f32 %v3076
        %vm3181 = vweird.f32 %v3175
        %vm3182 = vmor %vm3180, %vm3181
        %v3183 = vsel %vm3182, %v3175, %v3179
        %v3184 = vand.u32 2147483647, %v3076
        %vm3185 = vcmp.eq.f32.partialorder %v3184, 8.507059e+37
        %v3186 = vand.u32 %v3076, 2147483648
        %v3187 = vor.u32 1.1754944e-38, %v3186
        %v3188 = vsel %vm3185, %v3187, %v3183
        %v3189 = vmul.f32 %v3045, %v3090
        %v3190 = vmul.f32 %v3046, %v3104
        %v3191 = vmul.f32 %v3047, %v3118
        %v3192 = vmul.f32 %v3048, %v3132
        %v3193 = vmul.f32 %v3049, %v3146
        %v3194 = vmul.f32 %v3050, %v3160
        %v3195 = vmul.f32 %v3051, %v3174
        %v3196 = vmul.f32 %v3052, %v3188
        %3197 = vmatpush.msra.mxu0 %v440
        %3198 = vmatpush.msra.mxu0 %v439
        %3199 = vmatpush.msra.mxu0 %v438
        %3200 = vmatpush.msra.mxu0 %v437
        %3201 = vmatpush.msra.mxu0 %v436
        %3202 = vmatpush.msra.mxu0 %v435
        %3203 = vmatpush.msra.mxu0 %v434
        %3204 = vmatpush.msra.mxu0 %v433
        %3205 = vmatpush.msra.mxu0 %v432
        %3206 = vmatpush.msra.mxu0 %v431
        %3207 = vmatpush.msra.mxu0 %v430
        %3208 = vmatpush.msra.mxu0 %v429
        %3209 = vmatpush.msra.mxu0 %v428
        %3210 = vmatpush.msra.mxu0 %v427
        %3211 = vmatpush.msra.mxu0 %v426
        %3212 = vmatpush.msra.mxu0 %v425
        %3213 = vmatmul.f32.gmra.mxu0 %v3189
        %v3214 = vpop.f32.mrf.mxu0
        %v3215 = vadd.f32 0.0, %v3214
        %3216 = vmatmul.f32.gmra.mxu0 %v3190
        %v3217 = vpop.f32.mrf.mxu0
        %v3218 = vadd.f32 0.0, %v3217
        %3219 = vmatmul.f32.gmra.mxu0 %v3191
        %v3220 = vpop.f32.mrf.mxu0
        %v3221 = vadd.f32 0.0, %v3220
        %3222 = vmatmul.f32.gmra.mxu0 %v3192
        %v3223 = vpop.f32.mrf.mxu0
        %v3224 = vadd.f32 0.0, %v3223
        %3225 = vmatmul.f32.gmra.mxu0 %v3193
        %v3226 = vpop.f32.mrf.mxu0
        %v3227 = vadd.f32 0.0, %v3226
        %3228 = vmatmul.f32.gmra.mxu0 %v3194
        %v3229 = vpop.f32.mrf.mxu0
        %v3230 = vadd.f32 0.0, %v3229
        %3231 = vmatmul.f32.gmra.mxu0 %v3195
        %v3232 = vpop.f32.mrf.mxu0
        %v3233 = vadd.f32 0.0, %v3232
        %3234 = vmatmul.f32.gmra.mxu0 %v3196
        %v3235 = vpop.f32.mrf.mxu0
        %v3236 = vadd.f32 0.0, %v3235
        %3237 = vdwg.mxu0
        %3238 = vset.pattern.permute.xlu0 69
        %3239 = vperm.xlu0 %3238, %v402
        %v3240 = vpop.permute.xlu0 %3239
        %3242 = vset.pattern.permute.xlu0 69
        %3243 = vperm.xlu0 %3242, %v405
        %v3244 = vpop.permute.xlu0 %3243
        %3246 = vset.pattern.permute.xlu0 69
        %3247 = vperm.xlu0 %3246, %v408
        %v3248 = vpop.permute.xlu0 %3247
        %3250 = vset.pattern.permute.xlu0 69
        %3251 = vperm.xlu0 %3250, %v411
        %v3252 = vpop.permute.xlu0 %3251
        %3254 = vset.pattern.permute.xlu0 69
        %3255 = vperm.xlu0 %3254, %v414
        %v3256 = vpop.permute.xlu0 %3255
        %3258 = vset.pattern.permute.xlu0 69
        %3259 = vperm.xlu0 %3258, %v417
        %v3260 = vpop.permute.xlu0 %3259
        %3262 = vset.pattern.permute.xlu0 69
        %3263 = vperm.xlu0 %3262, %v420
        %v3264 = vpop.permute.xlu0 %3263
        %3266 = vset.pattern.permute.xlu0 69
        %3267 = vperm.xlu0 %3266, %v423
        %v3268 = vpop.permute.xlu0 %3267
        %v3270 = vadd.f32 %v467, %v3240
        %v3271 = vadd.f32 %v468, %v3244
        %v3272 = vadd.f32 %v469, %v3248
        %v3273 = vadd.f32 %v470, %v3252
        %v3274 = vadd.f32 %v471, %v3256
        %v3275 = vadd.f32 %v472, %v3260
        %v3276 = vadd.f32 %v473, %v3264
        %v3277 = vadd.f32 %v474, %v3268
        %v3278 = vperm.slane %v479, 5
        %v3279 = vadd.f32 %v3270, %v3278
        %v3280 = vadd.f32 %v3271, %v3278
        %v3281 = vadd.f32 %v3272, %v3278
        %v3282 = vadd.f32 %v3273, %v3278
        %v3283 = vadd.f32 %v3274, %v3278
        %v3284 = vadd.f32 %v3275, %v3278
        %v3285 = vadd.f32 %v3276, %v3278
        %v3286 = vadd.f32 %v3277, %v3278
        %3287 = vset.pattern.permute.xlu0 20
        %3288 = vperm.xlu0 %3287, %v402
        %v3289 = vpop.permute.xlu0 %3288
        %3291 = vset.pattern.permute.xlu0 20
        %3292 = vperm.xlu0 %3291, %v405
        %v3293 = vpop.permute.xlu0 %3292
        %3295 = vset.pattern.permute.xlu0 20
        %3296 = vperm.xlu0 %3295, %v408
        %v3297 = vpop.permute.xlu0 %3296
        %3299 = vset.pattern.permute.xlu0 20
        %3300 = vperm.xlu0 %3299, %v411
        %v3301 = vpop.permute.xlu0 %3300
        %3303 = vset.pattern.permute.xlu0 20
        %3304 = vperm.xlu0 %3303, %v414
        %v3305 = vpop.permute.xlu0 %3304
        %3307 = vset.pattern.permute.xlu0 20
        %3308 = vperm.xlu0 %3307, %v417
        %v3309 = vpop.permute.xlu0 %3308
        %3311 = vset.pattern.permute.xlu0 20
        %3312 = vperm.xlu0 %3311, %v420
        %v3313 = vpop.permute.xlu0 %3312
        %3315 = vset.pattern.permute.xlu0 20
        %3316 = vperm.xlu0 %3315, %v423
        %v3317 = vpop.permute.xlu0 %3316
        %v3319 = vperm.slane %v477, 4
        %v3320 = vadd.f32 %v3289, %v3319
        %v3321 = vadd.f32 %v3293, %v3319
        %v3322 = vadd.f32 %v3297, %v3319
        %v3323 = vadd.f32 %v3301, %v3319
        %v3324 = vadd.f32 %v3305, %v3319
        %v3325 = vadd.f32 %v3309, %v3319
        %v3326 = vadd.f32 %v3313, %v3319
        %v3327 = vadd.f32 %v3317, %v3319
        %s3328 = sld [smem:[#allocation2 + $0x280]]
        %v3329 = vand.u32 2147483647, %v3320
        %v3330 = vand.u32 2147483647, %v3321
        %v3331 = vand.u32 2147483647, %v3322
        %v3332 = vand.u32 2147483647, %v3323
        %v3333 = vand.u32 2147483647, %v3324
        %v3334 = vand.u32 2147483647, %v3325
        %v3335 = vand.u32 2147483647, %v3326
        %v3336 = vand.u32 2147483647, %v3327
        %v3337 = vstv %s3328
        %v3338 = vmul.f32 %v3337, %v3329
        %v3339 = vmul.f32 %v3337, %v3330
        %v3340 = vmul.f32 %v3337, %v3331
        %v3341 = vmul.f32 %v3337, %v3332
        %v3342 = vmul.f32 %v3337, %v3333
        %v3343 = vmul.f32 %v3337, %v3334
        %v3344 = vmul.f32 %v3337, %v3335
        %v3345 = vmul.f32 %v3337, %v3336
        %v3346 = vadd.f32 %v3279, %v3338
        %v3347 = vadd.f32 %v3280, %v3339
        %v3348 = vadd.f32 %v3281, %v3340
        %v3349 = vadd.f32 %v3282, %v3341
        %v3350 = vadd.f32 %v3283, %v3342
        %v3351 = vadd.f32 %v3284, %v3343
        %v3352 = vadd.f32 %v3285, %v3344
        %v3353 = vadd.f32 %v3286, %v3345
        %3354 = vset.pattern.permute.xlu0 21
        %3355 = vperm.xlu0 %3354, %v402
        %v3356 = vpop.permute.xlu0 %3355
        %3358 = vset.pattern.permute.xlu0 21
        %3359 = vperm.xlu0 %3358, %v405
        %v3360 = vpop.permute.xlu0 %3359
        %3362 = vset.pattern.permute.xlu0 21
        %3363 = vperm.xlu0 %3362, %v408
        %v3364 = vpop.permute.xlu0 %3363
        %3366 = vset.pattern.permute.xlu0 21
        %3367 = vperm.xlu0 %3366, %v411
        %v3368 = vpop.permute.xlu0 %3367
        %3370 = vset.pattern.permute.xlu0 21
        %3371 = vperm.xlu0 %3370, %v414
        %v3372 = vpop.permute.xlu0 %3371
        %3374 = vset.pattern.permute.xlu0 21
        %3375 = vperm.xlu0 %3374, %v417
        %v3376 = vpop.permute.xlu0 %3375
        %3378 = vset.pattern.permute.xlu0 21
        %3379 = vperm.xlu0 %3378, %v420
        %v3380 = vpop.permute.xlu0 %3379
        %3382 = vset.pattern.permute.xlu0 21
        %3383 = vperm.xlu0 %3382, %v423
        %v3384 = vpop.permute.xlu0 %3383
        %v3386 = vperm.slane %v477, 5
        %v3387 = vadd.f32 %v3356, %v3386
        %v3388 = vadd.f32 %v3360, %v3386
        %v3389 = vadd.f32 %v3364, %v3386
        %v3390 = vadd.f32 %v3368, %v3386
        %v3391 = vadd.f32 %v3372, %v3386
        %v3392 = vadd.f32 %v3376, %v3386
        %v3393 = vadd.f32 %v3380, %v3386
        %v3394 = vadd.f32 %v3384, %v3386
        %s3395 = sld [smem:[#allocation2 + $0x281]]
        %v3396 = vand.u32 2147483647, %v3387
        %v3397 = vand.u32 2147483647, %v3388
        %v3398 = vand.u32 2147483647, %v3389
        %v3399 = vand.u32 2147483647, %v3390
        %v3400 = vand.u32 2147483647, %v3391
        %v3401 = vand.u32 2147483647, %v3392
        %v3402 = vand.u32 2147483647, %v3393
        %v3403 = vand.u32 2147483647, %v3394
        %v3404 = vstv %s3395
        %v3405 = vmul.f32 %v3404, %v3396
        %v3406 = vmul.f32 %v3404, %v3397
        %v3407 = vmul.f32 %v3404, %v3398
        %v3408 = vmul.f32 %v3404, %v3399
        %v3409 = vmul.f32 %v3404, %v3400
        %v3410 = vmul.f32 %v3404, %v3401
        %v3411 = vmul.f32 %v3404, %v3402
        %v3412 = vmul.f32 %v3404, %v3403
        %v3413 = vadd.f32 %v3346, %v3405
        %v3414 = vadd.f32 %v3347, %v3406
        %v3415 = vadd.f32 %v3348, %v3407
        %v3416 = vadd.f32 %v3349, %v3408
        %v3417 = vadd.f32 %v3350, %v3409
        %v3418 = vadd.f32 %v3351, %v3410
        %v3419 = vadd.f32 %v3352, %v3411
        %v3420 = vadd.f32 %v3353, %v3412
        %3421 = vset.pattern.permute.xlu0 22
        %3422 = vperm.xlu0 %3421, %v402
        %v3423 = vpop.permute.xlu0 %3422
        %3425 = vset.pattern.permute.xlu0 22
        %3426 = vperm.xlu0 %3425, %v405
        %v3427 = vpop.permute.xlu0 %3426
        %3429 = vset.pattern.permute.xlu0 22
        %3430 = vperm.xlu0 %3429, %v408
        %v3431 = vpop.permute.xlu0 %3430
        %3433 = vset.pattern.permute.xlu0 22
        %3434 = vperm.xlu0 %3433, %v411
        %v3435 = vpop.permute.xlu0 %3434
        %3437 = vset.pattern.permute.xlu0 22
        %3438 = vperm.xlu0 %3437, %v414
        %v3439 = vpop.permute.xlu0 %3438
        %3441 = vset.pattern.permute.xlu0 22
        %3442 = vperm.xlu0 %3441, %v417
        %v3443 = vpop.permute.xlu0 %3442
        %3445 = vset.pattern.permute.xlu0 22
        %3446 = vperm.xlu0 %3445, %v420
        %v3447 = vpop.permute.xlu0 %3446
        %3449 = vset.pattern.permute.xlu0 22
        %3450 = vperm.xlu0 %3449, %v423
        %v3451 = vpop.permute.xlu0 %3450
        %v3453 = vperm.slane %v477, 6
        %v3454 = vadd.f32 %v3423, %v3453
        %v3455 = vadd.f32 %v3427, %v3453
        %v3456 = vadd.f32 %v3431, %v3453
        %v3457 = vadd.f32 %v3435, %v3453
        %v3458 = vadd.f32 %v3439, %v3453
        %v3459 = vadd.f32 %v3443, %v3453
        %v3460 = vadd.f32 %v3447, %v3453
        %v3461 = vadd.f32 %v3451, %v3453
        %s3462 = sld [smem:[#allocation2 + $0x282]]
        %v3463 = vand.u32 2147483647, %v3454
        %v3464 = vand.u32 2147483647, %v3455
        %v3465 = vand.u32 2147483647, %v3456
        %v3466 = vand.u32 2147483647, %v3457
        %v3467 = vand.u32 2147483647, %v3458
        %v3468 = vand.u32 2147483647, %v3459
        %v3469 = vand.u32 2147483647, %v3460
        %v3470 = vand.u32 2147483647, %v3461
        %v3471 = vstv %s3462
        %v3472 = vmul.f32 %v3471, %v3463
        %v3473 = vmul.f32 %v3471, %v3464
        %v3474 = vmul.f32 %v3471, %v3465
        %v3475 = vmul.f32 %v3471, %v3466
        %v3476 = vmul.f32 %v3471, %v3467
        %v3477 = vmul.f32 %v3471, %v3468
        %v3478 = vmul.f32 %v3471, %v3469
        %v3479 = vmul.f32 %v3471, %v3470
        %v3480 = vadd.f32 %v3413, %v3472
        %v3481 = vadd.f32 %v3414, %v3473
        %v3482 = vadd.f32 %v3415, %v3474
        %v3483 = vadd.f32 %v3416, %v3475
        %v3484 = vadd.f32 %v3417, %v3476
        %v3485 = vadd.f32 %v3418, %v3477
        %v3486 = vadd.f32 %v3419, %v3478
        %v3487 = vadd.f32 %v3420, %v3479
        %3488 = vset.pattern.permute.xlu0 23
        %3489 = vperm.xlu0 %3488, %v402
        %v3490 = vpop.permute.xlu0 %3489
        %3492 = vset.pattern.permute.xlu0 23
        %3493 = vperm.xlu0 %3492, %v405
        %v3494 = vpop.permute.xlu0 %3493
        %3496 = vset.pattern.permute.xlu0 23
        %3497 = vperm.xlu0 %3496, %v408
        %v3498 = vpop.permute.xlu0 %3497
        %3500 = vset.pattern.permute.xlu0 23
        %3501 = vperm.xlu0 %3500, %v411
        %v3502 = vpop.permute.xlu0 %3501
        %3504 = vset.pattern.permute.xlu0 23
        %3505 = vperm.xlu0 %3504, %v414
        %v3506 = vpop.permute.xlu0 %3505
        %3508 = vset.pattern.permute.xlu0 23
        %3509 = vperm.xlu0 %3508, %v417
        %v3510 = vpop.permute.xlu0 %3509
        %3512 = vset.pattern.permute.xlu0 23
        %3513 = vperm.xlu0 %3512, %v420
        %v3514 = vpop.permute.xlu0 %3513
        %3516 = vset.pattern.permute.xlu0 23
        %3517 = vperm.xlu0 %3516, %v423
        %v3518 = vpop.permute.xlu0 %3517
        %v3520 = vperm.slane %v477, 7
        %v3521 = vadd.f32 %v3490, %v3520
        %v3522 = vadd.f32 %v3494, %v3520
        %v3523 = vadd.f32 %v3498, %v3520
        %v3524 = vadd.f32 %v3502, %v3520
        %v3525 = vadd.f32 %v3506, %v3520
        %v3526 = vadd.f32 %v3510, %v3520
        %v3527 = vadd.f32 %v3514, %v3520
        %v3528 = vadd.f32 %v3518, %v3520
        %s3529 = sld [smem:[#allocation2 + $0x283]]
        %v3530 = vand.u32 2147483647, %v3521
        %v3531 = vand.u32 2147483647, %v3522
        %v3532 = vand.u32 2147483647, %v3523
        %v3533 = vand.u32 2147483647, %v3524
        %v3534 = vand.u32 2147483647, %v3525
        %v3535 = vand.u32 2147483647, %v3526
        %v3536 = vand.u32 2147483647, %v3527
        %v3537 = vand.u32 2147483647, %v3528
        %v3538 = vstv %s3529
        %v3539 = vmul.f32 %v3538, %v3530
        %v3540 = vmul.f32 %v3538, %v3531
        %v3541 = vmul.f32 %v3538, %v3532
        %v3542 = vmul.f32 %v3538, %v3533
        %v3543 = vmul.f32 %v3538, %v3534
        %v3544 = vmul.f32 %v3538, %v3535
        %v3545 = vmul.f32 %v3538, %v3536
        %v3546 = vmul.f32 %v3538, %v3537
        %v3547 = vadd.f32 %v3480, %v3539
        %v3548 = vadd.f32 %v3481, %v3540
        %v3549 = vadd.f32 %v3482, %v3541
        %v3550 = vadd.f32 %v3483, %v3542
        %v3551 = vadd.f32 %v3484, %v3543
        %v3552 = vadd.f32 %v3485, %v3544
        %v3553 = vadd.f32 %v3486, %v3545
        %v3554 = vadd.f32 %v3487, %v3546
        %3555 = vmax.xlane.f32.xlu0 %v3547
        %v3556 = vpop.xlane.xlu0 %3555
        %3557 = vmax.xlane.f32.xlu0 %v3548
        %v3558 = vpop.xlane.xlu0 %3557
        %3559 = vmax.xlane.f32.xlu0 %v3549
        %v3560 = vpop.xlane.xlu0 %3559
        %3561 = vmax.xlane.f32.xlu0 %v3550
        %v3562 = vpop.xlane.xlu0 %3561
        %3563 = vmax.xlane.f32.xlu0 %v3551
        %v3564 = vpop.xlane.xlu0 %3563
        %3565 = vmax.xlane.f32.xlu0 %v3552
        %v3566 = vpop.xlane.xlu0 %3565
        %3567 = vmax.xlane.f32.xlu0 %v3553
        %v3568 = vpop.xlane.xlu0 %3567
        %3569 = vmax.xlane.f32.xlu0 %v3554
        %v3570 = vpop.xlane.xlu0 %3569
        %v3571 = vsub.f32 %v3547, %v3556
        %v3572 = vsub.f32 %v3548, %v3558
        %v3573 = vsub.f32 %v3549, %v3560
        %v3574 = vsub.f32 %v3550, %v3562
        %v3575 = vsub.f32 %v3551, %v3564
        %v3576 = vsub.f32 %v3552, %v3566
        %v3577 = vsub.f32 %v3553, %v3568
        %v3578 = vsub.f32 %v3554, %v3570
        %v3579 = vmul.f32 %v3571, 1.442695
        %v3580 = vpow.pop %v3579
        %v3581 = vmul.f32 %v3572, 1.442695
        %v3582 = vpow.pop %v3581
        %v3583 = vmul.f32 %v3573, 1.442695
        %v3584 = vpow.pop %v3583
        %v3585 = vmul.f32 %v3574, 1.442695
        %v3586 = vpow.pop %v3585
        %v3587 = vmul.f32 %v3575, 1.442695
        %v3588 = vpow.pop %v3587
        %v3589 = vmul.f32 %v3576, 1.442695
        %v3590 = vpow.pop %v3589
        %v3591 = vmul.f32 %v3577, 1.442695
        %v3592 = vpow.pop %v3591
        %v3593 = vmul.f32 %v3578, 1.442695
        %v3594 = vpow.pop %v3593
        %v3595 = vmul.f32 %v3580, %v451
        %v3596 = vmul.f32 %v3582, %v452
        %v3597 = vmul.f32 %v3584, %v453
        %v3598 = vmul.f32 %v3586, %v454
        %v3599 = vmul.f32 %v3588, %v455
        %v3600 = vmul.f32 %v3590, %v456
        %v3601 = vmul.f32 %v3592, %v457
        %v3602 = vmul.f32 %v3594, %v458
        %3603 = vadd.xlane.f32.xlu0 %v3595
        %v3604 = vpop.xlane.xlu0 %3603
        %3605 = vadd.xlane.f32.xlu0 %v3596
        %v3606 = vpop.xlane.xlu0 %3605
        %3607 = vadd.xlane.f32.xlu0 %v3597
        %v3608 = vpop.xlane.xlu0 %3607
        %3609 = vadd.xlane.f32.xlu0 %v3598
        %v3610 = vpop.xlane.xlu0 %3609
        %3611 = vadd.xlane.f32.xlu0 %v3599
        %v3612 = vpop.xlane.xlu0 %3611
        %3613 = vadd.xlane.f32.xlu0 %v3600
        %v3614 = vpop.xlane.xlu0 %3613
        %3615 = vadd.xlane.f32.xlu0 %v3601
        %v3616 = vpop.xlane.xlu0 %3615
        %3617 = vadd.xlane.f32.xlu0 %v3602
        %v3618 = vpop.xlane.xlu0 %3617
        %v3619 = vmax.f32 %v3604, 1e-16
        %v3620 = vmax.f32 %v3606, 1e-16
        %v3621 = vmax.f32 %v3608, 1e-16
        %v3622 = vmax.f32 %v3610, 1e-16
        %v3623 = vmax.f32 %v3612, 1e-16
        %v3624 = vmax.f32 %v3614, 1e-16
        %v3625 = vmax.f32 %v3616, 1e-16
        %v3626 = vmax.f32 %v3618, 1e-16
        %v3627 = vrcp.pop %v3619
        %v3628 = vmul.f32 %v3619, %v3627
        %v3629 = vsub.f32 1.0, %v3628
        %v3630 = vmul.f32 %v3627, %v3629
        %v3631 = vadd.f32 %v3627, %v3630
        %vm3632 = vweird.f32 %v3619
        %vm3633 = vweird.f32 %v3627
        %vm3634 = vmor %vm3632, %vm3633
        %v3635 = vsel %vm3634, %v3627, %v3631
        %v3636 = vand.u32 2147483647, %v3619
        %vm3637 = vcmp.eq.f32.partialorder %v3636, 8.507059e+37
        %v3638 = vand.u32 %v3619, 2147483648
        %v3639 = vor.u32 1.1754944e-38, %v3638
        %v3640 = vsel %vm3637, %v3639, %v3635
        %v3641 = vrcp.pop %v3620
        %v3642 = vmul.f32 %v3620, %v3641
        %v3643 = vsub.f32 1.0, %v3642
        %v3644 = vmul.f32 %v3641, %v3643
        %v3645 = vadd.f32 %v3641, %v3644
        %vm3646 = vweird.f32 %v3620
        %vm3647 = vweird.f32 %v3641
        %vm3648 = vmor %vm3646, %vm3647
        %v3649 = vsel %vm3648, %v3641, %v3645
        %v3650 = vand.u32 2147483647, %v3620
        %vm3651 = vcmp.eq.f32.partialorder %v3650, 8.507059e+37
        %v3652 = vand.u32 %v3620, 2147483648
        %v3653 = vor.u32 1.1754944e-38, %v3652
        %v3654 = vsel %vm3651, %v3653, %v3649
        %v3655 = vrcp.pop %v3621
        %v3656 = vmul.f32 %v3621, %v3655
        %v3657 = vsub.f32 1.0, %v3656
        %v3658 = vmul.f32 %v3655, %v3657
        %v3659 = vadd.f32 %v3655, %v3658
        %vm3660 = vweird.f32 %v3621
        %vm3661 = vweird.f32 %v3655
        %vm3662 = vmor %vm3660, %vm3661
        %v3663 = vsel %vm3662, %v3655, %v3659
        %v3664 = vand.u32 2147483647, %v3621
        %vm3665 = vcmp.eq.f32.partialorder %v3664, 8.507059e+37
        %v3666 = vand.u32 %v3621, 2147483648
        %v3667 = vor.u32 1.1754944e-38, %v3666
        %v3668 = vsel %vm3665, %v3667, %v3663
        %v3669 = vrcp.pop %v3622
        %v3670 = vmul.f32 %v3622, %v3669
        %v3671 = vsub.f32 1.0, %v3670
        %v3672 = vmul.f32 %v3669, %v3671
        %v3673 = vadd.f32 %v3669, %v3672
        %vm3674 = vweird.f32 %v3622
        %vm3675 = vweird.f32 %v3669
        %vm3676 = vmor %vm3674, %vm3675
        %v3677 = vsel %vm3676, %v3669, %v3673
        %v3678 = vand.u32 2147483647, %v3622
        %vm3679 = vcmp.eq.f32.partialorder %v3678, 8.507059e+37
        %v3680 = vand.u32 %v3622, 2147483648
        %v3681 = vor.u32 1.1754944e-38, %v3680
        %v3682 = vsel %vm3679, %v3681, %v3677
        %v3683 = vrcp.pop %v3623
        %v3684 = vmul.f32 %v3623, %v3683
        %v3685 = vsub.f32 1.0, %v3684
        %v3686 = vmul.f32 %v3683, %v3685
        %v3687 = vadd.f32 %v3683, %v3686
        %vm3688 = vweird.f32 %v3623
        %vm3689 = vweird.f32 %v3683
        %vm3690 = vmor %vm3688, %vm3689
        %v3691 = vsel %vm3690, %v3683, %v3687
        %v3692 = vand.u32 2147483647, %v3623
        %vm3693 = vcmp.eq.f32.partialorder %v3692, 8.507059e+37
        %v3694 = vand.u32 %v3623, 2147483648
        %v3695 = vor.u32 1.1754944e-38, %v3694
        %v3696 = vsel %vm3693, %v3695, %v3691
        %v3697 = vrcp.pop %v3624
        %v3698 = vmul.f32 %v3624, %v3697
        %v3699 = vsub.f32 1.0, %v3698
        %v3700 = vmul.f32 %v3697, %v3699
        %v3701 = vadd.f32 %v3697, %v3700
        %vm3702 = vweird.f32 %v3624
        %vm3703 = vweird.f32 %v3697
        %vm3704 = vmor %vm3702, %vm3703
        %v3705 = vsel %vm3704, %v3697, %v3701
        %v3706 = vand.u32 2147483647, %v3624
        %vm3707 = vcmp.eq.f32.partialorder %v3706, 8.507059e+37
        %v3708 = vand.u32 %v3624, 2147483648
        %v3709 = vor.u32 1.1754944e-38, %v3708
        %v3710 = vsel %vm3707, %v3709, %v3705
        %v3711 = vrcp.pop %v3625
        %v3712 = vmul.f32 %v3625, %v3711
        %v3713 = vsub.f32 1.0, %v3712
        %v3714 = vmul.f32 %v3711, %v3713
        %v3715 = vadd.f32 %v3711, %v3714
        %vm3716 = vweird.f32 %v3625
        %vm3717 = vweird.f32 %v3711
        %vm3718 = vmor %vm3716, %vm3717
        %v3719 = vsel %vm3718, %v3711, %v3715
        %v3720 = vand.u32 2147483647, %v3625
        %vm3721 = vcmp.eq.f32.partialorder %v3720, 8.507059e+37
        %v3722 = vand.u32 %v3625, 2147483648
        %v3723 = vor.u32 1.1754944e-38, %v3722
        %v3724 = vsel %vm3721, %v3723, %v3719
        %v3725 = vrcp.pop %v3626
        %v3726 = vmul.f32 %v3626, %v3725
        %v3727 = vsub.f32 1.0, %v3726
        %v3728 = vmul.f32 %v3725, %v3727
        %v3729 = vadd.f32 %v3725, %v3728
        %vm3730 = vweird.f32 %v3626
        %vm3731 = vweird.f32 %v3725
        %vm3732 = vmor %vm3730, %vm3731
        %v3733 = vsel %vm3732, %v3725, %v3729
        %v3734 = vand.u32 2147483647, %v3626
        %vm3735 = vcmp.eq.f32.partialorder %v3734, 8.507059e+37
        %v3736 = vand.u32 %v3626, 2147483648
        %v3737 = vor.u32 1.1754944e-38, %v3736
        %v3738 = vsel %vm3735, %v3737, %v3733
        %v3739 = vmul.f32 %v3595, %v3640
        %v3740 = vmul.f32 %v3596, %v3654
        %v3741 = vmul.f32 %v3597, %v3668
        %v3742 = vmul.f32 %v3598, %v3682
        %v3743 = vmul.f32 %v3599, %v3696
        %v3744 = vmul.f32 %v3600, %v3710
        %v3745 = vmul.f32 %v3601, %v3724
        %v3746 = vmul.f32 %v3602, %v3738
        %3747 = vmatpush.msra.mxu0 %v440
        %3748 = vmatpush.msra.mxu0 %v439
        %3749 = vmatpush.msra.mxu0 %v438
        %3750 = vmatpush.msra.mxu0 %v437
        %3751 = vmatpush.msra.mxu0 %v436
        %3752 = vmatpush.msra.mxu0 %v435
        %3753 = vmatpush.msra.mxu0 %v434
        %3754 = vmatpush.msra.mxu0 %v433
        %3755 = vmatpush.msra.mxu0 %v432
        %3756 = vmatpush.msra.mxu0 %v431
        %3757 = vmatpush.msra.mxu0 %v430
        %3758 = vmatpush.msra.mxu0 %v429
        %3759 = vmatpush.msra.mxu0 %v428
        %3760 = vmatpush.msra.mxu0 %v427
        %3761 = vmatpush.msra.mxu0 %v426
        %3762 = vmatpush.msra.mxu0 %v425
        %3763 = vmatmul.f32.gmra.mxu0 %v3739
        %v3764 = vpop.f32.mrf.mxu0
        %v3765 = vadd.f32 0.0, %v3764
        %3766 = vmatmul.f32.gmra.mxu0 %v3740
        %v3767 = vpop.f32.mrf.mxu0
        %v3768 = vadd.f32 0.0, %v3767
        %3769 = vmatmul.f32.gmra.mxu0 %v3741
        %v3770 = vpop.f32.mrf.mxu0
        %v3771 = vadd.f32 0.0, %v3770
        %3772 = vmatmul.f32.gmra.mxu0 %v3742
        %v3773 = vpop.f32.mrf.mxu0
        %v3774 = vadd.f32 0.0, %v3773
        %3775 = vmatmul.f32.gmra.mxu0 %v3743
        %v3776 = vpop.f32.mrf.mxu0
        %v3777 = vadd.f32 0.0, %v3776
        %3778 = vmatmul.f32.gmra.mxu0 %v3744
        %v3779 = vpop.f32.mrf.mxu0
        %v3780 = vadd.f32 0.0, %v3779
        %3781 = vmatmul.f32.gmra.mxu0 %v3745
        %v3782 = vpop.f32.mrf.mxu0
        %v3783 = vadd.f32 0.0, %v3782
        %3784 = vmatmul.f32.gmra.mxu0 %v3746
        %v3785 = vpop.f32.mrf.mxu0
        %v3786 = vadd.f32 0.0, %v3785
        %3787 = vdwg.mxu0
        %3788 = vset.pattern.permute.xlu0 70
        %3789 = vperm.xlu0 %3788, %v402
        %v3790 = vpop.permute.xlu0 %3789
        %3792 = vset.pattern.permute.xlu0 70
        %3793 = vperm.xlu0 %3792, %v405
        %v3794 = vpop.permute.xlu0 %3793
        %3796 = vset.pattern.permute.xlu0 70
        %3797 = vperm.xlu0 %3796, %v408
        %v3798 = vpop.permute.xlu0 %3797
        %3800 = vset.pattern.permute.xlu0 70
        %3801 = vperm.xlu0 %3800, %v411
        %v3802 = vpop.permute.xlu0 %3801
        %3804 = vset.pattern.permute.xlu0 70
        %3805 = vperm.xlu0 %3804, %v414
        %v3806 = vpop.permute.xlu0 %3805
        %3808 = vset.pattern.permute.xlu0 70
        %3809 = vperm.xlu0 %3808, %v417
        %v3810 = vpop.permute.xlu0 %3809
        %3812 = vset.pattern.permute.xlu0 70
        %3813 = vperm.xlu0 %3812, %v420
        %v3814 = vpop.permute.xlu0 %3813
        %3816 = vset.pattern.permute.xlu0 70
        %3817 = vperm.xlu0 %3816, %v423
        %v3818 = vpop.permute.xlu0 %3817
        %v3820 = vadd.f32 %v467, %v3790
        %v3821 = vadd.f32 %v468, %v3794
        %v3822 = vadd.f32 %v469, %v3798
        %v3823 = vadd.f32 %v470, %v3802
        %v3824 = vadd.f32 %v471, %v3806
        %v3825 = vadd.f32 %v472, %v3810
        %v3826 = vadd.f32 %v473, %v3814
        %v3827 = vadd.f32 %v474, %v3818
        %v3828 = vperm.slane %v479, 6
        %v3829 = vadd.f32 %v3820, %v3828
        %v3830 = vadd.f32 %v3821, %v3828
        %v3831 = vadd.f32 %v3822, %v3828
        %v3832 = vadd.f32 %v3823, %v3828
        %v3833 = vadd.f32 %v3824, %v3828
        %v3834 = vadd.f32 %v3825, %v3828
        %v3835 = vadd.f32 %v3826, %v3828
        %v3836 = vadd.f32 %v3827, %v3828
        %3837 = vset.pattern.permute.xlu0 24
        %3838 = vperm.xlu0 %3837, %v402
        %v3839 = vpop.permute.xlu0 %3838
        %3841 = vset.pattern.permute.xlu0 24
        %3842 = vperm.xlu0 %3841, %v405
        %v3843 = vpop.permute.xlu0 %3842
        %3845 = vset.pattern.permute.xlu0 24
        %3846 = vperm.xlu0 %3845, %v408
        %v3847 = vpop.permute.xlu0 %3846
        %3849 = vset.pattern.permute.xlu0 24
        %3850 = vperm.xlu0 %3849, %v411
        %v3851 = vpop.permute.xlu0 %3850
        %3853 = vset.pattern.permute.xlu0 24
        %3854 = vperm.xlu0 %3853, %v414
        %v3855 = vpop.permute.xlu0 %3854
        %3857 = vset.pattern.permute.xlu0 24
        %3858 = vperm.xlu0 %3857, %v417
        %v3859 = vpop.permute.xlu0 %3858
        %3861 = vset.pattern.permute.xlu0 24
        %3862 = vperm.xlu0 %3861, %v420
        %v3863 = vpop.permute.xlu0 %3862
        %3865 = vset.pattern.permute.xlu0 24
        %3866 = vperm.xlu0 %3865, %v423
        %v3867 = vpop.permute.xlu0 %3866
        %v3869 = vperm.slane %v478, 0
        %v3870 = vadd.f32 %v3839, %v3869
        %v3871 = vadd.f32 %v3843, %v3869
        %v3872 = vadd.f32 %v3847, %v3869
        %v3873 = vadd.f32 %v3851, %v3869
        %v3874 = vadd.f32 %v3855, %v3869
        %v3875 = vadd.f32 %v3859, %v3869
        %v3876 = vadd.f32 %v3863, %v3869
        %v3877 = vadd.f32 %v3867, %v3869
        %s3878 = sld [smem:[#allocation2 + $0x300]]
        %v3879 = vand.u32 2147483647, %v3870
        %v3880 = vand.u32 2147483647, %v3871
        %v3881 = vand.u32 2147483647, %v3872
        %v3882 = vand.u32 2147483647, %v3873
        %v3883 = vand.u32 2147483647, %v3874
        %v3884 = vand.u32 2147483647, %v3875
        %v3885 = vand.u32 2147483647, %v3876
        %v3886 = vand.u32 2147483647, %v3877
        %v3887 = vstv %s3878
        %v3888 = vmul.f32 %v3887, %v3879
        %v3889 = vmul.f32 %v3887, %v3880
        %v3890 = vmul.f32 %v3887, %v3881
        %v3891 = vmul.f32 %v3887, %v3882
        %v3892 = vmul.f32 %v3887, %v3883
        %v3893 = vmul.f32 %v3887, %v3884
        %v3894 = vmul.f32 %v3887, %v3885
        %v3895 = vmul.f32 %v3887, %v3886
        %v3896 = vadd.f32 %v3829, %v3888
        %v3897 = vadd.f32 %v3830, %v3889
        %v3898 = vadd.f32 %v3831, %v3890
        %v3899 = vadd.f32 %v3832, %v3891
        %v3900 = vadd.f32 %v3833, %v3892
        %v3901 = vadd.f32 %v3834, %v3893
        %v3902 = vadd.f32 %v3835, %v3894
        %v3903 = vadd.f32 %v3836, %v3895
        %3904 = vset.pattern.permute.xlu0 25
        %3905 = vperm.xlu0 %3904, %v402
        %v3906 = vpop.permute.xlu0 %3905
        %3908 = vset.pattern.permute.xlu0 25
        %3909 = vperm.xlu0 %3908, %v405
        %v3910 = vpop.permute.xlu0 %3909
        %3912 = vset.pattern.permute.xlu0 25
        %3913 = vperm.xlu0 %3912, %v408
        %v3914 = vpop.permute.xlu0 %3913
        %3916 = vset.pattern.permute.xlu0 25
        %3917 = vperm.xlu0 %3916, %v411
        %v3918 = vpop.permute.xlu0 %3917
        %3920 = vset.pattern.permute.xlu0 25
        %3921 = vperm.xlu0 %3920, %v414
        %v3922 = vpop.permute.xlu0 %3921
        %3924 = vset.pattern.permute.xlu0 25
        %3925 = vperm.xlu0 %3924, %v417
        %v3926 = vpop.permute.xlu0 %3925
        %3928 = vset.pattern.permute.xlu0 25
        %3929 = vperm.xlu0 %3928, %v420
        %v3930 = vpop.permute.xlu0 %3929
        %3932 = vset.pattern.permute.xlu0 25
        %3933 = vperm.xlu0 %3932, %v423
        %v3934 = vpop.permute.xlu0 %3933
        %v3936 = vperm.slane %v478, 1
        %v3937 = vadd.f32 %v3906, %v3936
        %v3938 = vadd.f32 %v3910, %v3936
        %v3939 = vadd.f32 %v3914, %v3936
        %v3940 = vadd.f32 %v3918, %v3936
        %v3941 = vadd.f32 %v3922, %v3936
        %v3942 = vadd.f32 %v3926, %v3936
        %v3943 = vadd.f32 %v3930, %v3936
        %v3944 = vadd.f32 %v3934, %v3936
        %s3945 = sld [smem:[#allocation2 + $0x301]]
        %v3946 = vand.u32 2147483647, %v3937
        %v3947 = vand.u32 2147483647, %v3938
        %v3948 = vand.u32 2147483647, %v3939
        %v3949 = vand.u32 2147483647, %v3940
        %v3950 = vand.u32 2147483647, %v3941
        %v3951 = vand.u32 2147483647, %v3942
        %v3952 = vand.u32 2147483647, %v3943
        %v3953 = vand.u32 2147483647, %v3944
        %v3954 = vstv %s3945
        %v3955 = vmul.f32 %v3954, %v3946
        %v3956 = vmul.f32 %v3954, %v3947
        %v3957 = vmul.f32 %v3954, %v3948
        %v3958 = vmul.f32 %v3954, %v3949
        %v3959 = vmul.f32 %v3954, %v3950
        %v3960 = vmul.f32 %v3954, %v3951
        %v3961 = vmul.f32 %v3954, %v3952
        %v3962 = vmul.f32 %v3954, %v3953
        %v3963 = vadd.f32 %v3896, %v3955
        %v3964 = vadd.f32 %v3897, %v3956
        %v3965 = vadd.f32 %v3898, %v3957
        %v3966 = vadd.f32 %v3899, %v3958
        %v3967 = vadd.f32 %v3900, %v3959
        %v3968 = vadd.f32 %v3901, %v3960
        %v3969 = vadd.f32 %v3902, %v3961
        %v3970 = vadd.f32 %v3903, %v3962
        %3971 = vset.pattern.permute.xlu0 26
        %3972 = vperm.xlu0 %3971, %v402
        %v3973 = vpop.permute.xlu0 %3972
        %3975 = vset.pattern.permute.xlu0 26
        %3976 = vperm.xlu0 %3975, %v405
        %v3977 = vpop.permute.xlu0 %3976
        %3979 = vset.pattern.permute.xlu0 26
        %3980 = vperm.xlu0 %3979, %v408
        %v3981 = vpop.permute.xlu0 %3980
        %3983 = vset.pattern.permute.xlu0 26
        %3984 = vperm.xlu0 %3983, %v411
        %v3985 = vpop.permute.xlu0 %3984
        %3987 = vset.pattern.permute.xlu0 26
        %3988 = vperm.xlu0 %3987, %v414
        %v3989 = vpop.permute.xlu0 %3988
        %3991 = vset.pattern.permute.xlu0 26
        %3992 = vperm.xlu0 %3991, %v417
        %v3993 = vpop.permute.xlu0 %3992
        %3995 = vset.pattern.permute.xlu0 26
        %3996 = vperm.xlu0 %3995, %v420
        %v3997 = vpop.permute.xlu0 %3996
        %3999 = vset.pattern.permute.xlu0 26
        %4000 = vperm.xlu0 %3999, %v423
        %v4001 = vpop.permute.xlu0 %4000
        %v4003 = vperm.slane %v478, 2
        %v4004 = vadd.f32 %v3973, %v4003
        %v4005 = vadd.f32 %v3977, %v4003
        %v4006 = vadd.f32 %v3981, %v4003
        %v4007 = vadd.f32 %v3985, %v4003
        %v4008 = vadd.f32 %v3989, %v4003
        %v4009 = vadd.f32 %v3993, %v4003
        %v4010 = vadd.f32 %v3997, %v4003
        %v4011 = vadd.f32 %v4001, %v4003
        %s4012 = sld [smem:[#allocation2 + $0x302]]
        %v4013 = vand.u32 2147483647, %v4004
        %v4014 = vand.u32 2147483647, %v4005
        %v4015 = vand.u32 2147483647, %v4006
        %v4016 = vand.u32 2147483647, %v4007
        %v4017 = vand.u32 2147483647, %v4008
        %v4018 = vand.u32 2147483647, %v4009
        %v4019 = vand.u32 2147483647, %v4010
        %v4020 = vand.u32 2147483647, %v4011
        %v4021 = vstv %s4012
        %v4022 = vmul.f32 %v4021, %v4013
        %v4023 = vmul.f32 %v4021, %v4014
        %v4024 = vmul.f32 %v4021, %v4015
        %v4025 = vmul.f32 %v4021, %v4016
        %v4026 = vmul.f32 %v4021, %v4017
        %v4027 = vmul.f32 %v4021, %v4018
        %v4028 = vmul.f32 %v4021, %v4019
        %v4029 = vmul.f32 %v4021, %v4020
        %v4030 = vadd.f32 %v3963, %v4022
        %v4031 = vadd.f32 %v3964, %v4023
        %v4032 = vadd.f32 %v3965, %v4024
        %v4033 = vadd.f32 %v3966, %v4025
        %v4034 = vadd.f32 %v3967, %v4026
        %v4035 = vadd.f32 %v3968, %v4027
        %v4036 = vadd.f32 %v3969, %v4028
        %v4037 = vadd.f32 %v3970, %v4029
        %4038 = vset.pattern.permute.xlu0 27
        %4039 = vperm.xlu0 %4038, %v402
        %v4040 = vpop.permute.xlu0 %4039
        %4042 = vset.pattern.permute.xlu0 27
        %4043 = vperm.xlu0 %4042, %v405
        %v4044 = vpop.permute.xlu0 %4043
        %4046 = vset.pattern.permute.xlu0 27
        %4047 = vperm.xlu0 %4046, %v408
        %v4048 = vpop.permute.xlu0 %4047
        %4050 = vset.pattern.permute.xlu0 27
        %4051 = vperm.xlu0 %4050, %v411
        %v4052 = vpop.permute.xlu0 %4051
        %4054 = vset.pattern.permute.xlu0 27
        %4055 = vperm.xlu0 %4054, %v414
        %v4056 = vpop.permute.xlu0 %4055
        %4058 = vset.pattern.permute.xlu0 27
        %4059 = vperm.xlu0 %4058, %v417
        %v4060 = vpop.permute.xlu0 %4059
        %4062 = vset.pattern.permute.xlu0 27
        %4063 = vperm.xlu0 %4062, %v420
        %v4064 = vpop.permute.xlu0 %4063
        %4066 = vset.pattern.permute.xlu0 27
        %4067 = vperm.xlu0 %4066, %v423
        %v4068 = vpop.permute.xlu0 %4067
        %v4070 = vperm.slane %v478, 3
        %v4071 = vadd.f32 %v4040, %v4070
        %v4072 = vadd.f32 %v4044, %v4070
        %v4073 = vadd.f32 %v4048, %v4070
        %v4074 = vadd.f32 %v4052, %v4070
        %v4075 = vadd.f32 %v4056, %v4070
        %v4076 = vadd.f32 %v4060, %v4070
        %v4077 = vadd.f32 %v4064, %v4070
        %v4078 = vadd.f32 %v4068, %v4070
        %s4079 = sld [smem:[#allocation2 + $0x303]]
        %v4080 = vand.u32 2147483647, %v4071
        %v4081 = vand.u32 2147483647, %v4072
        %v4082 = vand.u32 2147483647, %v4073
        %v4083 = vand.u32 2147483647, %v4074
        %v4084 = vand.u32 2147483647, %v4075
        %v4085 = vand.u32 2147483647, %v4076
        %v4086 = vand.u32 2147483647, %v4077
        %v4087 = vand.u32 2147483647, %v4078
        %v4088 = vstv %s4079
        %v4089 = vmul.f32 %v4088, %v4080
        %v4090 = vmul.f32 %v4088, %v4081
        %v4091 = vmul.f32 %v4088, %v4082
        %v4092 = vmul.f32 %v4088, %v4083
        %v4093 = vmul.f32 %v4088, %v4084
        %v4094 = vmul.f32 %v4088, %v4085
        %v4095 = vmul.f32 %v4088, %v4086
        %v4096 = vmul.f32 %v4088, %v4087
        %v4097 = vadd.f32 %v4030, %v4089
        %v4098 = vadd.f32 %v4031, %v4090
        %v4099 = vadd.f32 %v4032, %v4091
        %v4100 = vadd.f32 %v4033, %v4092
        %v4101 = vadd.f32 %v4034, %v4093
        %v4102 = vadd.f32 %v4035, %v4094
        %v4103 = vadd.f32 %v4036, %v4095
        %v4104 = vadd.f32 %v4037, %v4096
        %4105 = vmax.xlane.f32.xlu0 %v4097
        %v4106 = vpop.xlane.xlu0 %4105
        %4107 = vmax.xlane.f32.xlu0 %v4098
        %v4108 = vpop.xlane.xlu0 %4107
        %4109 = vmax.xlane.f32.xlu0 %v4099
        %v4110 = vpop.xlane.xlu0 %4109
        %4111 = vmax.xlane.f32.xlu0 %v4100
        %v4112 = vpop.xlane.xlu0 %4111
        %4113 = vmax.xlane.f32.xlu0 %v4101
        %v4114 = vpop.xlane.xlu0 %4113
        %4115 = vmax.xlane.f32.xlu0 %v4102
        %v4116 = vpop.xlane.xlu0 %4115
        %4117 = vmax.xlane.f32.xlu0 %v4103
        %v4118 = vpop.xlane.xlu0 %4117
        %4119 = vmax.xlane.f32.xlu0 %v4104
        %v4120 = vpop.xlane.xlu0 %4119
        %v4121 = vsub.f32 %v4097, %v4106
        %v4122 = vsub.f32 %v4098, %v4108
        %v4123 = vsub.f32 %v4099, %v4110
        %v4124 = vsub.f32 %v4100, %v4112
        %v4125 = vsub.f32 %v4101, %v4114
        %v4126 = vsub.f32 %v4102, %v4116
        %v4127 = vsub.f32 %v4103, %v4118
        %v4128 = vsub.f32 %v4104, %v4120
        %v4129 = vmul.f32 %v4121, 1.442695
        %v4130 = vpow.pop %v4129
        %v4131 = vmul.f32 %v4122, 1.442695
        %v4132 = vpow.pop %v4131
        %v4133 = vmul.f32 %v4123, 1.442695
        %v4134 = vpow.pop %v4133
        %v4135 = vmul.f32 %v4124, 1.442695
        %v4136 = vpow.pop %v4135
        %v4137 = vmul.f32 %v4125, 1.442695
        %v4138 = vpow.pop %v4137
        %v4139 = vmul.f32 %v4126, 1.442695
        %v4140 = vpow.pop %v4139
        %v4141 = vmul.f32 %v4127, 1.442695
        %v4142 = vpow.pop %v4141
        %v4143 = vmul.f32 %v4128, 1.442695
        %v4144 = vpow.pop %v4143
        %v4145 = vmul.f32 %v4130, %v451
        %v4146 = vmul.f32 %v4132, %v452
        %v4147 = vmul.f32 %v4134, %v453
        %v4148 = vmul.f32 %v4136, %v454
        %v4149 = vmul.f32 %v4138, %v455
        %v4150 = vmul.f32 %v4140, %v456
        %v4151 = vmul.f32 %v4142, %v457
        %v4152 = vmul.f32 %v4144, %v458
        %4153 = vadd.xlane.f32.xlu0 %v4145
        %v4154 = vpop.xlane.xlu0 %4153
        %4155 = vadd.xlane.f32.xlu0 %v4146
        %v4156 = vpop.xlane.xlu0 %4155
        %4157 = vadd.xlane.f32.xlu0 %v4147
        %v4158 = vpop.xlane.xlu0 %4157
        %4159 = vadd.xlane.f32.xlu0 %v4148
        %v4160 = vpop.xlane.xlu0 %4159
        %4161 = vadd.xlane.f32.xlu0 %v4149
        %v4162 = vpop.xlane.xlu0 %4161
        %4163 = vadd.xlane.f32.xlu0 %v4150
        %v4164 = vpop.xlane.xlu0 %4163
        %4165 = vadd.xlane.f32.xlu0 %v4151
        %v4166 = vpop.xlane.xlu0 %4165
        %4167 = vadd.xlane.f32.xlu0 %v4152
        %v4168 = vpop.xlane.xlu0 %4167
        %v4169 = vmax.f32 %v4154, 1e-16
        %v4170 = vmax.f32 %v4156, 1e-16
        %v4171 = vmax.f32 %v4158, 1e-16
        %v4172 = vmax.f32 %v4160, 1e-16
        %v4173 = vmax.f32 %v4162, 1e-16
        %v4174 = vmax.f32 %v4164, 1e-16
        %v4175 = vmax.f32 %v4166, 1e-16
        %v4176 = vmax.f32 %v4168, 1e-16
        %v4177 = vrcp.pop %v4169
        %v4178 = vmul.f32 %v4169, %v4177
        %v4179 = vsub.f32 1.0, %v4178
        %v4180 = vmul.f32 %v4177, %v4179
        %v4181 = vadd.f32 %v4177, %v4180
        %vm4182 = vweird.f32 %v4169
        %vm4183 = vweird.f32 %v4177
        %vm4184 = vmor %vm4182, %vm4183
        %v4185 = vsel %vm4184, %v4177, %v4181
        %v4186 = vand.u32 2147483647, %v4169
        %vm4187 = vcmp.eq.f32.partialorder %v4186, 8.507059e+37
        %v4188 = vand.u32 %v4169, 2147483648
        %v4189 = vor.u32 1.1754944e-38, %v4188
        %v4190 = vsel %vm4187, %v4189, %v4185
        %v4191 = vrcp.pop %v4170
        %v4192 = vmul.f32 %v4170, %v4191
        %v4193 = vsub.f32 1.0, %v4192
        %v4194 = vmul.f32 %v4191, %v4193
        %v4195 = vadd.f32 %v4191, %v4194
        %vm4196 = vweird.f32 %v4170
        %vm4197 = vweird.f32 %v4191
        %vm4198 = vmor %vm4196, %vm4197
        %v4199 = vsel %vm4198, %v4191, %v4195
        %v4200 = vand.u32 2147483647, %v4170
        %vm4201 = vcmp.eq.f32.partialorder %v4200, 8.507059e+37
        %v4202 = vand.u32 %v4170, 2147483648
        %v4203 = vor.u32 1.1754944e-38, %v4202
        %v4204 = vsel %vm4201, %v4203, %v4199
        %v4205 = vrcp.pop %v4171
        %v4206 = vmul.f32 %v4171, %v4205
        %v4207 = vsub.f32 1.0, %v4206
        %v4208 = vmul.f32 %v4205, %v4207
        %v4209 = vadd.f32 %v4205, %v4208
        %vm4210 = vweird.f32 %v4171
        %vm4211 = vweird.f32 %v4205
        %vm4212 = vmor %vm4210, %vm4211
        %v4213 = vsel %vm4212, %v4205, %v4209
        %v4214 = vand.u32 2147483647, %v4171
        %vm4215 = vcmp.eq.f32.partialorder %v4214, 8.507059e+37
        %v4216 = vand.u32 %v4171, 2147483648
        %v4217 = vor.u32 1.1754944e-38, %v4216
        %v4218 = vsel %vm4215, %v4217, %v4213
        %v4219 = vrcp.pop %v4172
        %v4220 = vmul.f32 %v4172, %v4219
        %v4221 = vsub.f32 1.0, %v4220
        %v4222 = vmul.f32 %v4219, %v4221
        %v4223 = vadd.f32 %v4219, %v4222
        %vm4224 = vweird.f32 %v4172
        %vm4225 = vweird.f32 %v4219
        %vm4226 = vmor %vm4224, %vm4225
        %v4227 = vsel %vm4226, %v4219, %v4223
        %v4228 = vand.u32 2147483647, %v4172
        %vm4229 = vcmp.eq.f32.partialorder %v4228, 8.507059e+37
        %v4230 = vand.u32 %v4172, 2147483648
        %v4231 = vor.u32 1.1754944e-38, %v4230
        %v4232 = vsel %vm4229, %v4231, %v4227
        %v4233 = vrcp.pop %v4173
        %v4234 = vmul.f32 %v4173, %v4233
        %v4235 = vsub.f32 1.0, %v4234
        %v4236 = vmul.f32 %v4233, %v4235
        %v4237 = vadd.f32 %v4233, %v4236
        %vm4238 = vweird.f32 %v4173
        %vm4239 = vweird.f32 %v4233
        %vm4240 = vmor %vm4238, %vm4239
        %v4241 = vsel %vm4240, %v4233, %v4237
        %v4242 = vand.u32 2147483647, %v4173
        %vm4243 = vcmp.eq.f32.partialorder %v4242, 8.507059e+37
        %v4244 = vand.u32 %v4173, 2147483648
        %v4245 = vor.u32 1.1754944e-38, %v4244
        %v4246 = vsel %vm4243, %v4245, %v4241
        %v4247 = vrcp.pop %v4174
        %v4248 = vmul.f32 %v4174, %v4247
        %v4249 = vsub.f32 1.0, %v4248
        %v4250 = vmul.f32 %v4247, %v4249
        %v4251 = vadd.f32 %v4247, %v4250
        %vm4252 = vweird.f32 %v4174
        %vm4253 = vweird.f32 %v4247
        %vm4254 = vmor %vm4252, %vm4253
        %v4255 = vsel %vm4254, %v4247, %v4251
        %v4256 = vand.u32 2147483647, %v4174
        %vm4257 = vcmp.eq.f32.partialorder %v4256, 8.507059e+37
        %v4258 = vand.u32 %v4174, 2147483648
        %v4259 = vor.u32 1.1754944e-38, %v4258
        %v4260 = vsel %vm4257, %v4259, %v4255
        %v4261 = vrcp.pop %v4175
        %v4262 = vmul.f32 %v4175, %v4261
        %v4263 = vsub.f32 1.0, %v4262
        %v4264 = vmul.f32 %v4261, %v4263
        %v4265 = vadd.f32 %v4261, %v4264
        %vm4266 = vweird.f32 %v4175
        %vm4267 = vweird.f32 %v4261
        %vm4268 = vmor %vm4266, %vm4267
        %v4269 = vsel %vm4268, %v4261, %v4265
        %v4270 = vand.u32 2147483647, %v4175
        %vm4271 = vcmp.eq.f32.partialorder %v4270, 8.507059e+37
        %v4272 = vand.u32 %v4175, 2147483648
        %v4273 = vor.u32 1.1754944e-38, %v4272
        %v4274 = vsel %vm4271, %v4273, %v4269
        %v4275 = vrcp.pop %v4176
        %v4276 = vmul.f32 %v4176, %v4275
        %v4277 = vsub.f32 1.0, %v4276
        %v4278 = vmul.f32 %v4275, %v4277
        %v4279 = vadd.f32 %v4275, %v4278
        %vm4280 = vweird.f32 %v4176
        %vm4281 = vweird.f32 %v4275
        %vm4282 = vmor %vm4280, %vm4281
        %v4283 = vsel %vm4282, %v4275, %v4279
        %v4284 = vand.u32 2147483647, %v4176
        %vm4285 = vcmp.eq.f32.partialorder %v4284, 8.507059e+37
        %v4286 = vand.u32 %v4176, 2147483648
        %v4287 = vor.u32 1.1754944e-38, %v4286
        %v4288 = vsel %vm4285, %v4287, %v4283
        %v4289 = vmul.f32 %v4145, %v4190
        %v4290 = vmul.f32 %v4146, %v4204
        %v4291 = vmul.f32 %v4147, %v4218
        %v4292 = vmul.f32 %v4148, %v4232
        %v4293 = vmul.f32 %v4149, %v4246
        %v4294 = vmul.f32 %v4150, %v4260
        %v4295 = vmul.f32 %v4151, %v4274
        %v4296 = vmul.f32 %v4152, %v4288
        %4297 = vmatpush.msra.mxu0 %v440
        %4298 = vmatpush.msra.mxu0 %v439
        %4299 = vmatpush.msra.mxu0 %v438
        %4300 = vmatpush.msra.mxu0 %v437
        %4301 = vmatpush.msra.mxu0 %v436
        %4302 = vmatpush.msra.mxu0 %v435
        %4303 = vmatpush.msra.mxu0 %v434
        %4304 = vmatpush.msra.mxu0 %v433
        %4305 = vmatpush.msra.mxu0 %v432
        %4306 = vmatpush.msra.mxu0 %v431
        %4307 = vmatpush.msra.mxu0 %v430
        %4308 = vmatpush.msra.mxu0 %v429
        %4309 = vmatpush.msra.mxu0 %v428
        %4310 = vmatpush.msra.mxu0 %v427
        %4311 = vmatpush.msra.mxu0 %v426
        %4312 = vmatpush.msra.mxu0 %v425
        %4313 = vmatmul.f32.gmra.mxu0 %v4289
        %v4314 = vpop.f32.mrf.mxu0
        %v4315 = vadd.f32 0.0, %v4314
        %4316 = vmatmul.f32.gmra.mxu0 %v4290
        %v4317 = vpop.f32.mrf.mxu0
        %v4318 = vadd.f32 0.0, %v4317
        %4319 = vmatmul.f32.gmra.mxu0 %v4291
        %v4320 = vpop.f32.mrf.mxu0
        %v4321 = vadd.f32 0.0, %v4320
        %4322 = vmatmul.f32.gmra.mxu0 %v4292
        %v4323 = vpop.f32.mrf.mxu0
        %v4324 = vadd.f32 0.0, %v4323
        %4325 = vmatmul.f32.gmra.mxu0 %v4293
        %v4326 = vpop.f32.mrf.mxu0
        %v4327 = vadd.f32 0.0, %v4326
        %4328 = vmatmul.f32.gmra.mxu0 %v4294
        %v4329 = vpop.f32.mrf.mxu0
        %v4330 = vadd.f32 0.0, %v4329
        %4331 = vmatmul.f32.gmra.mxu0 %v4295
        %v4332 = vpop.f32.mrf.mxu0
        %v4333 = vadd.f32 0.0, %v4332
        %4334 = vmatmul.f32.gmra.mxu0 %v4296
        %v4335 = vpop.f32.mrf.mxu0
        %v4336 = vadd.f32 0.0, %v4335
        %4337 = vdwg.mxu0
        %4338 = vset.pattern.permute.xlu0 71
        %4339 = vperm.xlu0 %4338, %v402
        %v4340 = vpop.permute.xlu0 %4339
        %4342 = vset.pattern.permute.xlu0 71
        %4343 = vperm.xlu0 %4342, %v405
        %v4344 = vpop.permute.xlu0 %4343
        %4346 = vset.pattern.permute.xlu0 71
        %4347 = vperm.xlu0 %4346, %v408
        %v4348 = vpop.permute.xlu0 %4347
        %4350 = vset.pattern.permute.xlu0 71
        %4351 = vperm.xlu0 %4350, %v411
        %v4352 = vpop.permute.xlu0 %4351
        %4354 = vset.pattern.permute.xlu0 71
        %4355 = vperm.xlu0 %4354, %v414
        %v4356 = vpop.permute.xlu0 %4355
        %4358 = vset.pattern.permute.xlu0 71
        %4359 = vperm.xlu0 %4358, %v417
        %v4360 = vpop.permute.xlu0 %4359
        %4362 = vset.pattern.permute.xlu0 71
        %4363 = vperm.xlu0 %4362, %v420
        %v4364 = vpop.permute.xlu0 %4363
        %4366 = vset.pattern.permute.xlu0 71
        %4367 = vperm.xlu0 %4366, %v423
        %v4368 = vpop.permute.xlu0 %4367
        %v4370 = vadd.f32 %v467, %v4340
        %v4371 = vadd.f32 %v468, %v4344
        %v4372 = vadd.f32 %v469, %v4348
        %v4373 = vadd.f32 %v470, %v4352
        %v4374 = vadd.f32 %v471, %v4356
        %v4375 = vadd.f32 %v472, %v4360
        %v4376 = vadd.f32 %v473, %v4364
        %v4377 = vadd.f32 %v474, %v4368
        %v4378 = vperm.slane %v479, 7
        %v4379 = vadd.f32 %v4370, %v4378
        %v4380 = vadd.f32 %v4371, %v4378
        %v4381 = vadd.f32 %v4372, %v4378
        %v4382 = vadd.f32 %v4373, %v4378
        %v4383 = vadd.f32 %v4374, %v4378
        %v4384 = vadd.f32 %v4375, %v4378
        %v4385 = vadd.f32 %v4376, %v4378
        %v4386 = vadd.f32 %v4377, %v4378
        %4387 = vset.pattern.permute.xlu0 28
        %4388 = vperm.xlu0 %4387, %v402
        %v4389 = vpop.permute.xlu0 %4388
        %4391 = vset.pattern.permute.xlu0 28
        %4392 = vperm.xlu0 %4391, %v405
        %v4393 = vpop.permute.xlu0 %4392
        %4395 = vset.pattern.permute.xlu0 28
        %4396 = vperm.xlu0 %4395, %v408
        %v4397 = vpop.permute.xlu0 %4396
        %4399 = vset.pattern.permute.xlu0 28
        %4400 = vperm.xlu0 %4399, %v411
        %v4401 = vpop.permute.xlu0 %4400
        %4403 = vset.pattern.permute.xlu0 28
        %4404 = vperm.xlu0 %4403, %v414
        %v4405 = vpop.permute.xlu0 %4404
        %4407 = vset.pattern.permute.xlu0 28
        %4408 = vperm.xlu0 %4407, %v417
        %v4409 = vpop.permute.xlu0 %4408
        %4411 = vset.pattern.permute.xlu0 28
        %4412 = vperm.xlu0 %4411, %v420
        %v4413 = vpop.permute.xlu0 %4412
        %4415 = vset.pattern.permute.xlu0 28
        %4416 = vperm.xlu0 %4415, %v423
        %v4417 = vpop.permute.xlu0 %4416
        %v4419 = vperm.slane %v478, 4
        %v4420 = vadd.f32 %v4389, %v4419
        %v4421 = vadd.f32 %v4393, %v4419
        %v4422 = vadd.f32 %v4397, %v4419
        %v4423 = vadd.f32 %v4401, %v4419
        %v4424 = vadd.f32 %v4405, %v4419
        %v4425 = vadd.f32 %v4409, %v4419
        %v4426 = vadd.f32 %v4413, %v4419
        %v4427 = vadd.f32 %v4417, %v4419
        %s4428 = sld [smem:[#allocation2 + $0x380]]
        %v4429 = vand.u32 2147483647, %v4420
        %v4430 = vand.u32 2147483647, %v4421
        %v4431 = vand.u32 2147483647, %v4422
        %v4432 = vand.u32 2147483647, %v4423
        %v4433 = vand.u32 2147483647, %v4424
        %v4434 = vand.u32 2147483647, %v4425
        %v4435 = vand.u32 2147483647, %v4426
        %v4436 = vand.u32 2147483647, %v4427
        %v4437 = vstv %s4428
        %v4438 = vmul.f32 %v4437, %v4429
        %v4439 = vmul.f32 %v4437, %v4430
        %v4440 = vmul.f32 %v4437, %v4431
        %v4441 = vmul.f32 %v4437, %v4432
        %v4442 = vmul.f32 %v4437, %v4433
        %v4443 = vmul.f32 %v4437, %v4434
        %v4444 = vmul.f32 %v4437, %v4435
        %v4445 = vmul.f32 %v4437, %v4436
        %v4446 = vadd.f32 %v4379, %v4438
        %v4447 = vadd.f32 %v4380, %v4439
        %v4448 = vadd.f32 %v4381, %v4440
        %v4449 = vadd.f32 %v4382, %v4441
        %v4450 = vadd.f32 %v4383, %v4442
        %v4451 = vadd.f32 %v4384, %v4443
        %v4452 = vadd.f32 %v4385, %v4444
        %v4453 = vadd.f32 %v4386, %v4445
        %4454 = vset.pattern.permute.xlu0 29
        %4455 = vperm.xlu0 %4454, %v402
        %v4456 = vpop.permute.xlu0 %4455
        %4458 = vset.pattern.permute.xlu0 29
        %4459 = vperm.xlu0 %4458, %v405
        %v4460 = vpop.permute.xlu0 %4459
        %4462 = vset.pattern.permute.xlu0 29
        %4463 = vperm.xlu0 %4462, %v408
        %v4464 = vpop.permute.xlu0 %4463
        %4466 = vset.pattern.permute.xlu0 29
        %4467 = vperm.xlu0 %4466, %v411
        %v4468 = vpop.permute.xlu0 %4467
        %4470 = vset.pattern.permute.xlu0 29
        %4471 = vperm.xlu0 %4470, %v414
        %v4472 = vpop.permute.xlu0 %4471
        %4474 = vset.pattern.permute.xlu0 29
        %4475 = vperm.xlu0 %4474, %v417
        %v4476 = vpop.permute.xlu0 %4475
        %4478 = vset.pattern.permute.xlu0 29
        %4479 = vperm.xlu0 %4478, %v420
        %v4480 = vpop.permute.xlu0 %4479
        %4482 = vset.pattern.permute.xlu0 29
        %4483 = vperm.xlu0 %4482, %v423
        %v4484 = vpop.permute.xlu0 %4483
        %v4486 = vperm.slane %v478, 5
        %v4487 = vadd.f32 %v4456, %v4486
        %v4488 = vadd.f32 %v4460, %v4486
        %v4489 = vadd.f32 %v4464, %v4486
        %v4490 = vadd.f32 %v4468, %v4486
        %v4491 = vadd.f32 %v4472, %v4486
        %v4492 = vadd.f32 %v4476, %v4486
        %v4493 = vadd.f32 %v4480, %v4486
        %v4494 = vadd.f32 %v4484, %v4486
        %s4495 = sld [smem:[#allocation2 + $0x381]]
        %v4496 = vand.u32 2147483647, %v4487
        %v4497 = vand.u32 2147483647, %v4488
        %v4498 = vand.u32 2147483647, %v4489
        %v4499 = vand.u32 2147483647, %v4490
        %v4500 = vand.u32 2147483647, %v4491
        %v4501 = vand.u32 2147483647, %v4492
        %v4502 = vand.u32 2147483647, %v4493
        %v4503 = vand.u32 2147483647, %v4494
        %v4504 = vstv %s4495
        %v4505 = vmul.f32 %v4504, %v4496
        %v4506 = vmul.f32 %v4504, %v4497
        %v4507 = vmul.f32 %v4504, %v4498
        %v4508 = vmul.f32 %v4504, %v4499
        %v4509 = vmul.f32 %v4504, %v4500
        %v4510 = vmul.f32 %v4504, %v4501
        %v4511 = vmul.f32 %v4504, %v4502
        %v4512 = vmul.f32 %v4504, %v4503
        %v4513 = vadd.f32 %v4446, %v4505
        %v4514 = vadd.f32 %v4447, %v4506
        %v4515 = vadd.f32 %v4448, %v4507
        %v4516 = vadd.f32 %v4449, %v4508
        %v4517 = vadd.f32 %v4450, %v4509
        %v4518 = vadd.f32 %v4451, %v4510
        %v4519 = vadd.f32 %v4452, %v4511
        %v4520 = vadd.f32 %v4453, %v4512
        %4521 = vset.pattern.permute.xlu0 30
        %4522 = vperm.xlu0 %4521, %v402
        %v4523 = vpop.permute.xlu0 %4522
        %4525 = vset.pattern.permute.xlu0 30
        %4526 = vperm.xlu0 %4525, %v405
        %v4527 = vpop.permute.xlu0 %4526
        %4529 = vset.pattern.permute.xlu0 30
        %4530 = vperm.xlu0 %4529, %v408
        %v4531 = vpop.permute.xlu0 %4530
        %4533 = vset.pattern.permute.xlu0 30
        %4534 = vperm.xlu0 %4533, %v411
        %v4535 = vpop.permute.xlu0 %4534
        %4537 = vset.pattern.permute.xlu0 30
        %4538 = vperm.xlu0 %4537, %v414
        %v4539 = vpop.permute.xlu0 %4538
        %4541 = vset.pattern.permute.xlu0 30
        %4542 = vperm.xlu0 %4541, %v417
        %v4543 = vpop.permute.xlu0 %4542
        %4545 = vset.pattern.permute.xlu0 30
        %4546 = vperm.xlu0 %4545, %v420
        %v4547 = vpop.permute.xlu0 %4546
        %4549 = vset.pattern.permute.xlu0 30
        %4550 = vperm.xlu0 %4549, %v423
        %v4551 = vpop.permute.xlu0 %4550
        %v4553 = vperm.slane %v478, 6
        %v4554 = vadd.f32 %v4523, %v4553
        %v4555 = vadd.f32 %v4527, %v4553
        %v4556 = vadd.f32 %v4531, %v4553
        %v4557 = vadd.f32 %v4535, %v4553
        %v4558 = vadd.f32 %v4539, %v4553
        %v4559 = vadd.f32 %v4543, %v4553
        %v4560 = vadd.f32 %v4547, %v4553
        %v4561 = vadd.f32 %v4551, %v4553
        %s4562 = sld [smem:[#allocation2 + $0x382]]
        %v4563 = vand.u32 2147483647, %v4554
        %v4564 = vand.u32 2147483647, %v4555
        %v4565 = vand.u32 2147483647, %v4556
        %v4566 = vand.u32 2147483647, %v4557
        %v4567 = vand.u32 2147483647, %v4558
        %v4568 = vand.u32 2147483647, %v4559
        %v4569 = vand.u32 2147483647, %v4560
        %v4570 = vand.u32 2147483647, %v4561
        %v4571 = vstv %s4562
        %v4572 = vmul.f32 %v4571, %v4563
        %v4573 = vmul.f32 %v4571, %v4564
        %v4574 = vmul.f32 %v4571, %v4565
        %v4575 = vmul.f32 %v4571, %v4566
        %v4576 = vmul.f32 %v4571, %v4567
        %v4577 = vmul.f32 %v4571, %v4568
        %v4578 = vmul.f32 %v4571, %v4569
        %v4579 = vmul.f32 %v4571, %v4570
        %v4580 = vadd.f32 %v4513, %v4572
        %v4581 = vadd.f32 %v4514, %v4573
        %v4582 = vadd.f32 %v4515, %v4574
        %v4583 = vadd.f32 %v4516, %v4575
        %v4584 = vadd.f32 %v4517, %v4576
        %v4585 = vadd.f32 %v4518, %v4577
        %v4586 = vadd.f32 %v4519, %v4578
        %v4587 = vadd.f32 %v4520, %v4579
        %4588 = vset.pattern.permute.xlu0 31
        %4589 = vperm.xlu0 %4588, %v402
        %v4590 = vpop.permute.xlu0 %4589
        %4592 = vset.pattern.permute.xlu0 31
        %4593 = vperm.xlu0 %4592, %v405
        %v4594 = vpop.permute.xlu0 %4593
        %4596 = vset.pattern.permute.xlu0 31
        %4597 = vperm.xlu0 %4596, %v408
        %v4598 = vpop.permute.xlu0 %4597
        %4600 = vset.pattern.permute.xlu0 31
        %4601 = vperm.xlu0 %4600, %v411
        %v4602 = vpop.permute.xlu0 %4601
        %4604 = vset.pattern.permute.xlu0 31
        %4605 = vperm.xlu0 %4604, %v414
        %v4606 = vpop.permute.xlu0 %4605
        %4608 = vset.pattern.permute.xlu0 31
        %4609 = vperm.xlu0 %4608, %v417
        %v4610 = vpop.permute.xlu0 %4609
        %4612 = vset.pattern.permute.xlu0 31
        %4613 = vperm.xlu0 %4612, %v420
        %v4614 = vpop.permute.xlu0 %4613
        %4616 = vset.pattern.permute.xlu0 31
        %4617 = vperm.xlu0 %4616, %v423
        %v4618 = vpop.permute.xlu0 %4617
        %v4620 = vperm.slane %v478, 7
        %v4621 = vadd.f32 %v4590, %v4620
        %v4622 = vadd.f32 %v4594, %v4620
        %v4623 = vadd.f32 %v4598, %v4620
        %v4624 = vadd.f32 %v4602, %v4620
        %v4625 = vadd.f32 %v4606, %v4620
        %v4626 = vadd.f32 %v4610, %v4620
        %v4627 = vadd.f32 %v4614, %v4620
        %v4628 = vadd.f32 %v4618, %v4620
        %s4629 = sld [smem:[#allocation2 + $0x383]]
        %v4630 = vand.u32 2147483647, %v4621
        %v4631 = vand.u32 2147483647, %v4622
        %v4632 = vand.u32 2147483647, %v4623
        %v4633 = vand.u32 2147483647, %v4624
        %v4634 = vand.u32 2147483647, %v4625
        %v4635 = vand.u32 2147483647, %v4626
        %v4636 = vand.u32 2147483647, %v4627
        %v4637 = vand.u32 2147483647, %v4628
        %v4638 = vstv %s4629
        %v4639 = vmul.f32 %v4638, %v4630
        %v4640 = vmul.f32 %v4638, %v4631
        %v4641 = vmul.f32 %v4638, %v4632
        %v4642 = vmul.f32 %v4638, %v4633
        %v4643 = vmul.f32 %v4638, %v4634
        %v4644 = vmul.f32 %v4638, %v4635
        %v4645 = vmul.f32 %v4638, %v4636
        %v4646 = vmul.f32 %v4638, %v4637
        %v4647 = vadd.f32 %v4580, %v4639
        %v4648 = vadd.f32 %v4581, %v4640
        %v4649 = vadd.f32 %v4582, %v4641
        %v4650 = vadd.f32 %v4583, %v4642
        %v4651 = vadd.f32 %v4584, %v4643
        %v4652 = vadd.f32 %v4585, %v4644
        %v4653 = vadd.f32 %v4586, %v4645
        %v4654 = vadd.f32 %v4587, %v4646
        %4655 = vmax.xlane.f32.xlu0 %v4647
        %v4656 = vpop.xlane.xlu0 %4655
        %4657 = vmax.xlane.f32.xlu0 %v4648
        %v4658 = vpop.xlane.xlu0 %4657
        %4659 = vmax.xlane.f32.xlu0 %v4649
        %v4660 = vpop.xlane.xlu0 %4659
        %4661 = vmax.xlane.f32.xlu0 %v4650
        %v4662 = vpop.xlane.xlu0 %4661
        %4663 = vmax.xlane.f32.xlu0 %v4651
        %v4664 = vpop.xlane.xlu0 %4663
        %4665 = vmax.xlane.f32.xlu0 %v4652
        %v4666 = vpop.xlane.xlu0 %4665
        %4667 = vmax.xlane.f32.xlu0 %v4653
        %v4668 = vpop.xlane.xlu0 %4667
        %4669 = vmax.xlane.f32.xlu0 %v4654
        %v4670 = vpop.xlane.xlu0 %4669
        %v4671 = vsub.f32 %v4647, %v4656
        %v4672 = vsub.f32 %v4648, %v4658
        %v4673 = vsub.f32 %v4649, %v4660
        %v4674 = vsub.f32 %v4650, %v4662
        %v4675 = vsub.f32 %v4651, %v4664
        %v4676 = vsub.f32 %v4652, %v4666
        %v4677 = vsub.f32 %v4653, %v4668
        %v4678 = vsub.f32 %v4654, %v4670
        %v4679 = vmul.f32 %v4671, 1.442695
        %v4680 = vpow.pop %v4679
        %v4681 = vmul.f32 %v4672, 1.442695
        %v4682 = vpow.pop %v4681
        %v4683 = vmul.f32 %v4673, 1.442695
        %v4684 = vpow.pop %v4683
        %v4685 = vmul.f32 %v4674, 1.442695
        %v4686 = vpow.pop %v4685
        %v4687 = vmul.f32 %v4675, 1.442695
        %v4688 = vpow.pop %v4687
        %v4689 = vmul.f32 %v4676, 1.442695
        %v4690 = vpow.pop %v4689
        %v4691 = vmul.f32 %v4677, 1.442695
        %v4692 = vpow.pop %v4691
        %v4693 = vmul.f32 %v4678, 1.442695
        %v4694 = vpow.pop %v4693
        %v4695 = vmul.f32 %v4680, %v451
        %v4696 = vmul.f32 %v4682, %v452
        %v4697 = vmul.f32 %v4684, %v453
        %v4698 = vmul.f32 %v4686, %v454
        %v4699 = vmul.f32 %v4688, %v455
        %v4700 = vmul.f32 %v4690, %v456
        %v4701 = vmul.f32 %v4692, %v457
        %v4702 = vmul.f32 %v4694, %v458
        %4703 = vadd.xlane.f32.xlu0 %v4695
        %v4704 = vpop.xlane.xlu0 %4703
        %4705 = vadd.xlane.f32.xlu0 %v4696
        %v4706 = vpop.xlane.xlu0 %4705
        %4707 = vadd.xlane.f32.xlu0 %v4697
        %v4708 = vpop.xlane.xlu0 %4707
        %4709 = vadd.xlane.f32.xlu0 %v4698
        %v4710 = vpop.xlane.xlu0 %4709
        %4711 = vadd.xlane.f32.xlu0 %v4699
        %v4712 = vpop.xlane.xlu0 %4711
        %4713 = vadd.xlane.f32.xlu0 %v4700
        %v4714 = vpop.xlane.xlu0 %4713
        %4715 = vadd.xlane.f32.xlu0 %v4701
        %v4716 = vpop.xlane.xlu0 %4715
        %4717 = vadd.xlane.f32.xlu0 %v4702
        %v4718 = vpop.xlane.xlu0 %4717
        %v4719 = vmax.f32 %v4704, 1e-16
        %v4720 = vmax.f32 %v4706, 1e-16
        %v4721 = vmax.f32 %v4708, 1e-16
        %v4722 = vmax.f32 %v4710, 1e-16
        %v4723 = vmax.f32 %v4712, 1e-16
        %v4724 = vmax.f32 %v4714, 1e-16
        %v4725 = vmax.f32 %v4716, 1e-16
        %v4726 = vmax.f32 %v4718, 1e-16
        %v4727 = vrcp.pop %v4719
        %v4728 = vmul.f32 %v4719, %v4727
        %v4729 = vsub.f32 1.0, %v4728
        %v4730 = vmul.f32 %v4727, %v4729
        %v4731 = vadd.f32 %v4727, %v4730
        %vm4732 = vweird.f32 %v4719
        %vm4733 = vweird.f32 %v4727
        %vm4734 = vmor %vm4732, %vm4733
        %v4735 = vsel %vm4734, %v4727, %v4731
        %v4736 = vand.u32 2147483647, %v4719
        %vm4737 = vcmp.eq.f32.partialorder %v4736, 8.507059e+37
        %v4738 = vand.u32 %v4719, 2147483648
        %v4739 = vor.u32 1.1754944e-38, %v4738
        %v4740 = vsel %vm4737, %v4739, %v4735
        %v4741 = vrcp.pop %v4720
        %v4742 = vmul.f32 %v4720, %v4741
        %v4743 = vsub.f32 1.0, %v4742
        %v4744 = vmul.f32 %v4741, %v4743
        %v4745 = vadd.f32 %v4741, %v4744
        %vm4746 = vweird.f32 %v4720
        %vm4747 = vweird.f32 %v4741
        %vm4748 = vmor %vm4746, %vm4747
        %v4749 = vsel %vm4748, %v4741, %v4745
        %v4750 = vand.u32 2147483647, %v4720
        %vm4751 = vcmp.eq.f32.partialorder %v4750, 8.507059e+37
        %v4752 = vand.u32 %v4720, 2147483648
        %v4753 = vor.u32 1.1754944e-38, %v4752
        %v4754 = vsel %vm4751, %v4753, %v4749
        %v4755 = vrcp.pop %v4721
        %v4756 = vmul.f32 %v4721, %v4755
        %v4757 = vsub.f32 1.0, %v4756
        %v4758 = vmul.f32 %v4755, %v4757
        %v4759 = vadd.f32 %v4755, %v4758
        %vm4760 = vweird.f32 %v4721
        %vm4761 = vweird.f32 %v4755
        %vm4762 = vmor %vm4760, %vm4761
        %v4763 = vsel %vm4762, %v4755, %v4759
        %v4764 = vand.u32 2147483647, %v4721
        %vm4765 = vcmp.eq.f32.partialorder %v4764, 8.507059e+37
        %v4766 = vand.u32 %v4721, 2147483648
        %v4767 = vor.u32 1.1754944e-38, %v4766
        %v4768 = vsel %vm4765, %v4767, %v4763
        %v4769 = vrcp.pop %v4722
        %v4770 = vmul.f32 %v4722, %v4769
        %v4771 = vsub.f32 1.0, %v4770
        %v4772 = vmul.f32 %v4769, %v4771
        %v4773 = vadd.f32 %v4769, %v4772
        %vm4774 = vweird.f32 %v4722
        %vm4775 = vweird.f32 %v4769
        %vm4776 = vmor %vm4774, %vm4775
        %v4777 = vsel %vm4776, %v4769, %v4773
        %v4778 = vand.u32 2147483647, %v4722
        %vm4779 = vcmp.eq.f32.partialorder %v4778, 8.507059e+37
        %v4780 = vand.u32 %v4722, 2147483648
        %v4781 = vor.u32 1.1754944e-38, %v4780
        %v4782 = vsel %vm4779, %v4781, %v4777
        %v4783 = vrcp.pop %v4723
        %v4784 = vmul.f32 %v4723, %v4783
        %v4785 = vsub.f32 1.0, %v4784
        %v4786 = vmul.f32 %v4783, %v4785
        %v4787 = vadd.f32 %v4783, %v4786
        %vm4788 = vweird.f32 %v4723
        %vm4789 = vweird.f32 %v4783
        %vm4790 = vmor %vm4788, %vm4789
        %v4791 = vsel %vm4790, %v4783, %v4787
        %v4792 = vand.u32 2147483647, %v4723
        %vm4793 = vcmp.eq.f32.partialorder %v4792, 8.507059e+37
        %v4794 = vand.u32 %v4723, 2147483648
        %v4795 = vor.u32 1.1754944e-38, %v4794
        %v4796 = vsel %vm4793, %v4795, %v4791
        %v4797 = vrcp.pop %v4724
        %v4798 = vmul.f32 %v4724, %v4797
        %v4799 = vsub.f32 1.0, %v4798
        %v4800 = vmul.f32 %v4797, %v4799
        %v4801 = vadd.f32 %v4797, %v4800
        %vm4802 = vweird.f32 %v4724
        %vm4803 = vweird.f32 %v4797
        %vm4804 = vmor %vm4802, %vm4803
        %v4805 = vsel %vm4804, %v4797, %v4801
        %v4806 = vand.u32 2147483647, %v4724
        %vm4807 = vcmp.eq.f32.partialorder %v4806, 8.507059e+37
        %v4808 = vand.u32 %v4724, 2147483648
        %v4809 = vor.u32 1.1754944e-38, %v4808
        %v4810 = vsel %vm4807, %v4809, %v4805
        %v4811 = vrcp.pop %v4725
        %v4812 = vmul.f32 %v4725, %v4811
        %v4813 = vsub.f32 1.0, %v4812
        %v4814 = vmul.f32 %v4811, %v4813
        %v4815 = vadd.f32 %v4811, %v4814
        %vm4816 = vweird.f32 %v4725
        %vm4817 = vweird.f32 %v4811
        %vm4818 = vmor %vm4816, %vm4817
        %v4819 = vsel %vm4818, %v4811, %v4815
        %v4820 = vand.u32 2147483647, %v4725
        %vm4821 = vcmp.eq.f32.partialorder %v4820, 8.507059e+37
        %v4822 = vand.u32 %v4725, 2147483648
        %v4823 = vor.u32 1.1754944e-38, %v4822
        %v4824 = vsel %vm4821, %v4823, %v4819
        %v4825 = vrcp.pop %v4726
        %v4826 = vmul.f32 %v4726, %v4825
        %v4827 = vsub.f32 1.0, %v4826
        %v4828 = vmul.f32 %v4825, %v4827
        %v4829 = vadd.f32 %v4825, %v4828
        %vm4830 = vweird.f32 %v4726
        %vm4831 = vweird.f32 %v4825
        %vm4832 = vmor %vm4830, %vm4831
        %v4833 = vsel %vm4832, %v4825, %v4829
        %v4834 = vand.u32 2147483647, %v4726
        %vm4835 = vcmp.eq.f32.partialorder %v4834, 8.507059e+37
        %v4836 = vand.u32 %v4726, 2147483648
        %v4837 = vor.u32 1.1754944e-38, %v4836
        %v4838 = vsel %vm4835, %v4837, %v4833
        %v4839 = vmul.f32 %v4695, %v4740
        %v4840 = vmul.f32 %v4696, %v4754
        %v4841 = vmul.f32 %v4697, %v4768
        %v4842 = vmul.f32 %v4698, %v4782
        %v4843 = vmul.f32 %v4699, %v4796
        %v4844 = vmul.f32 %v4700, %v4810
        %v4845 = vmul.f32 %v4701, %v4824
        %v4846 = vmul.f32 %v4702, %v4838
        %4847 = vmatpush.msra.mxu0 %v440
        %4848 = vmatpush.msra.mxu0 %v439
        %4849 = vmatpush.msra.mxu0 %v438
        %4850 = vmatpush.msra.mxu0 %v437
        %4851 = vmatpush.msra.mxu0 %v436
        %4852 = vmatpush.msra.mxu0 %v435
        %4853 = vmatpush.msra.mxu0 %v434
        %4854 = vmatpush.msra.mxu0 %v433
        %4855 = vmatpush.msra.mxu0 %v432
        %4856 = vmatpush.msra.mxu0 %v431
        %4857 = vmatpush.msra.mxu0 %v430
        %4858 = vmatpush.msra.mxu0 %v429
        %4859 = vmatpush.msra.mxu0 %v428
        %4860 = vmatpush.msra.mxu0 %v427
        %4861 = vmatpush.msra.mxu0 %v426
        %4862 = vmatpush.msra.mxu0 %v425
        %4863 = vmatmul.f32.gmra.mxu0 %v4839
        %v4864 = vpop.f32.mrf.mxu0
        %v4865 = vadd.f32 0.0, %v4864
        %4866 = vmatmul.f32.gmra.mxu0 %v4840
        %v4867 = vpop.f32.mrf.mxu0
        %v4868 = vadd.f32 0.0, %v4867
        %4869 = vmatmul.f32.gmra.mxu0 %v4841
        %v4870 = vpop.f32.mrf.mxu0
        %v4871 = vadd.f32 0.0, %v4870
        %4872 = vmatmul.f32.gmra.mxu0 %v4842
        %v4873 = vpop.f32.mrf.mxu0
        %v4874 = vadd.f32 0.0, %v4873
        %4875 = vmatmul.f32.gmra.mxu0 %v4843
        %v4876 = vpop.f32.mrf.mxu0
        %v4877 = vadd.f32 0.0, %v4876
        %4878 = vmatmul.f32.gmra.mxu0 %v4844
        %v4879 = vpop.f32.mrf.mxu0
        %v4880 = vadd.f32 0.0, %v4879
        %4881 = vmatmul.f32.gmra.mxu0 %v4845
        %v4882 = vpop.f32.mrf.mxu0
        %v4883 = vadd.f32 0.0, %v4882
        %4884 = vmatmul.f32.gmra.mxu0 %v4846
        %v4885 = vpop.f32.mrf.mxu0
        %v4886 = vadd.f32 0.0, %v4885
        %4887 = vdwg.mxu0
        %vm4888 = vcmask 31744
        %v4889 = vsel %vm4888, %v1015, %v1565
        %v4890 = vsel %vm4888, %v1018, %v1568
        %v4891 = vsel %vm4888, %v1021, %v1571
        %v4892 = vsel %vm4888, %v1024, %v1574
        %v4893 = vsel %vm4888, %v1027, %v1577
        %v4894 = vsel %vm4888, %v1030, %v1580
        %v4895 = vsel %vm4888, %v1033, %v1583
        %v4896 = vsel %vm4888, %v1036, %v1586
        %vm4897 = vcmask 64512
        %v4898 = vsel %vm4897, %v4889, %v2115
        %v4899 = vsel %vm4897, %v4890, %v2118
        %v4900 = vsel %vm4897, %v4891, %v2121
        %v4901 = vsel %vm4897, %v4892, %v2124
        %v4902 = vsel %vm4897, %v4893, %v2127
        %v4903 = vsel %vm4897, %v4894, %v2130
        %v4904 = vsel %vm4897, %v4895, %v2133
        %v4905 = vsel %vm4897, %v4896, %v2136
        %vm4906 = vcmask 97280
        %v4907 = vsel %vm4906, %v4898, %v2665
        %v4908 = vsel %vm4906, %v4899, %v2668
        %v4909 = vsel %vm4906, %v4900, %v2671
        %v4910 = vsel %vm4906, %v4901, %v2674
        %v4911 = vsel %vm4906, %v4902, %v2677
        %v4912 = vsel %vm4906, %v4903, %v2680
        %v4913 = vsel %vm4906, %v4904, %v2683
        %v4914 = vsel %vm4906, %v4905, %v2686
        %v4915 = vsel %vm359, %v4907, %v3215
        %v4916 = vsel %vm359, %v4908, %v3218
        %v4917 = vsel %vm359, %v4909, %v3221
        %v4918 = vsel %vm359, %v4910, %v3224
        %v4919 = vsel %vm359, %v4911, %v3227
        %v4920 = vsel %vm359, %v4912, %v3230
        %v4921 = vsel %vm359, %v4913, %v3233
        %v4922 = vsel %vm359, %v4914, %v3236
        %vm4923 = vcmask 162816
        %v4924 = vsel %vm4923, %v4915, %v3765
        %v4925 = vsel %vm4923, %v4916, %v3768
        %v4926 = vsel %vm4923, %v4917, %v3771
        %v4927 = vsel %vm4923, %v4918, %v3774
        %v4928 = vsel %vm4923, %v4919, %v3777
        %v4929 = vsel %vm4923, %v4920, %v3780
        %v4930 = vsel %vm4923, %v4921, %v3783
        %v4931 = vsel %vm4923, %v4922, %v3786
        %vm4932 = vcmask 195584
        %v4933 = vsel %vm4932, %v4924, %v4315
        %v4934 = vsel %vm4932, %v4925, %v4318
        %v4935 = vsel %vm4932, %v4926, %v4321
        %v4936 = vsel %vm4932, %v4927, %v4324
        %v4937 = vsel %vm4932, %v4928, %v4327
        %v4938 = vsel %vm4932, %v4929, %v4330
        %v4939 = vsel %vm4932, %v4930, %v4333
        %v4940 = vsel %vm4932, %v4931, %v4336
        %vm4941 = vcmask 228352
        %v4942 = vsel %vm4941, %v4933, %v4865
        %v4943 = vsel %vm4941, %v4934, %v4868
        %v4944 = vsel %vm4941, %v4935, %v4871
        %v4945 = vsel %vm4941, %v4936, %v4874
        %v4946 = vsel %vm4941, %v4937, %v4877
        %v4947 = vsel %vm4941, %v4938, %v4880
        %v4948 = vsel %vm4941, %v4939, %v4883
        %v4949 = vsel %vm4941, %v4940, %v4886
        %4950 = vrot.lane.b32.xlu0 %v402, 96
        %v4951 = vpop.permute.xlu0 %4950
        %4952 = vrot.lane.b32.xlu0 %v405, 96
        %v4953 = vpop.permute.xlu0 %4952
        %4954 = vrot.lane.b32.xlu0 %v408, 96
        %v4955 = vpop.permute.xlu0 %4954
        %4956 = vrot.lane.b32.xlu0 %v411, 96
        %v4957 = vpop.permute.xlu0 %4956
        %4958 = vrot.lane.b32.xlu0 %v414, 96
        %v4959 = vpop.permute.xlu0 %4958
        %4960 = vrot.lane.b32.xlu0 %v417, 96
        %v4961 = vpop.permute.xlu0 %4960
        %4962 = vrot.lane.b32.xlu0 %v420, 96
        %v4963 = vpop.permute.xlu0 %4962
        %4964 = vrot.lane.b32.xlu0 %v423, 96
        %v4965 = vpop.permute.xlu0 %4964
        %v4974 = vadd.f32 %v4942, %v4951
        %v4975 = vadd.f32 %v4943, %v4953
        %v4976 = vadd.f32 %v4944, %v4955
        %v4977 = vadd.f32 %v4945, %v4957
        %v4978 = vadd.f32 %v4946, %v4959
        %v4979 = vadd.f32 %v4947, %v4961
        %v4980 = vadd.f32 %v4948, %v4963
        %v4981 = vadd.f32 %v4949, %v4965
        %vm4982 = vcmp.gt.f32.partialorder %v4974, 0.0
        %vm4983 = vcmp.gt.f32.partialorder %v4975, 0.0
        %vm4984 = vcmp.gt.f32.partialorder %v4976, 0.0
        %vm4985 = vcmp.gt.f32.partialorder %v4977, 0.0
        %vm4986 = vcmp.gt.f32.partialorder %v4978, 0.0
        %vm4987 = vcmp.gt.f32.partialorder %v4979, 0.0
        %vm4988 = vcmp.gt.f32.partialorder %v4980, 0.0
        %vm4989 = vcmp.gt.f32.partialorder %v4981, 0.0
        %v4990 = vmin.f32 %v4974, 0.0
        %v4991 = vmin.f32 %v4975, 0.0
        %v4992 = vmin.f32 %v4976, 0.0
        %v4993 = vmin.f32 %v4977, 0.0
        %v4994 = vmin.f32 %v4978, 0.0
        %v4995 = vmin.f32 %v4979, 0.0
        %v4996 = vmin.f32 %v4980, 0.0
        %v4997 = vmin.f32 %v4981, 0.0
        %v4998 = vmul.f32 %v4990, 1.442695
        %v4999 = vpow.pop %v4998
        %v5000 = vmul.f32 %v4991, 1.442695
        %v5001 = vpow.pop %v5000
        %v5002 = vmul.f32 %v4992, 1.442695
        %v5003 = vpow.pop %v5002
        %v5004 = vmul.f32 %v4993, 1.442695
        %v5005 = vpow.pop %v5004
        %v5006 = vmul.f32 %v4994, 1.442695
        %v5007 = vpow.pop %v5006
        %v5008 = vmul.f32 %v4995, 1.442695
        %v5009 = vpow.pop %v5008
        %v5010 = vmul.f32 %v4996, 1.442695
        %v5011 = vpow.pop %v5010
        %v5012 = vmul.f32 %v4997, 1.442695
        %v5013 = vpow.pop %v5012
        %v5014 = vsub.f32 %v4999, 1.0
        %v5015 = vsub.f32 %v5001, 1.0
        %v5016 = vsub.f32 %v5003, 1.0
        %v5017 = vsub.f32 %v5005, 1.0
        %v5018 = vsub.f32 %v5007, 1.0
        %v5019 = vsub.f32 %v5009, 1.0
        %v5020 = vsub.f32 %v5011, 1.0
        %v5021 = vsub.f32 %v5013, 1.0
        %v5022 = vsel %vm4982, %v4974, %v5014
        %v5023 = vsel %vm4983, %v4975, %v5015
        %v5024 = vsel %vm4984, %v4976, %v5016
        %v5025 = vsel %vm4985, %v4977, %v5017
        %v5026 = vsel %vm4986, %v4978, %v5018
        %v5027 = vsel %vm4987, %v4979, %v5019
        %v5028 = vsel %vm4988, %v4980, %v5020
        %v5029 = vsel %vm4989, %v4981, %v5021
        %vm5030 = vcmask 261120
        %5031 = vst.msk [vmem:[%s343] sm:$0xff] %vm5030, %v5022
        %5032 = vst.msk [vmem:[%s343 + $0x8] sm:$0xff] %vm5030, %v5023
        %5033 = vst.msk [vmem:[%s343 + $0x10] sm:$0xff] %vm5030, %v5024
        %5034 = vst.msk [vmem:[%s343 + $0x18] sm:$0xff] %vm5030, %v5025
        %5035 = vst.msk [vmem:[%s343 + $0x20] sm:$0xff] %vm5030, %v5026
        %5036 = vst.msk [vmem:[%s343 + $0x28] sm:$0xff] %vm5030, %v5027
        %5037 = vst.msk [vmem:[%s343 + $0x30] sm:$0xff] %vm5030, %v5028
        %5038 = vst.msk [vmem:[%s343 + $0x38] sm:$0xff] %vm5030, %v5029
        %s5039 = smul.u32 8, %s20
        %p5040 = scmp.lt.s32.totalorder %s5039, 15
        %s5041 = scalar_select %p5040, %s5039, 15
        %s5042 = smul.addr %s5041, 8
        %s5043 = scalar_lea.vmem %s8, %s5042
        // Predicated region
        $region57: #{tpu_custom_call.1} parent=51 // pred_check
          %p5044 = pneg %p216
        $region58: #{tpu_custom_call.1} parent=51 // pred_check_branch
          %5046 = sbr.rel (%p5044) target = $region60
        $region59: #{tpu_custom_call.1} parent=51 // pred_region
          %s5047 = smul.u32 8, %s20
        $region60: #{tpu_custom_call.1} parent=51 // pred_fallthru
          _
      $region52: #{tpu_custom_call.1} parent=5 // pred_fallthru
        _
      %p5048 = scmp.le.s32.totalorder 2, %s15
      // Predicated region
      $region61: #{tpu_custom_call.1} parent=5 // pred_check
        %p5049 = pneg %p5048
      $region62: #{tpu_custom_call.1} parent=5 // pred_check_branch
        %5051 = sbr.rel (%p5049) target = $region64
      $region63: #{tpu_custom_call.1} parent=5 // pred_region
        %s5052 = ssub.s32 %s15, 2
        // Predicated region
        $region65: #{tpu_custom_call.1} parent=63 // pred_check
          %p5053 = pneg %p222
        $region66: #{tpu_custom_call.1} parent=63 // pred_check_branch
          %5055 = sbr.rel (%p5053) target = $region68
        $region67: #{tpu_custom_call.1} parent=63 // pred_region
          %s5056 = smul.u32 8, %s21
          %p5057 = scmp.lt.s32.totalorder %s5056, 15
          %s5058 = scalar_select %p5057, %s5056, 15
          %s5059 = smul.addr %s5058, 8
          %s5060 = scalar_lea.vmem %s8, %s5059
        $region68: #{tpu_custom_call.1} parent=63 // pred_fallthru
          _
      $region64: #{tpu_custom_call.1} parent=5 // pred_fallthru
        _
    $region6: #{tpu_custom_call.1} parent=1 // loop_footer
      %s19 = sadd.s32 1, %s15
    $region7: #{tpu_custom_call.1} parent=1 // loop_footer_branch
      %14 = sbr.rel target = $region3
    $region8: #{tpu_custom_call.1} parent=1 // loop_exit
      _
    %5061 = vsyncpa [#allocation3], 1
    %s5062 = scalar_lea.sflag [#allocation3], 1
    %5063 = vsyncpa %s5062, 1

</llo_original>
